<compile_context>
chip_gen: v6e
topology: v6e:2x2x1
jax: 0.10.0
libtpu: 0.0.40
codegen_flags: <defaults>
</compile_context>

<pallas_src>
import math
from functools import partial

import jax
import jax.numpy as jnp
from jax import lax
from jax.experimental import pallas as pl
from jax.experimental.pallas import tpu as pltpu

# ----------------------------- "module __init__" -----------------------------
V_INPUT = 100.0
V_LATENT = 0.01
AUG_NEAR_RATE = 100000.0
SIGMA_P = 1.0
SIGMA_Q = 1.0
EPS = 1e-12
LOG_EPS = math.log(EPS)


def _cal_gamma(v: float) -> float:
    a = math.gamma((v + 1.0) / 2.0)
    b = math.sqrt(v * math.pi) * math.gamma(v / 2.0)
    return a / b


GAMMA_INPUT = _cal_gamma(V_INPUT)
GAMMA_LATENT = _cal_gamma(V_LATENT)
LOG_GAMMA_LATENT = math.log(GAMMA_LATENT)
P_EXP = -(V_INPUT + 1.0) / 2.0
Q_EXP = -(V_LATENT + 1.0) / 2.0

# The log1p(-Q) polynomial below assumes Q stays well below 1; that holds
# because Q <= GAMMA_LATENT.  Guard the assumption at import time.
assert GAMMA_LATENT < 0.2, "log1p(-Q) polynomial requires Q << 1"


# ------------------------------ shared loss math ------------------------------
def _two_way_divergence(dis_in, dlat):
    """-(P*log(Q+EPS) + (1-P)*log(1-Q+EPS)) with EUP-minimal formulation."""
    P = GAMMA_INPUT * jnp.exp(
        P_EXP * jnp.log(1.0 + dis_in * (1.0 / (SIGMA_P * V_INPUT))))
    log_q = LOG_GAMMA_LATENT + Q_EXP * jnp.log(
        1.0 + dlat * (1.0 / (SIGMA_Q * V_LATENT)))
    Q = jnp.exp(log_q)
    # ~ log(Q + EPS): differs by <= ln2 only when Q ~ EPS (never here).
    log_q_safe = jnp.maximum(log_q, LOG_EPS)
    # log(1 - Q + EPS) ~= log1p(-Q) = -(Q + Q^2/2 + Q^3/3 + Q^4/4 + ...);
    # Q <= GAMMA_LATENT ~ 0.05 -> truncation error < Q^5/5 ~ 6e-8 (VPU-only).
    q2 = Q * Q
    log_1mq = -(Q + 0.5 * q2 + (1.0 / 3.0) * q2 * Q + 0.25 * q2 * q2)
    return -(P * log_q_safe + (1.0 - P) * log_1mq)


def _pairwise_sqdist(ar, ac, nr, nc):
    """||a_r - a_c||^2 from row tiles + precomputed squared norms."""
    cross = lax.dot_general(ar, ac, (((1,), (1,)), ((), ())),
                            preferred_element_type=jnp.float32)
    return jnp.maximum(nr + nc - 2.0 * cross, 0.0)


# ------------------------- small fused path (grid=()) -------------------------
def _fused_small_kernel(n, xcat_ref, latf_ref, rowsum_ref):
    f32 = jnp.float32
    x = xcat_ref[...].astype(f32)                       # (2N, D_in), rows duplicated
    lat = latf_ref[...].astype(f32)                     # (2N, D_lat)
    m = x.shape[0]

    xn = jnp.sum(x * x, axis=-1, keepdims=True)         # (2N, 1)
    dfull = _pairwise_sqdist(x, x, xn, xn.T)            # == meta tiled 2x2

    r = lax.broadcasted_iota(jnp.int32, (m, m), 0)
    c = lax.broadcasted_iota(jnp.int32, (m, m), 1)
    # same underlying sample (a point, its duplicate, or itself) -> exclude
    # from the nearest-neighbour min, exactly like masking the NxN diagonal.
    same_pt = (r == c) | (r == c + n) | (c == r + n)
    nnd = jnp.min(jnp.where(same_pt, jnp.inf, dfull),
                  axis=-1, keepdims=True) * (1.0 / AUG_NEAR_RATE)   # (2N, 1)

    aug = (lax.broadcasted_iota(jnp.int32, (m, 1), 0) >= n).astype(f32)
    add_col = aug * nnd                                  # (2N, 1)
    dis_in = dfull + add_col + add_col.T                 # [[meta, right],[down, rd]]

    ln = jnp.sum(lat * lat, axis=-1, keepdims=True)
    dlat = _pairwise_sqdist(lat, lat, ln, ln.T)

    loss = _two_way_divergence(dis_in, dlat)
    loss = jnp.where(r == c, 0.0, loss)                  # zero the global diagonal
    rowsum_ref[...] = jnp.sum(loss, axis=-1, keepdims=True)


# ----------------------------- pass 0: row norms ------------------------------
def _rownorm_kernel(x_ref, out_ref):
    x = x_ref[...].astype(jnp.float32)
    out_ref[...] = jnp.sum(x * x, axis=-1, keepdims=True)


def _pick_div(n, candidates):
    for c in candidates:
        if n % c == 0:
            return c
    return n


def _row_norms(x):
    rows, d = x.shape
    tb = _pick_div(rows, (512, 256, 128, 64, 32, 16, 8))
    return pl.pallas_call(
        _rownorm_kernel,
        out_shape=jax.ShapeDtypeStruct((rows, 1), jnp.float32),
        grid=(rows // tb,),
        in_specs=[pl.BlockSpec((tb, d), lambda i: (i, 0))],
        out_specs=pl.BlockSpec((tb, 1), lambda i: (i, 0)),
        compiler_params=pltpu.CompilerParams(
            dimension_semantics=("parallel",)),
    )(x)


# --------------------- pass 1: tiled nearest-neighbour dist -------------------
def _nnd_kernel(xr_ref, xc_ref, xnr_ref, xnc_ref, nnd_ref):
    i = pl.program_id(0)
    j = pl.program_id(1)

    @pl.when(j == 0)
    def _init():
        nnd_ref[...] = jnp.full(nnd_ref.shape, jnp.inf, jnp.float32)

    xr = xr_ref[...].astype(jnp.float32)
    xc = xc_ref[...].astype(jnp.float32)
    meta = _pairwise_sqdist(xr, xc, xnr_ref[...], xnc_ref[...])
    t = meta.shape[0]
    eye = (lax.broadcasted_iota(jnp.int32, (t, t), 0)
           == lax.broadcasted_iota(jnp.int32, (t, t), 1))
    # +inf on the global diagonal (only diagonal tiles carry it); min result
    # equals the PyTorch "set diag to max+1 then min" construction.
    meta = jnp.where(jnp.logical_and(eye, i == j), jnp.inf, meta)
    nnd_ref[...] = jnp.minimum(nnd_ref[...],
                               jnp.min(meta, axis=-1, keepdims=True))

    @pl.when(j == pl.num_programs(1) - 1)
    def _final():
        nnd_ref[...] = nnd_ref[...] * (1.0 / AUG_NEAR_RATE)


def _pick_pre_tile(n, d_in):
    for t in (256, 128):
        if n % t == 0 and (4 * t * d_in * 4 + 3 * t * t * 4) <= 24 * 1024 * 1024:
            return t
    # TODO(synk): batch sizes not divisible by 128 fall back to sub-128 lane
    # blocks for the (1,t) norm input; fine for typical power-of-two batches.
    return _pick_div(n, (64, 32, 16, 8))


def _nearest_neighbour_dist(x, xnorm):
    n, d_in = x.shape
    tr = _pick_pre_tile(n, d_in)
    xnorm_r = xnorm.reshape(1, n)
    return pl.pallas_call(
        _nnd_kernel,
        out_shape=jax.ShapeDtypeStruct((n, 1), jnp.float32),
        grid=(n // tr, n // tr),
        in_specs=[
            pl.BlockSpec((tr, d_in), lambda i, j: (i, 0)),
            pl.BlockSpec((tr, d_in), lambda i, j: (j, 0)),
            pl.BlockSpec((tr, 1), lambda i, j: (i, 0)),
            pl.BlockSpec((1, tr), lambda i, j: (0, j)),
        ],
        out_specs=pl.BlockSpec((tr, 1), lambda i, j: (i, 0)),
        compiler_params=pltpu.CompilerParams(
            dimension_semantics=("parallel", "arbitrary"),
            vmem_limit_bytes=32 * 1024 * 1024),
    )(x, x, xnorm, xnorm_r)


# -------------------- pass 2: tiled symmetric loss row-sums -------------------
def _tile_kernel(nbh, G,
                 xr_ref, xc_ref, lr_ref, lc_ref,
                 xnr_ref, xnc_ref, lnr_ref, lnc_ref,
                 nnr_ref, nnc_ref, acc_ref):
    i = pl.program_id(0)          # row block in [0, G)
    k = pl.program_id(1)          # circulant offset in [0, G/2]
    f32 = jnp.float32

    @pl.when(k == 0)
    def _init():
        acc_ref[...] = jnp.zeros_like(acc_ref)

    # input-space squared distances for this (row-block, col-block) pair
    xr = xr_ref[...].astype(f32)
    xc = xc_ref[...].astype(f32)
    meta = _pairwise_sqdist(xr, xc, xnr_ref[...], xnc_ref[...])

    # column block in the 2N space: (i + k) mod G, without lax.rem
    ipk = i + k
    col_blk = jnp.where(ipk >= G, ipk - G, ipk)
    aug_r = (i >= nbh).astype(f32)
    aug_c = (col_blk >= nbh).astype(f32)
    # algebraic form of the [[meta, right], [down, rightdown]] block matrix
    dis_in = meta + aug_r * nnr_ref[...] + aug_c * nnc_ref[...]

    # latent-space squared distances
    lr = lr_ref[...].astype(f32)
    lc = lc_ref[...].astype(f32)
    dlat = _pairwise_sqdist(lr, lc, lnr_ref[...], lnc_ref[...])

    loss_tile = _two_way_divergence(dis_in, dlat)

    # zero the global diagonal (only k == 0 tiles contain it), folded into the
    # single masked accumulate below
    t = loss_tile.shape[0]
    eye = (lax.broadcasted_iota(jnp.int32, (t, t), 0)
           == lax.broadcasted_iota(jnp.int32, (t, t), 1))
    loss_tile = jnp.where(jnp.logical_and(eye, k == 0), 0.0, loss_tile)

    # circulant-triangular weighting: each unordered tile pair appears once;
    # k == 0 (diagonal tiles) and k == G/2 (both transposed halves visited)
    # count once, everything else counts for itself and its transpose.
    w = jnp.where(jnp.logical_or(k == 0, k == G // 2), 1.0, 2.0).astype(f32)
    acc_ref[...] += w * jnp.sum(loss_tile, axis=-1, keepdims=True)


def _pick_tile(n, d_in, d_lat, budget=28 * 1024 * 1024):
    # largest tile <= 512 that divides N and keeps (temporaries + double-
    # buffered input tiles) under the explicit 32 MiB VMEM limit (v7x-safe).
    for t in (512, 256, 128):
        if n % t:
            continue
        est = 8 * t * t * 4 + 4 * t * (d_in + d_lat) * 4
        if est <= budget:
            return t
    if n <= 512:
        return n
    # TODO(synk): exotic batch sizes (>512, not divisible by 128) fall back to
    # narrow tiles; fine for correctness, suboptimal for lane density.
    return _pick_div(n, (64, 32, 16, 8))


# --------------------------------- wrapper -----------------------------------
def myloss_forward(high_data_s, high_data_s_aug, high_data_t, high_data_t_aug,
                   low_data_s, low_data_s_aug, low_data_t, low_data_t_aug,
                   *, force_tiled=False, tile=None):
    """Mirrors MyLoss.forward; only (high_data_s, low_data_s, low_data_s_aug)
    are consumed, matching the body of the PyTorch forward. Returns loss.mean()."""
    input_data = high_data_s
    latent_data = low_data_s
    latent_data_aug = low_data_s_aug

    n, d_in = input_data.shape
    d_lat = latent_data.shape[1]
    m = 2 * n
    assert n % 8 == 0 and n >= 8, "batch size must be a multiple of 8"

    latf = jnp.concatenate([latent_data, latent_data_aug], axis=0)  # (2N, D_lat)

    # ---------- small problems: single fused VMEM-resident kernel ----------
    small_bytes = 4 * (m * d_in + m * d_lat) + 12 * 4 * m * m
    if (not force_tiled) and m <= 512 and small_bytes <= 24 * 1024 * 1024:
        xcat = jnp.concatenate([input_data, input_data], axis=0)    # (2N, D_in)
        row_sums = pl.pallas_call(
            partial(_fused_small_kernel, n),
            out_shape=jax.ShapeDtypeStruct((m, 1), jnp.float32),
            in_specs=[pl.BlockSpec(memory_space=pltpu.MemorySpace.VMEM)] * 2,
            out_specs=pl.BlockSpec(memory_space=pltpu.MemorySpace.VMEM),
            compiler_params=pltpu.CompilerParams(
                vmem_limit_bytes=32 * 1024 * 1024),
        )(xcat, latf)
        return jnp.sum(row_sums) / (m * m)

    # -------------------------- large problems: tiled --------------------------
    xnorm = _row_norms(input_data)                                  # (N, 1)
    latnorm = _row_norms(latf)                                      # (2N, 1)
    nnd = _nearest_neighbour_dist(input_data, xnorm)                # (N, 1), /augNearRate

    t = tile if tile is not None else _pick_tile(n, d_in, d_lat)
    assert n % t == 0 and t % 8 == 0, f"bad tile {t} for N={n}"
    nbh = n // t                    # row/col blocks per half
    G = m // t                      # total blocks along one side (even)

    xnorm_r = xnorm.reshape(1, n)
    latnorm_r = latnorm.reshape(1, m)
    nnd_r = nnd.reshape(1, n)

    in_specs = [
        pl.BlockSpec((t, d_in), lambda i, k: (i % nbh, 0)),          # x rows
        pl.BlockSpec((t, d_in), lambda i, k: ((i + k) % nbh, 0)),    # x cols
        pl.BlockSpec((t, d_lat), lambda i, k: (i, 0)),               # latent rows
        pl.BlockSpec((t, d_lat), lambda i, k: ((i + k) % G, 0)),     # latent cols
        pl.BlockSpec((t, 1), lambda i, k: (i % nbh, 0)),             # ||x_r||^2
        pl.BlockSpec((1, t), lambda i, k: (0, (i + k) % nbh)),       # ||x_c||^2
        pl.BlockSpec((t, 1), lambda i, k: (i, 0)),                   # ||lat_r||^2
        pl.BlockSpec((1, t), lambda i, k: (0, (i + k) % G)),         # ||lat_c||^2
        pl.BlockSpec((t, 1), lambda i, k: (i % nbh, 0)),             # nnd rows
        pl.BlockSpec((1, t), lambda i, k: (0, (i + k) % nbh)),       # nnd cols
    ]

    row_sums = pl.pallas_call(
        partial(_tile_kernel, nbh, G),
        out_shape=jax.ShapeDtypeStruct((m, 1), jnp.float32),
        grid=(G, G // 2 + 1),
        in_specs=in_specs,
        out_specs=pl.BlockSpec((t, 1), lambda i, k: (i, 0)),
        compiler_params=pltpu.CompilerParams(
            dimension_semantics=("parallel", "arbitrary"),
            vmem_limit_bytes=32 * 1024 * 1024),
    )(input_data, input_data, latf, latf,
      xnorm, xnorm_r, latnorm, latnorm_r, nnd, nnd_r)

    # off-diagonal tiles are double-counted into their row block only; the
    # grand total (all we need for the mean) is still exact.
    return jnp.sum(row_sums) / (m * m)


# -------------------------- plain-JAX reference ------------------------------
def _reference(input_data, latent_data, latent_data_aug):
    def sqdist(a):
        nrm = jnp.sum(a * a, axis=-1, keepdims=True)
        d = nrm + nrm.T - 2.0 * (a @ a.T)
        return jnp.maximum(d, 0.0)

    def sim(d, sigma, gamma, v):
        dr = jnp.maximum(d / sigma, 0.0)
        return gamma * jnp.power(1.0 + dr / v, -(v + 1.0) / 2.0)

    x = input_data.astype(jnp.float32)
    meta = sqdist(x)
    n = meta.shape[0]
    meta_masked = jnp.where(jnp.eye(n, dtype=bool), jnp.max(meta) + 1.0, meta)
    nnd = jnp.min(meta_masked, axis=0) / AUG_NEAR_RATE
    dis = jnp.concatenate(
        [jnp.concatenate([meta, meta + nnd[None, :]], axis=1),
         jnp.concatenate([meta + nnd[:, None],
                          meta + nnd[None, :] + nnd[:, None]], axis=1)], axis=0)
    lat = jnp.concatenate([latent_data, latent_data_aug], 0).astype(jnp.float32)
    dlat = sqdist(lat)
    P = sim(dis, SIGMA_P, GAMMA_INPUT, V_INPUT)
    Q = sim(dlat, SIGMA_Q, GAMMA_LATENT, V_LATENT)
    loss = -(P * jnp.log(Q + EPS) + (1.0 - P) * jnp.log(1.0 - Q + EPS))
    m = 2 * n
    loss = jnp.where(jnp.eye(m, dtype=bool), 0.0, loss)
    return jnp.mean(loss)


# ----------------------------------- main ------------------------------------
if __name__ == "__main__":
    N, D_IN, D_LAT = 128, 256, 128
    keys = jax.random.split(jax.random.PRNGKey(0), 8)
    high_s     = jax.random.normal(keys[0], (N, D_IN),  jnp.float32)
    high_s_aug = jax.random.normal(keys[1], (N, D_IN),  jnp.float32)
    high_t     = jax.random.normal(keys[2], (N, D_IN),  jnp.float32)
    high_t_aug = jax.random.normal(keys[3], (N, D_IN),  jnp.float32)
    low_s      = jax.random.normal(keys[4], (N, D_LAT), jnp.float32)
    low_s_aug  = jax.random.normal(keys[5], (N, D_LAT), jnp.float32)
    low_t      = jax.random.normal(keys[6], (N, D_LAT), jnp.float32)
    low_t_aug  = jax.random.normal(keys[7], (N, D_LAT), jnp.float32)

    ref = _reference(high_s, low_s, low_s_aug)

    # 1) default path for this size: single fused kernel
    out_small = myloss_forward(high_s, high_s_aug, high_t, high_t_aug,
                               low_s, low_s_aug, low_t, low_t_aug)
    jax.block_until_ready(out_small)
    assert jnp.allclose(out_small, ref, rtol=2e-4, atol=1e-6), (out_small, ref)

    # 2) tiled (large-batch) path on the same data (G = 2)
    out_tiled = myloss_forward(high_s, high_s_aug, high_t, high_t_aug,
                               low_s, low_s_aug, low_t, low_t_aug,
                               force_tiled=True)
    jax.block_until_ready(out_tiled)
    assert jnp.allclose(out_tiled, ref, rtol=2e-4, atol=1e-6), (out_tiled, ref)

    # 3) tiled path with G = 4: exercises the weight-2 circulant tiles
    N2, D2_IN, D2_LAT = 256, 64, 32
    keys2 = jax.random.split(jax.random.PRNGKey(1), 3)
    h2  = jax.random.normal(keys2[0], (N2, D2_IN),  jnp.float32)
    l2  = jax.random.normal(keys2[1], (N2, D2_LAT), jnp.float32)
    l2a = jax.random.normal(keys2[2], (N2, D2_LAT), jnp.float32)
    ref2 = _reference(h2, l2, l2a)
    out2 = myloss_forward(h2, h2, h2, h2, l2, l2a, l2, l2a,
                          force_tiled=True, tile=128)
    jax.block_until_ready(out2)
    assert jnp.allclose(out2, ref2, rtol=2e-4, atol=1e-6), (out2, ref2)

    print("KERNEL_OK")
</pallas_src>

<mosaic_0001>
module attributes {stable_mosaic.version = 11 : i64} {
  func.func @_fused_small_kernel(%arg0: memref<256x256xf32, #tpu.memory_space<vmem>>, %arg1: memref<256x128xf32, #tpu.memory_space<vmem>>, %arg2: memref<256x1xf32, #tpu.memory_space<vmem>>) attributes {dimension_semantics = [], scalar_prefetch = 0 : i64, scratch_operands = 0 : i64, tpu.core_type = #tpu.core_type<tc>} {
    %c0 = arith.constant 0 : index
    %c0_0 = arith.constant 0 : index
    %0 = vector.load %arg0[%c0, %c0_0] : memref<256x256xf32, #tpu.memory_space<vmem>>, vector<256x256xf32>
    %c0_1 = arith.constant 0 : index
    %c0_2 = arith.constant 0 : index
    %1 = vector.load %arg1[%c0_1, %c0_2] : memref<256x128xf32, #tpu.memory_space<vmem>>, vector<256x128xf32>
    %2 = arith.mulf %0, %0 : vector<256x256xf32>
    %cst = arith.constant dense<0.000000e+00> : vector<256xf32>
    %3 = vector.multi_reduction <add>, %2, %cst [1] : vector<256x256xf32> to vector<256xf32>
    %4 = vector.shape_cast %3 : vector<256xf32> to vector<256x1xf32>
    %5 = tpu.transpose %4, [1, 0] : vector<256x1xf32> -> vector<1x256xf32>
    %cst_3 = arith.constant dense<0.000000e+00> : vector<256x256xf32>
    %6 = tpu.matmul %0, %0, %cst_3 {dimension_numbers = #tpu.dot_dimension_numbers<[1], [1], [0], [0], [0, 0, 1, 0], [], []>} : vector<256x256xf32>, vector<256x256xf32>, vector<256x256xf32> -> vector<256x256xf32>
    %7 = vector.broadcast %4 : vector<256x1xf32> to vector<256x256xf32>
    %8 = vector.broadcast %5 : vector<1x256xf32> to vector<256x256xf32>
    %9 = arith.addf %7, %8 : vector<256x256xf32>
    %cst_4 = arith.constant 2.000000e+00 : f32
    %10 = vector.broadcast %cst_4 : f32 to vector<256x256xf32>
    %11 = arith.mulf %10, %6 : vector<256x256xf32>
    %12 = arith.subf %9, %11 : vector<256x256xf32>
    %cst_5 = arith.constant 0.000000e+00 : f32
    %13 = vector.broadcast %cst_5 : f32 to vector<256x256xf32>
    %14 = arith.maximumf %12, %13 : vector<256x256xf32>
    %15 = tpu.iota {dimensions = array<i32: 0>} : vector<256x256xi32>
    %16 = tpu.iota {dimensions = array<i32: 1>} : vector<256x256xi32>
    %17 = arith.cmpi eq, %15, %16 : vector<256x256xi32>
    %c128_i32 = arith.constant 128 : i32
    %18 = vector.broadcast %c128_i32 : i32 to vector<256x256xi32>
    %19 = arith.addi %16, %18 : vector<256x256xi32>
    %20 = arith.cmpi eq, %15, %19 : vector<256x256xi32>
    %21 = arith.ori %17, %20 : vector<256x256xi1>
    %c128_i32_6 = arith.constant 128 : i32
    %22 = vector.broadcast %c128_i32_6 : i32 to vector<256x256xi32>
    %23 = arith.addi %15, %22 : vector<256x256xi32>
    %24 = arith.cmpi eq, %16, %23 : vector<256x256xi32>
    %25 = arith.ori %21, %24 : vector<256x256xi1>
    %cst_7 = arith.constant 0x7F800000 : f32
    %26 = vector.broadcast %cst_7 : f32 to vector<256x256xf32>
    %27 = arith.select %25, %26, %14 : vector<256x256xi1>, vector<256x256xf32>
    %cst_8 = arith.constant dense<0x7F800000> : vector<256xf32>
    %28 = vector.multi_reduction <minimumf>, %27, %cst_8 [1] : vector<256x256xf32> to vector<256xf32>
    %29 = vector.shape_cast %28 : vector<256xf32> to vector<256x1xf32>
    %cst_9 = arith.constant 9.99999974E-6 : f32
    %30 = vector.broadcast %cst_9 : f32 to vector<256x1xf32>
    %31 = arith.mulf %29, %30 : vector<256x1xf32>
    %32 = tpu.iota {dimensions = array<i32: 0>} : vector<256x1xi32>
    %c128_i32_10 = arith.constant 128 : i32
    %33 = vector.broadcast %c128_i32_10 : i32 to vector<256x1xi32>
    %34 = arith.cmpi sge, %32, %33 : vector<256x1xi32>
    %35 = arith.extui %34 : vector<256x1xi1> to vector<256x1xi32>
    %36 = arith.sitofp %35 : vector<256x1xi32> to vector<256x1xf32>
    %37 = arith.mulf %36, %31 : vector<256x1xf32>
    %38 = vector.broadcast %37 : vector<256x1xf32> to vector<256x256xf32>
    %39 = arith.addf %14, %38 : vector<256x256xf32>
    %40 = tpu.transpose %37, [1, 0] : vector<256x1xf32> -> vector<1x256xf32>
    %41 = vector.broadcast %40 : vector<1x256xf32> to vector<256x256xf32>
    %42 = arith.addf %39, %41 : vector<256x256xf32>
    %43 = arith.mulf %1, %1 : vector<256x128xf32>
    %cst_11 = arith.constant dense<0.000000e+00> : vector<256xf32>
    %44 = vector.multi_reduction <add>, %43, %cst_11 [1] : vector<256x128xf32> to vector<256xf32>
    %45 = vector.shape_cast %44 : vector<256xf32> to vector<256x1xf32>
    %46 = tpu.transpose %45, [1, 0] : vector<256x1xf32> -> vector<1x256xf32>
    %cst_12 = arith.constant dense<0.000000e+00> : vector<256x256xf32>
    %47 = tpu.matmul %1, %1, %cst_12 {dimension_numbers = #tpu.dot_dimension_numbers<[1], [1], [0], [0], [0, 0, 1, 0], [], []>} : vector<256x128xf32>, vector<256x128xf32>, vector<256x256xf32> -> vector<256x256xf32>
    %48 = vector.broadcast %45 : vector<256x1xf32> to vector<256x256xf32>
    %49 = vector.broadcast %46 : vector<1x256xf32> to vector<256x256xf32>
    %50 = arith.addf %48, %49 : vector<256x256xf32>
    %cst_13 = arith.constant 2.000000e+00 : f32
    %51 = vector.broadcast %cst_13 : f32 to vector<256x256xf32>
    %52 = arith.mulf %51, %47 : vector<256x256xf32>
    %53 = arith.subf %50, %52 : vector<256x256xf32>
    %cst_14 = arith.constant 0.000000e+00 : f32
    %54 = vector.broadcast %cst_14 : f32 to vector<256x256xf32>
    %55 = arith.maximumf %53, %54 : vector<256x256xf32>
    %cst_15 = arith.constant 0.00999999977 : f32
    %56 = vector.broadcast %cst_15 : f32 to vector<256x256xf32>
    %57 = arith.mulf %42, %56 : vector<256x256xf32>
    %cst_16 = arith.constant 1.000000e+00 : f32
    %58 = vector.broadcast %cst_16 : f32 to vector<256x256xf32>
    %59 = arith.addf %58, %57 : vector<256x256xf32>
    %60 = math.log %59 : vector<256x256xf32>
    %cst_17 = arith.constant -5.050000e+01 : f32
    %61 = vector.broadcast %cst_17 : f32 to vector<256x256xf32>
    %62 = arith.mulf %61, %60 : vector<256x256xf32>
    %63 = math.exp %62 : vector<256x256xf32>
    %cst_18 = arith.constant 0.397946179 : f32
    %64 = vector.broadcast %cst_18 : f32 to vector<256x256xf32>
    %65 = arith.mulf %64, %63 : vector<256x256xf32>
    %cst_19 = arith.constant 1.000000e+02 : f32
    %66 = vector.broadcast %cst_19 : f32 to vector<256x256xf32>
    %67 = arith.mulf %55, %66 : vector<256x256xf32>
    %cst_20 = arith.constant 1.000000e+00 : f32
    %68 = vector.broadcast %cst_20 : f32 to vector<256x256xf32>
    %69 = arith.addf %68, %67 : vector<256x256xf32>
    %70 = math.log %69 : vector<256x256xf32>
    %cst_21 = arith.constant -5.050000e-01 : f32
    %71 = vector.broadcast %cst_21 : f32 to vector<256x256xf32>
    %72 = arith.mulf %71, %70 : vector<256x256xf32>
    %cst_22 = arith.constant -3.00262284 : f32
    %73 = vector.broadcast %cst_22 : f32 to vector<256x256xf32>
    %74 = arith.addf %73, %72 : vector<256x256xf32>
    %75 = math.exp %74 : vector<256x256xf32>
    %cst_23 = arith.constant -27.6310215 : f32
    %76 = vector.broadcast %cst_23 : f32 to vector<256x256xf32>
    %77 = arith.maximumf %74, %76 : vector<256x256xf32>
    %78 = arith.mulf %75, %75 : vector<256x256xf32>
    %cst_24 = arith.constant 5.000000e-01 : f32
    %79 = vector.broadcast %cst_24 : f32 to vector<256x256xf32>
    %80 = arith.mulf %79, %78 : vector<256x256xf32>
    %81 = arith.addf %75, %80 : vector<256x256xf32>
    %cst_25 = arith.constant 0.333333343 : f32
    %82 = vector.broadcast %cst_25 : f32 to vector<256x256xf32>
    %83 = arith.mulf %82, %78 : vector<256x256xf32>
    %84 = arith.mulf %83, %75 : vector<256x256xf32>
    %85 = arith.addf %81, %84 : vector<256x256xf32>
    %cst_26 = arith.constant 2.500000e-01 : f32
    %86 = vector.broadcast %cst_26 : f32 to vector<256x256xf32>
    %87 = arith.mulf %86, %78 : vector<256x256xf32>
    %88 = arith.mulf %87, %78 : vector<256x256xf32>
    %89 = arith.addf %85, %88 : vector<256x256xf32>
    %cst_27 = arith.constant 0.000000e+00 : f32
    %90 = vector.broadcast %cst_27 : f32 to vector<256x256xf32>
    %91 = arith.subf %90, %89 : vector<256x256xf32>
    %92 = arith.mulf %65, %77 : vector<256x256xf32>
    %cst_28 = arith.constant 1.000000e+00 : f32
    %93 = vector.broadcast %cst_28 : f32 to vector<256x256xf32>
    %94 = arith.subf %93, %65 : vector<256x256xf32>
    %95 = arith.mulf %94, %91 : vector<256x256xf32>
    %96 = arith.addf %92, %95 : vector<256x256xf32>
    %cst_29 = arith.constant 0.000000e+00 : f32
    %97 = vector.broadcast %cst_29 : f32 to vector<256x256xf32>
    %98 = arith.subf %97, %96 : vector<256x256xf32>
    %99 = arith.cmpi eq, %15, %16 : vector<256x256xi32>
    %cst_30 = arith.constant 0.000000e+00 : f32
    %100 = vector.broadcast %cst_30 : f32 to vector<256x256xf32>
    %101 = arith.select %99, %100, %98 : vector<256x256xi1>, vector<256x256xf32>
    %cst_31 = arith.constant dense<0.000000e+00> : vector<256xf32>
    %102 = vector.multi_reduction <add>, %101, %cst_31 [1] : vector<256x256xf32> to vector<256xf32>
    %103 = vector.shape_cast %102 : vector<256xf32> to vector<256x1xf32>
    %c0_32 = arith.constant 0 : index
    %c0_33 = arith.constant 0 : index
    %104 = vector.load %arg2[%c0_32, %c0_33] : memref<256x1xf32, #tpu.memory_space<vmem>>, vector<256x1xf32>
    tpu.vector_store %arg2[%c0_32, %c0_33], %103 {strides = array<i32>} : memref<256x1xf32, #tpu.memory_space<vmem>>, vector<256x1xf32>,
    return
  }
}

</mosaic_0001>

<llo_original>
// kernel: tpu_custom_call.1
$region0: #{tpu_custom_call.1}
  #allocation0 [shape = 'u32[]', space=smem, size = 0x4, offset = 0x4, fixed_abs, tag = 'smem constant byte address 0x4 - core index']
  #allocation1 [shape = 'u32[144,128]{1,0:T(1,128)}', space=vmem, size = 0x12000, scoped, tag = 'internal scratch']
  %s0 = inlined_call_operand.hbm [shape: f32[256,256], index: 0, kind: input, shape index: {}]
  %s1 = inlined_call_operand.hbm [shape: f32[256,128], index: 1, kind: input, shape index: {}]
  %s2 = inlined_call_operand.vmem [shape: f32[256,1], index: 2, kind: output, shape index: {}]
  %s3 = sld [smem:[#allocation0]]
  $region26: #{tpu_custom_call.1} parent=0
    _
  %s5 = ssub.s32 1, %s3
  %s6 = scalar_select 0, %s5, %s3
  $region1: #{tpu_custom_call.1} parent=0
    #allocation2 [shape = 'u8[262144]{0}', space=vmem, size = 0x40000, scoped, tag = 'input window, operand 0, single buffered']
    #allocation3 [shape = 's32[1]{0}', space=sflag, size = 0x4, scoped, tag = 'scoped memory for tpu_custom_call.1']
    #allocation4 [shape = 'u8[131072]{0}', space=vmem, size = 0x20000, scoped, tag = 'input window, operand 1, single buffered']
    #allocation5 [shape = 's32[1]{0}', space=sflag, size = 0x4, scoped, tag = 'scoped memory for tpu_custom_call.1']
    %7 = vsyncpa [#allocation3], 0
    %8 = vsyncpa [#allocation5], 0
    // Predicated region
    $region2: #{tpu_custom_call.1} parent=1 // pred_check
      _
    $region3: #{tpu_custom_call.1} parent=1 // pred_check_branch
      %10 = sbr.rel (0) target = $region5
    $region4: #{tpu_custom_call.1} parent=1 // pred_region
      %s12 = ssub.s32 8192, 8192
      %13 = vsyncadd [#allocation3], %s12
      %s14 = sshll.u32 [#allocation2], 4
      %s15 = int_to_ptr.vmem [resolvable:$true] %s14
      %20 = dma.hbm_to_vmem [thread:$0]  %s0, 8192, %s15, [#allocation3], 256, 256, 16
    $region5: #{tpu_custom_call.1} parent=1 // pred_fallthru
      _
    // Predicated region
    $region6: #{tpu_custom_call.1} parent=1 // pred_check
      _
    $region7: #{tpu_custom_call.1} parent=1 // pred_check_branch
      %22 = sbr.rel (0) target = $region9
    $region8: #{tpu_custom_call.1} parent=1 // pred_region
      %s24 = ssub.s32 4096, 4096
      %25 = vsyncadd [#allocation5], %s24
      %s26 = sshll.u32 [#allocation4], 4
      %s27 = int_to_ptr.vmem [resolvable:$true] %s26
      %32 = dma.hbm_to_vmem [thread:$0]  %s1, 4096, %s27, [#allocation5], 128, 128, 8
    $region9: #{tpu_custom_call.1} parent=1 // pred_fallthru
      _
    // Predicated region
    $region10: #{tpu_custom_call.1} parent=1 // pred_check
      _
    $region11: #{tpu_custom_call.1} parent=1 // pred_check_branch
      %34 = sbr.rel (0) target = $region13
    $region12: #{tpu_custom_call.1} parent=1 // pred_region
      %35 = dma.done [#allocation3], 8192
    $region13: #{tpu_custom_call.1} parent=1 // pred_fallthru
      _
    // Predicated region
    $region14: #{tpu_custom_call.1} parent=1 // pred_check
      _
    $region15: #{tpu_custom_call.1} parent=1 // pred_check_branch
      %37 = sbr.rel (0) target = $region17
    $region16: #{tpu_custom_call.1} parent=1 // pred_region
      %38 = dma.done [#allocation5], 4096
    $region17: #{tpu_custom_call.1} parent=1 // pred_fallthru
      _
    %v39 = vld [vmem:[#allocation2] sm:$0xff]
    %v40 = vld [vmem:[#allocation2 + $0x8] sm:$0xff]
    %v41 = vld [vmem:[#allocation2 + $0x10] sm:$0xff]
    %v42 = vld [vmem:[#allocation2 + $0x18] sm:$0xff]
    %v43 = vld [vmem:[#allocation2 + $0x20] sm:$0xff]
    %v44 = vld [vmem:[#allocation2 + $0x28] sm:$0xff]
    %v45 = vld [vmem:[#allocation2 + $0x30] sm:$0xff]
    %v46 = vld [vmem:[#allocation2 + $0x38] sm:$0xff]
    %v47 = vld [vmem:[#allocation2 + $0x40] sm:$0xff]
    %v48 = vld [vmem:[#allocation2 + $0x48] sm:$0xff]
    %v49 = vld [vmem:[#allocation2 + $0x50] sm:$0xff]
    %v50 = vld [vmem:[#allocation2 + $0x58] sm:$0xff]
    %v51 = vld [vmem:[#allocation2 + $0x60] sm:$0xff]
    %v52 = vld [vmem:[#allocation2 + $0x68] sm:$0xff]
    %v53 = vld [vmem:[#allocation2 + $0x70] sm:$0xff]
    %v54 = vld [vmem:[#allocation2 + $0x78] sm:$0xff]
    %v55 = vld [vmem:[#allocation2 + $0x80] sm:$0xff]
    %v56 = vld [vmem:[#allocation2 + $0x88] sm:$0xff]
    %v57 = vld [vmem:[#allocation2 + $0x90] sm:$0xff]
    %v58 = vld [vmem:[#allocation2 + $0x98] sm:$0xff]
    %v59 = vld [vmem:[#allocation2 + $0xa0] sm:$0xff]
    %v60 = vld [vmem:[#allocation2 + $0xa8] sm:$0xff]
    %v61 = vld [vmem:[#allocation2 + $0xb0] sm:$0xff]
    %v62 = vld [vmem:[#allocation2 + $0xb8] sm:$0xff]
    %v63 = vld [vmem:[#allocation2 + $0xc0] sm:$0xff]
    %v64 = vld [vmem:[#allocation2 + $0xc8] sm:$0xff]
    %v65 = vld [vmem:[#allocation2 + $0xd0] sm:$0xff]
    %v66 = vld [vmem:[#allocation2 + $0xd8] sm:$0xff]
    %v67 = vld [vmem:[#allocation2 + $0xe0] sm:$0xff]
    %v68 = vld [vmem:[#allocation2 + $0xe8] sm:$0xff]
    %v69 = vld [vmem:[#allocation2 + $0xf0] sm:$0xff]
    %v70 = vld [vmem:[#allocation2 + $0xf8] sm:$0xff]
    %v71 = vld [vmem:[#allocation2 + $0x100] sm:$0xff]
    %v72 = vld [vmem:[#allocation2 + $0x108] sm:$0xff]
    %v73 = vld [vmem:[#allocation2 + $0x110] sm:$0xff]
    %v74 = vld [vmem:[#allocation2 + $0x118] sm:$0xff]
    %v75 = vld [vmem:[#allocation2 + $0x120] sm:$0xff]
    %v76 = vld [vmem:[#allocation2 + $0x128] sm:$0xff]
    %v77 = vld [vmem:[#allocation2 + $0x130] sm:$0xff]
    %v78 = vld [vmem:[#allocation2 + $0x138] sm:$0xff]
    %v79 = vld [vmem:[#allocation2 + $0x140] sm:$0xff]
    %v80 = vld [vmem:[#allocation2 + $0x148] sm:$0xff]
    %v81 = vld [vmem:[#allocation2 + $0x150] sm:$0xff]
    %v82 = vld [vmem:[#allocation2 + $0x158] sm:$0xff]
    %v83 = vld [vmem:[#allocation2 + $0x160] sm:$0xff]
    %v84 = vld [vmem:[#allocation2 + $0x168] sm:$0xff]
    %v85 = vld [vmem:[#allocation2 + $0x170] sm:$0xff]
    %v86 = vld [vmem:[#allocation2 + $0x178] sm:$0xff]
    %v87 = vld [vmem:[#allocation2 + $0x180] sm:$0xff]
    %v88 = vld [vmem:[#allocation2 + $0x188] sm:$0xff]
    %v89 = vld [vmem:[#allocation2 + $0x190] sm:$0xff]
    %v90 = vld [vmem:[#allocation2 + $0x198] sm:$0xff]
    %v91 = vld [vmem:[#allocation2 + $0x1a0] sm:$0xff]
    %v92 = vld [vmem:[#allocation2 + $0x1a8] sm:$0xff]
    %v93 = vld [vmem:[#allocation2 + $0x1b0] sm:$0xff]
    %v94 = vld [vmem:[#allocation2 + $0x1b8] sm:$0xff]
    %v95 = vld [vmem:[#allocation2 + $0x1c0] sm:$0xff]
    %v96 = vld [vmem:[#allocation2 + $0x1c8] sm:$0xff]
    %v97 = vld [vmem:[#allocation2 + $0x1d0] sm:$0xff]
    %v98 = vld [vmem:[#allocation2 + $0x1d8] sm:$0xff]
    %v99 = vld [vmem:[#allocation2 + $0x1e0] sm:$0xff]
    %v100 = vld [vmem:[#allocation2 + $0x1e8] sm:$0xff]
    %v101 = vld [vmem:[#allocation2 + $0x1f0] sm:$0xff]
    %v102 = vld [vmem:[#allocation2 + $0x1f8] sm:$0xff]
    %v103 = vld [vmem:[#allocation4] sm:$0xff]
    %v104 = vld [vmem:[#allocation4 + $0x8] sm:$0xff]
    %v105 = vld [vmem:[#allocation4 + $0x10] sm:$0xff]
    %v106 = vld [vmem:[#allocation4 + $0x18] sm:$0xff]
    %v107 = vld [vmem:[#allocation4 + $0x20] sm:$0xff]
    %v108 = vld [vmem:[#allocation4 + $0x28] sm:$0xff]
    %v109 = vld [vmem:[#allocation4 + $0x30] sm:$0xff]
    %v110 = vld [vmem:[#allocation4 + $0x38] sm:$0xff]
    %v111 = vld [vmem:[#allocation4 + $0x40] sm:$0xff]
    %v112 = vld [vmem:[#allocation4 + $0x48] sm:$0xff]
    %v113 = vld [vmem:[#allocation4 + $0x50] sm:$0xff]
    %v114 = vld [vmem:[#allocation4 + $0x58] sm:$0xff]
    %v115 = vld [vmem:[#allocation4 + $0x60] sm:$0xff]
    %v116 = vld [vmem:[#allocation4 + $0x68] sm:$0xff]
    %v117 = vld [vmem:[#allocation4 + $0x70] sm:$0xff]
    %v118 = vld [vmem:[#allocation4 + $0x78] sm:$0xff]
    %v119 = vld [vmem:[#allocation4 + $0x80] sm:$0xff]
    %v120 = vld [vmem:[#allocation4 + $0x88] sm:$0xff]
    %v121 = vld [vmem:[#allocation4 + $0x90] sm:$0xff]
    %v122 = vld [vmem:[#allocation4 + $0x98] sm:$0xff]
    %v123 = vld [vmem:[#allocation4 + $0xa0] sm:$0xff]
    %v124 = vld [vmem:[#allocation4 + $0xa8] sm:$0xff]
    %v125 = vld [vmem:[#allocation4 + $0xb0] sm:$0xff]
    %v126 = vld [vmem:[#allocation4 + $0xb8] sm:$0xff]
    %v127 = vld [vmem:[#allocation4 + $0xc0] sm:$0xff]
    %v128 = vld [vmem:[#allocation4 + $0xc8] sm:$0xff]
    %v129 = vld [vmem:[#allocation4 + $0xd0] sm:$0xff]
    %v130 = vld [vmem:[#allocation4 + $0xd8] sm:$0xff]
    %v131 = vld [vmem:[#allocation4 + $0xe0] sm:$0xff]
    %v132 = vld [vmem:[#allocation4 + $0xe8] sm:$0xff]
    %v133 = vld [vmem:[#allocation4 + $0xf0] sm:$0xff]
    %v134 = vld [vmem:[#allocation4 + $0xf8] sm:$0xff]
    %v135 = vmul.f32 %v39, %v39
    %v136 = vmul.f32 %v40, %v40
    %v137 = vmul.f32 %v41, %v41
    %v138 = vmul.f32 %v42, %v42
    %v139 = vmul.f32 %v43, %v43
    %v140 = vmul.f32 %v44, %v44
    %v141 = vmul.f32 %v45, %v45
    %v142 = vmul.f32 %v46, %v46
    %v143 = vmul.f32 %v47, %v47
    %v144 = vmul.f32 %v48, %v48
    %v145 = vmul.f32 %v49, %v49
    %v146 = vmul.f32 %v50, %v50
    %v147 = vmul.f32 %v51, %v51
    %v148 = vmul.f32 %v52, %v52
    %v149 = vmul.f32 %v53, %v53
    %v150 = vmul.f32 %v54, %v54
    %v151 = vmul.f32 %v55, %v55
    %v152 = vmul.f32 %v56, %v56
    %v153 = vmul.f32 %v57, %v57
    %v154 = vmul.f32 %v58, %v58
    %v155 = vmul.f32 %v59, %v59
    %v156 = vmul.f32 %v60, %v60
    %v157 = vmul.f32 %v61, %v61
    %v158 = vmul.f32 %v62, %v62
    %v159 = vmul.f32 %v63, %v63
    %v160 = vmul.f32 %v64, %v64
    %v161 = vmul.f32 %v65, %v65
    %v162 = vmul.f32 %v66, %v66
    %v163 = vmul.f32 %v67, %v67
    %v164 = vmul.f32 %v68, %v68
    %v165 = vmul.f32 %v69, %v69
    %v166 = vmul.f32 %v70, %v70
    %v167 = vmul.f32 %v71, %v71
    %v168 = vmul.f32 %v72, %v72
    %v169 = vmul.f32 %v73, %v73
    %v170 = vmul.f32 %v74, %v74
    %v171 = vmul.f32 %v75, %v75
    %v172 = vmul.f32 %v76, %v76
    %v173 = vmul.f32 %v77, %v77
    %v174 = vmul.f32 %v78, %v78
    %v175 = vmul.f32 %v79, %v79
    %v176 = vmul.f32 %v80, %v80
    %v177 = vmul.f32 %v81, %v81
    %v178 = vmul.f32 %v82, %v82
    %v179 = vmul.f32 %v83, %v83
    %v180 = vmul.f32 %v84, %v84
    %v181 = vmul.f32 %v85, %v85
    %v182 = vmul.f32 %v86, %v86
    %v183 = vmul.f32 %v87, %v87
    %v184 = vmul.f32 %v88, %v88
    %v185 = vmul.f32 %v89, %v89
    %v186 = vmul.f32 %v90, %v90
    %v187 = vmul.f32 %v91, %v91
    %v188 = vmul.f32 %v92, %v92
    %v189 = vmul.f32 %v93, %v93
    %v190 = vmul.f32 %v94, %v94
    %v191 = vmul.f32 %v95, %v95
    %v192 = vmul.f32 %v96, %v96
    %v193 = vmul.f32 %v97, %v97
    %v194 = vmul.f32 %v98, %v98
    %v195 = vmul.f32 %v99, %v99
    %v196 = vmul.f32 %v100, %v100
    %v197 = vmul.f32 %v101, %v101
    %v198 = vmul.f32 %v102, %v102
    %v199 = vadd.f32 %v135, %v136
    %200 = vadd.xlane.f32.xlu0 %v199
    %v201 = vpop.xlane.xlu0 %200
    %v202 = vadd.f32 %v137, %v138
    %203 = vadd.xlane.f32.xlu0 %v202
    %v204 = vpop.xlane.xlu0 %203
    %v205 = vadd.f32 %v139, %v140
    %206 = vadd.xlane.f32.xlu0 %v205
    %v207 = vpop.xlane.xlu0 %206
    %v208 = vadd.f32 %v141, %v142
    %209 = vadd.xlane.f32.xlu0 %v208
    %v210 = vpop.xlane.xlu0 %209
    %v211 = vadd.f32 %v143, %v144
    %212 = vadd.xlane.f32.xlu0 %v211
    %v213 = vpop.xlane.xlu0 %212
    %v214 = vadd.f32 %v145, %v146
    %215 = vadd.xlane.f32.xlu0 %v214
    %v216 = vpop.xlane.xlu0 %215
    %v217 = vadd.f32 %v147, %v148
    %218 = vadd.xlane.f32.xlu0 %v217
    %v219 = vpop.xlane.xlu0 %218
    %v220 = vadd.f32 %v149, %v150
    %221 = vadd.xlane.f32.xlu0 %v220
    %v222 = vpop.xlane.xlu0 %221
    %v223 = vadd.f32 %v151, %v152
    %224 = vadd.xlane.f32.xlu0 %v223
    %v225 = vpop.xlane.xlu0 %224
    %v226 = vadd.f32 %v153, %v154
    %227 = vadd.xlane.f32.xlu0 %v226
    %v228 = vpop.xlane.xlu0 %227
    %v229 = vadd.f32 %v155, %v156
    %230 = vadd.xlane.f32.xlu0 %v229
    %v231 = vpop.xlane.xlu0 %230
    %v232 = vadd.f32 %v157, %v158
    %233 = vadd.xlane.f32.xlu0 %v232
    %v234 = vpop.xlane.xlu0 %233
    %v235 = vadd.f32 %v159, %v160
    %236 = vadd.xlane.f32.xlu0 %v235
    %v237 = vpop.xlane.xlu0 %236
    %v238 = vadd.f32 %v161, %v162
    %239 = vadd.xlane.f32.xlu0 %v238
    %v240 = vpop.xlane.xlu0 %239
    %v241 = vadd.f32 %v163, %v164
    %242 = vadd.xlane.f32.xlu0 %v241
    %v243 = vpop.xlane.xlu0 %242
    %v244 = vadd.f32 %v165, %v166
    %245 = vadd.xlane.f32.xlu0 %v244
    %v246 = vpop.xlane.xlu0 %245
    %v247 = vadd.f32 %v167, %v168
    %248 = vadd.xlane.f32.xlu0 %v247
    %v249 = vpop.xlane.xlu0 %248
    %v250 = vadd.f32 %v169, %v170
    %251 = vadd.xlane.f32.xlu0 %v250
    %v252 = vpop.xlane.xlu0 %251
    %v253 = vadd.f32 %v171, %v172
    %254 = vadd.xlane.f32.xlu0 %v253
    %v255 = vpop.xlane.xlu0 %254
    %v256 = vadd.f32 %v173, %v174
    %257 = vadd.xlane.f32.xlu0 %v256
    %v258 = vpop.xlane.xlu0 %257
    %v259 = vadd.f32 %v175, %v176
    %260 = vadd.xlane.f32.xlu0 %v259
    %v261 = vpop.xlane.xlu0 %260
    %v262 = vadd.f32 %v177, %v178
    %263 = vadd.xlane.f32.xlu0 %v262
    %v264 = vpop.xlane.xlu0 %263
    %v265 = vadd.f32 %v179, %v180
    %266 = vadd.xlane.f32.xlu0 %v265
    %v267 = vpop.xlane.xlu0 %266
    %v268 = vadd.f32 %v181, %v182
    %269 = vadd.xlane.f32.xlu0 %v268
    %v270 = vpop.xlane.xlu0 %269
    %v271 = vadd.f32 %v183, %v184
    %272 = vadd.xlane.f32.xlu0 %v271
    %v273 = vpop.xlane.xlu0 %272
    %v274 = vadd.f32 %v185, %v186
    %275 = vadd.xlane.f32.xlu0 %v274
    %v276 = vpop.xlane.xlu0 %275
    %v277 = vadd.f32 %v187, %v188
    %278 = vadd.xlane.f32.xlu0 %v277
    %v279 = vpop.xlane.xlu0 %278
    %v280 = vadd.f32 %v189, %v190
    %281 = vadd.xlane.f32.xlu0 %v280
    %v282 = vpop.xlane.xlu0 %281
    %v283 = vadd.f32 %v191, %v192
    %284 = vadd.xlane.f32.xlu0 %v283
    %v285 = vpop.xlane.xlu0 %284
    %v286 = vadd.f32 %v193, %v194
    %287 = vadd.xlane.f32.xlu0 %v286
    %v288 = vpop.xlane.xlu0 %287
    %v289 = vadd.f32 %v195, %v196
    %290 = vadd.xlane.f32.xlu0 %v289
    %v291 = vpop.xlane.xlu0 %290
    %v292 = vadd.f32 %v197, %v198
    %293 = vadd.xlane.f32.xlu0 %v292
    %v294 = vpop.xlane.xlu0 %293
    %295 = vxpose.xlu0.b32.start [1/16] %v201, 128
    %296 = vxpose.xlu0.b32.cont [2/16] %v204, 128
    %297 = vxpose.xlu0.b32.cont [3/16] %v207, 128
    %298 = vxpose.xlu0.b32.cont [4/16] %v210, 128
    %299 = vxpose.xlu0.b32.cont [5/16] %v213, 128
    %300 = vxpose.xlu0.b32.cont [6/16] %v216, 128
    %301 = vxpose.xlu0.b32.cont [7/16] %v219, 128
    %302 = vxpose.xlu0.b32.cont [8/16] %v222, 128
    %303 = vxpose.xlu0.b32.cont [9/16] %v225, 128
    %304 = vxpose.xlu0.b32.cont [10/16] %v228, 128
    %305 = vxpose.xlu0.b32.cont [11/16] %v231, 128
    %306 = vxpose.xlu0.b32.cont [12/16] %v234, 128
    %307 = vxpose.xlu0.b32.cont [13/16] %v237, 128
    %308 = vxpose.xlu0.b32.cont [14/16] %v240, 128
    %309 = vxpose.xlu0.b32.cont [15/16] %v243, 128
    %310 = vxpose.xlu0.b32.end [16/16] %v246, 128
    %v311 = vpop.trf.xlu0
    %v312 = vpop.trf.xlu0
    %v313 = vpop.trf.xlu0
    %v314 = vpop.trf.xlu0
    %v315 = vpop.trf.xlu0
    %v316 = vpop.trf.xlu0
    %v317 = vpop.trf.xlu0
    %v318 = vpop.trf.xlu0
    %v319 = vpop.trf.xlu0
    %v320 = vpop.trf.xlu0
    %v321 = vpop.trf.xlu0
    %v322 = vpop.trf.xlu0
    %v323 = vpop.trf.xlu0
    %v324 = vpop.trf.xlu0
    %v325 = vpop.trf.xlu0
    %v326 = vpop.trf.xlu0
    %327 = vxpose.xlu0.b32.start [1/16] %v249, 128
    %328 = vxpose.xlu0.b32.cont [2/16] %v252, 128
    %329 = vxpose.xlu0.b32.cont [3/16] %v255, 128
    %330 = vxpose.xlu0.b32.cont [4/16] %v258, 128
    %331 = vxpose.xlu0.b32.cont [5/16] %v261, 128
    %332 = vxpose.xlu0.b32.cont [6/16] %v264, 128
    %333 = vxpose.xlu0.b32.cont [7/16] %v267, 128
    %334 = vxpose.xlu0.b32.cont [8/16] %v270, 128
    %335 = vxpose.xlu0.b32.cont [9/16] %v273, 128
    %336 = vxpose.xlu0.b32.cont [10/16] %v276, 128
    %337 = vxpose.xlu0.b32.cont [11/16] %v279, 128
    %338 = vxpose.xlu0.b32.cont [12/16] %v282, 128
    %339 = vxpose.xlu0.b32.cont [13/16] %v285, 128
    %340 = vxpose.xlu0.b32.cont [14/16] %v288, 128
    %341 = vxpose.xlu0.b32.cont [15/16] %v291, 128
    %342 = vxpose.xlu0.b32.end [16/16] %v294, 128
    %v343 = vpop.trf.xlu0
    %v344 = vpop.trf.xlu0
    %v345 = vpop.trf.xlu0
    %v346 = vpop.trf.xlu0
    %v347 = vpop.trf.xlu0
    %v348 = vpop.trf.xlu0
    %v349 = vpop.trf.xlu0
    %v350 = vpop.trf.xlu0
    %v351 = vpop.trf.xlu0
    %v352 = vpop.trf.xlu0
    %v353 = vpop.trf.xlu0
    %v354 = vpop.trf.xlu0
    %v355 = vpop.trf.xlu0
    %v356 = vpop.trf.xlu0
    %v357 = vpop.trf.xlu0
    %v358 = vpop.trf.xlu0
    %359 = vmatprep.subr.mxu0 %v70
    %360 = vmatpush1.xpose.msra.mxu0 %v69
    %361 = vmatprep.subr.mxu0 %v68
    %362 = vmatpush1.xpose.msra.mxu0 %v67
    %363 = vmatprep.subr.mxu0 %v66
    %364 = vmatpush1.xpose.msra.mxu0 %v65
    %365 = vmatprep.subr.mxu0 %v64
    %366 = vmatpush1.xpose.msra.mxu0 %v63
    %367 = vmatprep.subr.mxu0 %v62
    %368 = vmatpush1.xpose.msra.mxu0 %v61
    %369 = vmatprep.subr.mxu0 %v60
    %370 = vmatpush1.xpose.msra.mxu0 %v59
    %371 = vmatprep.subr.mxu0 %v58
    %372 = vmatpush1.xpose.msra.mxu0 %v57
    %373 = vmatprep.subr.mxu0 %v56
    %374 = vmatpush1.xpose.msra.mxu0 %v55
    %375 = vmatprep.subr.mxu0 %v54
    %376 = vmatpush1.xpose.msra.mxu0 %v53
    %377 = vmatprep.subr.mxu0 %v52
    %378 = vmatpush1.xpose.msra.mxu0 %v51
    %379 = vmatprep.subr.mxu0 %v50
    %380 = vmatpush1.xpose.msra.mxu0 %v49
    %381 = vmatprep.subr.mxu0 %v48
    %382 = vmatpush1.xpose.msra.mxu0 %v47
    %383 = vmatprep.subr.mxu0 %v46
    %384 = vmatpush1.xpose.msra.mxu0 %v45
    %385 = vmatprep.subr.mxu0 %v44
    %386 = vmatpush1.xpose.msra.mxu0 %v43
    %387 = vmatprep.subr.mxu0 %v42
    %388 = vmatpush1.xpose.msra.mxu0 %v41
    %389 = vmatprep.subr.mxu0 %v40
    %390 = vmatpush1.xpose.msra.mxu0 %v39
    %391 = vmatprep.subr.mxu0 %v102
    %392 = vmatpush2.xpose.msra.mxu0 %v101
    %393 = vmatprep.subr.mxu0 %v100
    %394 = vmatpush2.xpose.msra.mxu0 %v99
    %395 = vmatprep.subr.mxu0 %v98
    %396 = vmatpush2.xpose.msra.mxu0 %v97
    %397 = vmatprep.subr.mxu0 %v96
    %398 = vmatpush2.xpose.msra.mxu0 %v95
    %399 = vmatprep.subr.mxu0 %v94
    %400 = vmatpush2.xpose.msra.mxu0 %v93
    %401 = vmatprep.subr.mxu0 %v92
    %402 = vmatpush2.xpose.msra.mxu0 %v91
    %403 = vmatprep.subr.mxu0 %v90
    %404 = vmatpush2.xpose.msra.mxu0 %v89
    %405 = vmatprep.subr.mxu0 %v88
    %406 = vmatpush2.xpose.msra.mxu0 %v87
    %407 = vmatprep.subr.mxu0 %v86
    %408 = vmatpush2.xpose.msra.mxu0 %v85
    %409 = vmatprep.subr.mxu0 %v84
    %410 = vmatpush2.xpose.msra.mxu0 %v83
    %411 = vmatprep.subr.mxu0 %v82
    %412 = vmatpush2.xpose.msra.mxu0 %v81
    %413 = vmatprep.subr.mxu0 %v80
    %414 = vmatpush2.xpose.msra.mxu0 %v79
    %415 = vmatprep.subr.mxu0 %v78
    %416 = vmatpush2.xpose.msra.mxu0 %v77
    %417 = vmatprep.subr.mxu0 %v76
    %418 = vmatpush2.xpose.msra.mxu0 %v75
    %419 = vmatprep.subr.mxu0 %v74
    %420 = vmatpush2.xpose.msra.mxu0 %v73
    %421 = vmatprep.subr.mxu0 %v72
    %422 = vmatpush2.xpose.msra.mxu0 %v71
    %423 = vmatprep.mubr.f32.mxu0 %v40
    %424 = vmatmul.mubr.f32.gmra.mxu0 %v39
    %v425 = vpop.f32.mrf.mxu0
    %v426 = vadd.f32 0.0, %v425
    %v427 = vpop.f32.mrf.mxu0
    %v428 = vadd.f32 0.0, %v427
    %429 = vmatprep.mubr.f32.mxu0 %v42
    %430 = vmatmul.mubr.f32.gmra.mxu0 %v41
    %v431 = vpop.f32.mrf.mxu0
    %v432 = vadd.f32 0.0, %v431
    %v433 = vpop.f32.mrf.mxu0
    %v434 = vadd.f32 0.0, %v433
    %435 = vmatprep.mubr.f32.mxu0 %v44
    %436 = vmatmul.mubr.f32.gmra.mxu0 %v43
    %v437 = vpop.f32.mrf.mxu0
    %v438 = vadd.f32 0.0, %v437
    %v439 = vpop.f32.mrf.mxu0
    %v440 = vadd.f32 0.0, %v439
    %441 = vmatprep.mubr.f32.mxu0 %v46
    %442 = vmatmul.mubr.f32.gmra.mxu0 %v45
    %v443 = vpop.f32.mrf.mxu0
    %v444 = vadd.f32 0.0, %v443
    %v445 = vpop.f32.mrf.mxu0
    %v446 = vadd.f32 0.0, %v445
    %447 = vmatprep.mubr.f32.mxu0 %v48
    %448 = vmatmul.mubr.f32.gmra.mxu0 %v47
    %v449 = vpop.f32.mrf.mxu0
    %v450 = vadd.f32 0.0, %v449
    %v451 = vpop.f32.mrf.mxu0
    %v452 = vadd.f32 0.0, %v451
    %453 = vmatprep.mubr.f32.mxu0 %v50
    %454 = vmatmul.mubr.f32.gmra.mxu0 %v49
    %v455 = vpop.f32.mrf.mxu0
    %v456 = vadd.f32 0.0, %v455
    %v457 = vpop.f32.mrf.mxu0
    %v458 = vadd.f32 0.0, %v457
    %459 = vmatprep.mubr.f32.mxu0 %v52
    %460 = vmatmul.mubr.f32.gmra.mxu0 %v51
    %v461 = vpop.f32.mrf.mxu0
    %v462 = vadd.f32 0.0, %v461
    %v463 = vpop.f32.mrf.mxu0
    %v464 = vadd.f32 0.0, %v463
    %465 = vmatprep.mubr.f32.mxu0 %v54
    %466 = vmatmul.mubr.f32.gmra.mxu0 %v53
    %v467 = vpop.f32.mrf.mxu0
    %v468 = vadd.f32 0.0, %v467
    %v469 = vpop.f32.mrf.mxu0
    %v470 = vadd.f32 0.0, %v469
    %471 = vmatprep.mubr.f32.mxu0 %v56
    %472 = vmatmul.mubr.f32.gmra.mxu0 %v55
    %v473 = vpop.f32.mrf.mxu0
    %v474 = vadd.f32 0.0, %v473
    %v475 = vpop.f32.mrf.mxu0
    %v476 = vadd.f32 0.0, %v475
    %477 = vmatprep.mubr.f32.mxu0 %v58
    %478 = vmatmul.mubr.f32.gmra.mxu0 %v57
    %v479 = vpop.f32.mrf.mxu0
    %v480 = vadd.f32 0.0, %v479
    %v481 = vpop.f32.mrf.mxu0
    %v482 = vadd.f32 0.0, %v481
    %483 = vmatprep.mubr.f32.mxu0 %v60
    %484 = vmatmul.mubr.f32.gmra.mxu0 %v59
    %v485 = vpop.f32.mrf.mxu0
    %v486 = vadd.f32 0.0, %v485
    %v487 = vpop.f32.mrf.mxu0
    %v488 = vadd.f32 0.0, %v487
    %489 = vmatprep.mubr.f32.mxu0 %v62
    %490 = vmatmul.mubr.f32.gmra.mxu0 %v61
    %v491 = vpop.f32.mrf.mxu0
    %v492 = vadd.f32 0.0, %v491
    %v493 = vpop.f32.mrf.mxu0
    %v494 = vadd.f32 0.0, %v493
    %495 = vmatprep.mubr.f32.mxu0 %v64
    %496 = vmatmul.mubr.f32.gmra.mxu0 %v63
    %v497 = vpop.f32.mrf.mxu0
    %v498 = vadd.f32 0.0, %v497
    %v499 = vpop.f32.mrf.mxu0
    %v500 = vadd.f32 0.0, %v499
    %501 = vmatprep.mubr.f32.mxu0 %v66
    %502 = vmatmul.mubr.f32.gmra.mxu0 %v65
    %v503 = vpop.f32.mrf.mxu0
    %v504 = vadd.f32 0.0, %v503
    %v505 = vpop.f32.mrf.mxu0
    %v506 = vadd.f32 0.0, %v505
    %507 = vmatprep.mubr.f32.mxu0 %v68
    %508 = vmatmul.mubr.f32.gmra.mxu0 %v67
    %v509 = vpop.f32.mrf.mxu0
    %v510 = vadd.f32 0.0, %v509
    %v511 = vpop.f32.mrf.mxu0
    %v512 = vadd.f32 0.0, %v511
    %513 = vmatprep.mubr.f32.mxu0 %v70
    %514 = vmatmul.mubr.f32.gmra.mxu0 %v69
    %v515 = vpop.f32.mrf.mxu0
    %v516 = vadd.f32 0.0, %v515
    %v517 = vpop.f32.mrf.mxu0
    %v518 = vadd.f32 0.0, %v517
    %519 = vmatprep.mubr.f32.mxu0 %v72
    %520 = vmatmul.mubr.f32.gmra.mxu0 %v71
    %v521 = vpop.f32.mrf.mxu0
    %v522 = vadd.f32 0.0, %v521
    %v523 = vpop.f32.mrf.mxu0
    %v524 = vadd.f32 0.0, %v523
    %525 = vmatprep.mubr.f32.mxu0 %v74
    %526 = vmatmul.mubr.f32.gmra.mxu0 %v73
    %v527 = vpop.f32.mrf.mxu0
    %v528 = vadd.f32 0.0, %v527
    %v529 = vpop.f32.mrf.mxu0
    %v530 = vadd.f32 0.0, %v529
    %531 = vmatprep.mubr.f32.mxu0 %v76
    %532 = vmatmul.mubr.f32.gmra.mxu0 %v75
    %v533 = vpop.f32.mrf.mxu0
    %v534 = vadd.f32 0.0, %v533
    %v535 = vpop.f32.mrf.mxu0
    %v536 = vadd.f32 0.0, %v535
    %537 = vmatprep.mubr.f32.mxu0 %v78
    %538 = vmatmul.mubr.f32.gmra.mxu0 %v77
    %v539 = vpop.f32.mrf.mxu0
    %v540 = vadd.f32 0.0, %v539
    %v541 = vpop.f32.mrf.mxu0
    %v542 = vadd.f32 0.0, %v541
    %543 = vmatprep.mubr.f32.mxu0 %v80
    %544 = vmatmul.mubr.f32.gmra.mxu0 %v79
    %v545 = vpop.f32.mrf.mxu0
    %v546 = vadd.f32 0.0, %v545
    %v547 = vpop.f32.mrf.mxu0
    %v548 = vadd.f32 0.0, %v547
    %549 = vmatprep.mubr.f32.mxu0 %v82
    %550 = vmatmul.mubr.f32.gmra.mxu0 %v81
    %v551 = vpop.f32.mrf.mxu0
    %v552 = vadd.f32 0.0, %v551
    %v553 = vpop.f32.mrf.mxu0
    %v554 = vadd.f32 0.0, %v553
    %555 = vmatprep.mubr.f32.mxu0 %v84
    %556 = vmatmul.mubr.f32.gmra.mxu0 %v83
    %v557 = vpop.f32.mrf.mxu0
    %v558 = vadd.f32 0.0, %v557
    %v559 = vpop.f32.mrf.mxu0
    %v560 = vadd.f32 0.0, %v559
    %561 = vmatprep.mubr.f32.mxu0 %v86
    %562 = vmatmul.mubr.f32.gmra.mxu0 %v85
    %v563 = vpop.f32.mrf.mxu0
    %v564 = vadd.f32 0.0, %v563
    %v565 = vpop.f32.mrf.mxu0
    %v566 = vadd.f32 0.0, %v565
    %567 = vmatprep.mubr.f32.mxu0 %v88
    %568 = vmatmul.mubr.f32.gmra.mxu0 %v87
    %v569 = vpop.f32.mrf.mxu0
    %v570 = vadd.f32 0.0, %v569
    %v571 = vpop.f32.mrf.mxu0
    %v572 = vadd.f32 0.0, %v571
    %573 = vmatprep.mubr.f32.mxu0 %v90
    %574 = vmatmul.mubr.f32.gmra.mxu0 %v89
    %v575 = vpop.f32.mrf.mxu0
    %v576 = vadd.f32 0.0, %v575
    %v577 = vpop.f32.mrf.mxu0
    %v578 = vadd.f32 0.0, %v577
    %579 = vmatprep.mubr.f32.mxu0 %v92
    %580 = vmatmul.mubr.f32.gmra.mxu0 %v91
    %v581 = vpop.f32.mrf.mxu0
    %v582 = vadd.f32 0.0, %v581
    %v583 = vpop.f32.mrf.mxu0
    %v584 = vadd.f32 0.0, %v583
    %585 = vmatprep.mubr.f32.mxu0 %v94
    %586 = vmatmul.mubr.f32.gmra.mxu0 %v93
    %v587 = vpop.f32.mrf.mxu0
    %v588 = vadd.f32 0.0, %v587
    %v589 = vpop.f32.mrf.mxu0
    %v590 = vadd.f32 0.0, %v589
    %591 = vmatprep.mubr.f32.mxu0 %v96
    %592 = vmatmul.mubr.f32.gmra.mxu0 %v95
    %v593 = vpop.f32.mrf.mxu0
    %v594 = vadd.f32 0.0, %v593
    %v595 = vpop.f32.mrf.mxu0
    %v596 = vadd.f32 0.0, %v595
    %597 = vmatprep.mubr.f32.mxu0 %v98
    %598 = vmatmul.mubr.f32.gmra.mxu0 %v97
    %v599 = vpop.f32.mrf.mxu0
    %v600 = vadd.f32 0.0, %v599
    %v601 = vpop.f32.mrf.mxu0
    %v602 = vadd.f32 0.0, %v601
    %603 = vmatprep.mubr.f32.mxu0 %v100
    %604 = vmatmul.mubr.f32.gmra.mxu0 %v99
    %v605 = vpop.f32.mrf.mxu0
    %v606 = vadd.f32 0.0, %v605
    %v607 = vpop.f32.mrf.mxu0
    %v608 = vadd.f32 0.0, %v607
    %609 = vmatprep.mubr.f32.mxu0 %v102
    %610 = vmatmul.mubr.f32.gmra.mxu0 %v101
    %v611 = vpop.f32.mrf.mxu0
    %v612 = vadd.f32 0.0, %v611
    %v613 = vpop.f32.mrf.mxu0
    %v614 = vadd.f32 0.0, %v613
    %615 = vdwg.mxu0
    %v616 = vlaneseq
    %v617 = vshrl.u32 %v616, 7
    %v618 = vsub.s32 0, %v617
    %v619 = vrot.slane %v311, %v618
    %v620 = vlaneseq
    %v621 = vshrl.u32 %v620, 7
    %v622 = vsub.s32 0, %v621
    %v623 = vrot.slane %v343, %v622
    %v624 = vadd.f32 %v201, %v619
    %v625 = vadd.f32 %v201, %v623
    %v626 = vadd.f32 %v204, %v619
    %v627 = vadd.f32 %v204, %v623
    %v628 = vadd.f32 %v207, %v619
    %v629 = vadd.f32 %v207, %v623
    %v630 = vadd.f32 %v210, %v619
    %v631 = vadd.f32 %v210, %v623
    %v632 = vadd.f32 %v213, %v619
    %v633 = vadd.f32 %v213, %v623
    %v634 = vadd.f32 %v216, %v619
    %v635 = vadd.f32 %v216, %v623
    %v636 = vadd.f32 %v219, %v619
    %v637 = vadd.f32 %v219, %v623
    %v638 = vadd.f32 %v222, %v619
    %v639 = vadd.f32 %v222, %v623
    %v640 = vadd.f32 %v225, %v619
    %v641 = vadd.f32 %v225, %v623
    %v642 = vadd.f32 %v228, %v619
    %v643 = vadd.f32 %v228, %v623
    %v644 = vadd.f32 %v231, %v619
    %v645 = vadd.f32 %v231, %v623
    %v646 = vadd.f32 %v234, %v619
    %v647 = vadd.f32 %v234, %v623
    %v648 = vadd.f32 %v237, %v619
    %v649 = vadd.f32 %v237, %v623
    %v650 = vadd.f32 %v240, %v619
    %v651 = vadd.f32 %v240, %v623
    %v652 = vadd.f32 %v243, %v619
    %v653 = vadd.f32 %v243, %v623
    %v654 = vadd.f32 %v246, %v619
    %v655 = vadd.f32 %v246, %v623
    %v656 = vadd.f32 %v249, %v619
    %v657 = vadd.f32 %v249, %v623
    %v658 = vadd.f32 %v252, %v619
    %v659 = vadd.f32 %v252, %v623
    %v660 = vadd.f32 %v255, %v619
    %v661 = vadd.f32 %v255, %v623
    %v662 = vadd.f32 %v258, %v619
    %v663 = vadd.f32 %v258, %v623
    %v664 = vadd.f32 %v261, %v619
    %v665 = vadd.f32 %v261, %v623
    %v666 = vadd.f32 %v264, %v619
    %v667 = vadd.f32 %v264, %v623
    %v668 = vadd.f32 %v267, %v619
    %v669 = vadd.f32 %v267, %v623
    %v670 = vadd.f32 %v270, %v619
    %v671 = vadd.f32 %v270, %v623
    %v672 = vadd.f32 %v273, %v619
    %v673 = vadd.f32 %v273, %v623
    %v674 = vadd.f32 %v276, %v619
    %v675 = vadd.f32 %v276, %v623
    %v676 = vadd.f32 %v279, %v619
    %v677 = vadd.f32 %v279, %v623
    %v678 = vadd.f32 %v282, %v619
    %v679 = vadd.f32 %v282, %v623
    %v680 = vadd.f32 %v285, %v619
    %v681 = vadd.f32 %v285, %v623
    %v682 = vadd.f32 %v288, %v619
    %v683 = vadd.f32 %v288, %v623
    %v684 = vadd.f32 %v291, %v619
    %v685 = vadd.f32 %v291, %v623
    %v686 = vadd.f32 %v294, %v619
    %v687 = vadd.f32 %v294, %v623
    %v688 = vmul.f32 %v426, 2.0
    %v689 = vmul.f32 %v428, 2.0
    %v690 = vmul.f32 %v432, 2.0
    %v691 = vmul.f32 %v434, 2.0
    %v692 = vmul.f32 %v438, 2.0
    %v693 = vmul.f32 %v440, 2.0
    %v694 = vmul.f32 %v444, 2.0
    %v695 = vmul.f32 %v446, 2.0
    %v696 = vmul.f32 %v450, 2.0
    %v697 = vmul.f32 %v452, 2.0
    %v698 = vmul.f32 %v456, 2.0
    %v699 = vmul.f32 %v458, 2.0
    %v700 = vmul.f32 %v462, 2.0
    %v701 = vmul.f32 %v464, 2.0
    %v702 = vmul.f32 %v468, 2.0
    %v703 = vmul.f32 %v470, 2.0
    %v704 = vmul.f32 %v474, 2.0
    %v705 = vmul.f32 %v476, 2.0
    %v706 = vmul.f32 %v480, 2.0
    %v707 = vmul.f32 %v482, 2.0
    %v708 = vmul.f32 %v486, 2.0
    %v709 = vmul.f32 %v488, 2.0
    %v710 = vmul.f32 %v492, 2.0
    %v711 = vmul.f32 %v494, 2.0
    %v712 = vmul.f32 %v498, 2.0
    %v713 = vmul.f32 %v500, 2.0
    %v714 = vmul.f32 %v504, 2.0
    %v715 = vmul.f32 %v506, 2.0
    %v716 = vmul.f32 %v510, 2.0
    %v717 = vmul.f32 %v512, 2.0
    %v718 = vmul.f32 %v516, 2.0
    %v719 = vmul.f32 %v518, 2.0
    %v720 = vmul.f32 %v522, 2.0
    %v721 = vmul.f32 %v524, 2.0
    %v722 = vmul.f32 %v528, 2.0
    %v723 = vmul.f32 %v530, 2.0
    %v724 = vmul.f32 %v534, 2.0
    %v725 = vmul.f32 %v536, 2.0
    %v726 = vmul.f32 %v540, 2.0
    %v727 = vmul.f32 %v542, 2.0
    %v728 = vmul.f32 %v546, 2.0
    %v729 = vmul.f32 %v548, 2.0
    %v730 = vmul.f32 %v552, 2.0
    %v731 = vmul.f32 %v554, 2.0
    %v732 = vmul.f32 %v558, 2.0
    %v733 = vmul.f32 %v560, 2.0
    %v734 = vmul.f32 %v564, 2.0
    %v735 = vmul.f32 %v566, 2.0
    %v736 = vmul.f32 %v570, 2.0
    %v737 = vmul.f32 %v572, 2.0
    %v738 = vmul.f32 %v576, 2.0
    %v739 = vmul.f32 %v578, 2.0
    %v740 = vmul.f32 %v582, 2.0
    %v741 = vmul.f32 %v584, 2.0
    %v742 = vmul.f32 %v588, 2.0
    %v743 = vmul.f32 %v590, 2.0
    %v744 = vmul.f32 %v594, 2.0
    %v745 = vmul.f32 %v596, 2.0
    %v746 = vmul.f32 %v600, 2.0
    %v747 = vmul.f32 %v602, 2.0
    %v748 = vmul.f32 %v606, 2.0
    %v749 = vmul.f32 %v608, 2.0
    %v750 = vmul.f32 %v612, 2.0
    %v751 = vmul.f32 %v614, 2.0
    %v752 = vsub.f32 %v624, %v688
    %v753 = vsub.f32 %v625, %v689
    %v754 = vsub.f32 %v626, %v690
    %v755 = vsub.f32 %v627, %v691
    %v756 = vsub.f32 %v628, %v692
    %v757 = vsub.f32 %v629, %v693
    %v758 = vsub.f32 %v630, %v694
    %v759 = vsub.f32 %v631, %v695
    %v760 = vsub.f32 %v632, %v696
    %v761 = vsub.f32 %v633, %v697
    %v762 = vsub.f32 %v634, %v698
    %v763 = vsub.f32 %v635, %v699
    %v764 = vsub.f32 %v636, %v700
    %v765 = vsub.f32 %v637, %v701
    %v766 = vsub.f32 %v638, %v702
    %v767 = vsub.f32 %v639, %v703
    %v768 = vsub.f32 %v640, %v704
    %v769 = vsub.f32 %v641, %v705
    %v770 = vsub.f32 %v642, %v706
    %v771 = vsub.f32 %v643, %v707
    %v772 = vsub.f32 %v644, %v708
    %v773 = vsub.f32 %v645, %v709
    %v774 = vsub.f32 %v646, %v710
    %v775 = vsub.f32 %v647, %v711
    %v776 = vsub.f32 %v648, %v712
    %v777 = vsub.f32 %v649, %v713
    %v778 = vsub.f32 %v650, %v714
    %v779 = vsub.f32 %v651, %v715
    %v780 = vsub.f32 %v652, %v716
    %v781 = vsub.f32 %v653, %v717
    %v782 = vsub.f32 %v654, %v718
    %v783 = vsub.f32 %v655, %v719
    %v784 = vsub.f32 %v656, %v720
    %v785 = vsub.f32 %v657, %v721
    %v786 = vsub.f32 %v658, %v722
    %v787 = vsub.f32 %v659, %v723
    %v788 = vsub.f32 %v660, %v724
    %v789 = vsub.f32 %v661, %v725
    %v790 = vsub.f32 %v662, %v726
    %v791 = vsub.f32 %v663, %v727
    %v792 = vsub.f32 %v664, %v728
    %v793 = vsub.f32 %v665, %v729
    %v794 = vsub.f32 %v666, %v730
    %v795 = vsub.f32 %v667, %v731
    %v796 = vsub.f32 %v668, %v732
    %v797 = vsub.f32 %v669, %v733
    %v798 = vsub.f32 %v670, %v734
    %v799 = vsub.f32 %v671, %v735
    %v800 = vsub.f32 %v672, %v736
    %v801 = vsub.f32 %v673, %v737
    %v802 = vsub.f32 %v674, %v738
    %v803 = vsub.f32 %v675, %v739
    %v804 = vsub.f32 %v676, %v740
    %v805 = vsub.f32 %v677, %v741
    %v806 = vsub.f32 %v678, %v742
    %v807 = vsub.f32 %v679, %v743
    %v808 = vsub.f32 %v680, %v744
    %v809 = vsub.f32 %v681, %v745
    %v810 = vsub.f32 %v682, %v746
    %v811 = vsub.f32 %v683, %v747
    %v812 = vsub.f32 %v684, %v748
    %v813 = vsub.f32 %v685, %v749
    %v814 = vsub.f32 %v686, %v750
    %v815 = vsub.f32 %v687, %v751
    %v816 = vmax.f32 %v752, 0.0
    %v817 = vmax.f32 %v753, 0.0
    %v818 = vmax.f32 %v754, 0.0
    %v819 = vmax.f32 %v755, 0.0
    %v820 = vmax.f32 %v756, 0.0
    %v821 = vmax.f32 %v757, 0.0
    %v822 = vmax.f32 %v758, 0.0
    %v823 = vmax.f32 %v759, 0.0
    %v824 = vmax.f32 %v760, 0.0
    %v825 = vmax.f32 %v761, 0.0
    %v826 = vmax.f32 %v762, 0.0
    %v827 = vmax.f32 %v763, 0.0
    %v828 = vmax.f32 %v764, 0.0
    %v829 = vmax.f32 %v765, 0.0
    %v830 = vmax.f32 %v766, 0.0
    %v831 = vmax.f32 %v767, 0.0
    %v832 = vmax.f32 %v768, 0.0
    %v833 = vmax.f32 %v769, 0.0
    %v834 = vmax.f32 %v770, 0.0
    %v835 = vmax.f32 %v771, 0.0
    %v836 = vmax.f32 %v772, 0.0
    %v837 = vmax.f32 %v773, 0.0
    %v838 = vmax.f32 %v774, 0.0
    %v839 = vmax.f32 %v775, 0.0
    %v840 = vmax.f32 %v776, 0.0
    %v841 = vmax.f32 %v777, 0.0
    %v842 = vmax.f32 %v778, 0.0
    %v843 = vmax.f32 %v779, 0.0
    %v844 = vmax.f32 %v780, 0.0
    %v845 = vmax.f32 %v781, 0.0
    %v846 = vmax.f32 %v782, 0.0
    %v847 = vmax.f32 %v783, 0.0
    %v848 = vmax.f32 %v784, 0.0
    %v849 = vmax.f32 %v785, 0.0
    %v850 = vmax.f32 %v786, 0.0
    %v851 = vmax.f32 %v787, 0.0
    %v852 = vmax.f32 %v788, 0.0
    %v853 = vmax.f32 %v789, 0.0
    %v854 = vmax.f32 %v790, 0.0
    %v855 = vmax.f32 %v791, 0.0
    %v856 = vmax.f32 %v792, 0.0
    %v857 = vmax.f32 %v793, 0.0
    %v858 = vmax.f32 %v794, 0.0
    %v859 = vmax.f32 %v795, 0.0
    %v860 = vmax.f32 %v796, 0.0
    %v861 = vmax.f32 %v797, 0.0
    %v862 = vmax.f32 %v798, 0.0
    %v863 = vmax.f32 %v799, 0.0
    %v864 = vmax.f32 %v800, 0.0
    %v865 = vmax.f32 %v801, 0.0
    %v866 = vmax.f32 %v802, 0.0
    %v867 = vmax.f32 %v803, 0.0
    %v868 = vmax.f32 %v804, 0.0
    %v869 = vmax.f32 %v805, 0.0
    %v870 = vmax.f32 %v806, 0.0
    %v871 = vmax.f32 %v807, 0.0
    %v872 = vmax.f32 %v808, 0.0
    %v873 = vmax.f32 %v809, 0.0
    %v874 = vmax.f32 %v810, 0.0
    %v875 = vmax.f32 %v811, 0.0
    %v876 = vmax.f32 %v812, 0.0
    %v877 = vmax.f32 %v813, 0.0
    %v878 = vmax.f32 %v814, 0.0
    %v879 = vmax.f32 %v815, 0.0
    %v880 = vlaneseq
    %v881 = vshrl.u32 %v880, 7
    %v882 = vadd.s32 %v881, 8
    %v883 = vadd.s32 %v881, 16
    %v884 = vadd.s32 %v881, 24
    %v885 = vadd.s32 %v881, 32
    %v886 = vadd.s32 %v881, 40
    %v887 = vadd.s32 %v881, 48
    %v888 = vadd.s32 %v881, 56
    %v889 = vadd.s32 %v881, 64
    %v890 = vadd.s32 %v881, 72
    %v891 = vadd.s32 %v881, 80
    %v892 = vadd.s32 %v881, 88
    %v893 = vadd.s32 %v881, 96
    %v894 = vadd.s32 %v881, 104
    %v895 = vadd.s32 %v881, 112
    %v896 = vadd.s32 %v881, 120
    %v897 = vadd.s32 %v881, 128
    %v898 = vadd.s32 %v881, 136
    %v899 = vadd.s32 %v881, 144
    %v900 = vadd.s32 %v881, 152
    %v901 = vadd.s32 %v881, 160
    %v902 = vadd.s32 %v881, 168
    %v903 = vadd.s32 %v881, 176
    %v904 = vadd.s32 %v881, 184
    %v905 = vadd.s32 %v881, 192
    %v906 = vadd.s32 %v881, 200
    %v907 = vadd.s32 %v881, 208
    %v908 = vadd.s32 %v881, 216
    %v909 = vadd.s32 %v881, 224
    %v910 = vadd.s32 %v881, 232
    %v911 = vadd.s32 %v881, 240
    %v912 = vadd.s32 %v881, 248
    %v913 = vlaneseq
    %v914 = vand.u32 %v913, 127
    %v915 = vadd.s32 %v914, 128
    %vm916 = vcmp.eq.s32.totalorder %v881, %v914
    %vm917 = vcmp.eq.s32.totalorder %v881, %v915
    %vm918 = vcmp.eq.s32.totalorder %v882, %v914
    %vm919 = vcmp.eq.s32.totalorder %v882, %v915
    %vm920 = vcmp.eq.s32.totalorder %v883, %v914
    %vm921 = vcmp.eq.s32.totalorder %v883, %v915
    %vm922 = vcmp.eq.s32.totalorder %v884, %v914
    %vm923 = vcmp.eq.s32.totalorder %v884, %v915
    %vm924 = vcmp.eq.s32.totalorder %v885, %v914
    %vm925 = vcmp.eq.s32.totalorder %v885, %v915
    %vm926 = vcmp.eq.s32.totalorder %v886, %v914
    %vm927 = vcmp.eq.s32.totalorder %v886, %v915
    %vm928 = vcmp.eq.s32.totalorder %v887, %v914
    %vm929 = vcmp.eq.s32.totalorder %v887, %v915
    %vm930 = vcmp.eq.s32.totalorder %v888, %v914
    %vm931 = vcmp.eq.s32.totalorder %v888, %v915
    %vm932 = vcmp.eq.s32.totalorder %v889, %v914
    %vm933 = vcmp.eq.s32.totalorder %v889, %v915
    %vm934 = vcmp.eq.s32.totalorder %v890, %v914
    %vm935 = vcmp.eq.s32.totalorder %v890, %v915
    %vm936 = vcmp.eq.s32.totalorder %v891, %v914
    %vm937 = vcmp.eq.s32.totalorder %v891, %v915
    %vm938 = vcmp.eq.s32.totalorder %v892, %v914
    %vm939 = vcmp.eq.s32.totalorder %v892, %v915
    %vm940 = vcmp.eq.s32.totalorder %v893, %v914
    %vm941 = vcmp.eq.s32.totalorder %v893, %v915
    %vm942 = vcmp.eq.s32.totalorder %v894, %v914
    %vm943 = vcmp.eq.s32.totalorder %v894, %v915
    %vm944 = vcmp.eq.s32.totalorder %v895, %v914
    %vm945 = vcmp.eq.s32.totalorder %v895, %v915
    %vm946 = vcmp.eq.s32.totalorder %v896, %v914
    %vm947 = vcmp.eq.s32.totalorder %v896, %v915
    %vm948 = vcmp.eq.s32.totalorder %v897, %v914
    %vm949 = vcmp.eq.s32.totalorder %v897, %v915
    %vm950 = vcmp.eq.s32.totalorder %v898, %v914
    %vm951 = vcmp.eq.s32.totalorder %v898, %v915
    %vm952 = vcmp.eq.s32.totalorder %v899, %v914
    %vm953 = vcmp.eq.s32.totalorder %v899, %v915
    %vm954 = vcmp.eq.s32.totalorder %v900, %v914
    %vm955 = vcmp.eq.s32.totalorder %v900, %v915
    %vm956 = vcmp.eq.s32.totalorder %v901, %v914
    %vm957 = vcmp.eq.s32.totalorder %v901, %v915
    %vm958 = vcmp.eq.s32.totalorder %v902, %v914
    %vm959 = vcmp.eq.s32.totalorder %v902, %v915
    %vm960 = vcmp.eq.s32.totalorder %v903, %v914
    %vm961 = vcmp.eq.s32.totalorder %v903, %v915
    %vm962 = vcmp.eq.s32.totalorder %v904, %v914
    %vm963 = vcmp.eq.s32.totalorder %v904, %v915
    %vm964 = vcmp.eq.s32.totalorder %v905, %v914
    %vm965 = vcmp.eq.s32.totalorder %v905, %v915
    %vm966 = vcmp.eq.s32.totalorder %v906, %v914
    %vm967 = vcmp.eq.s32.totalorder %v906, %v915
    %vm968 = vcmp.eq.s32.totalorder %v907, %v914
    %vm969 = vcmp.eq.s32.totalorder %v907, %v915
    %vm970 = vcmp.eq.s32.totalorder %v908, %v914
    %vm971 = vcmp.eq.s32.totalorder %v908, %v915
    %vm972 = vcmp.eq.s32.totalorder %v909, %v914
    %vm973 = vcmp.eq.s32.totalorder %v909, %v915
    %vm974 = vcmp.eq.s32.totalorder %v910, %v914
    %vm975 = vcmp.eq.s32.totalorder %v910, %v915
    %vm976 = vcmp.eq.s32.totalorder %v911, %v914
    %vm977 = vcmp.eq.s32.totalorder %v911, %v915
    %vm978 = vcmp.eq.s32.totalorder %v912, %v914
    %vm979 = vcmp.eq.s32.totalorder %v912, %v915
    %v980 = vadd.s32 %v915, 128
    %vm981 = vcmp.eq.s32.totalorder %v881, %v980
    %vm982 = vcmp.eq.s32.totalorder %v882, %v980
    %vm983 = vcmp.eq.s32.totalorder %v883, %v980
    %vm984 = vcmp.eq.s32.totalorder %v884, %v980
    %vm985 = vcmp.eq.s32.totalorder %v885, %v980
    %vm986 = vcmp.eq.s32.totalorder %v886, %v980
    %vm987 = vcmp.eq.s32.totalorder %v887, %v980
    %vm988 = vcmp.eq.s32.totalorder %v888, %v980
    %vm989 = vcmp.eq.s32.totalorder %v889, %v980
    %vm990 = vcmp.eq.s32.totalorder %v890, %v980
    %vm991 = vcmp.eq.s32.totalorder %v891, %v980
    %vm992 = vcmp.eq.s32.totalorder %v892, %v980
    %vm993 = vcmp.eq.s32.totalorder %v893, %v980
    %vm994 = vcmp.eq.s32.totalorder %v894, %v980
    %vm995 = vcmp.eq.s32.totalorder %v895, %v980
    %vm996 = vcmp.eq.s32.totalorder %v896, %v980
    %vm997 = vcmp.eq.s32.totalorder %v897, %v980
    %vm998 = vcmp.eq.s32.totalorder %v898, %v980
    %vm999 = vcmp.eq.s32.totalorder %v899, %v980
    %vm1000 = vcmp.eq.s32.totalorder %v900, %v980
    %vm1001 = vcmp.eq.s32.totalorder %v901, %v980
    %vm1002 = vcmp.eq.s32.totalorder %v902, %v980
    %vm1003 = vcmp.eq.s32.totalorder %v903, %v980
    %vm1004 = vcmp.eq.s32.totalorder %v904, %v980
    %vm1005 = vcmp.eq.s32.totalorder %v905, %v980
    %vm1006 = vcmp.eq.s32.totalorder %v906, %v980
    %vm1007 = vcmp.eq.s32.totalorder %v907, %v980
    %vm1008 = vcmp.eq.s32.totalorder %v908, %v980
    %vm1009 = vcmp.eq.s32.totalorder %v909, %v980
    %vm1010 = vcmp.eq.s32.totalorder %v910, %v980
    %vm1011 = vcmp.eq.s32.totalorder %v911, %v980
    %vm1012 = vcmp.eq.s32.totalorder %v912, %v980
    %vm1013 = vmor %vm916, %vm917
    %vm1014 = vmor %vm917, %vm981
    %vm1015 = vmor %vm918, %vm919
    %vm1016 = vmor %vm919, %vm982
    %vm1017 = vmor %vm920, %vm921
    %vm1018 = vmor %vm921, %vm983
    %vm1019 = vmor %vm922, %vm923
    %vm1020 = vmor %vm923, %vm984
    %vm1021 = vmor %vm924, %vm925
    %vm1022 = vmor %vm925, %vm985
    %vm1023 = vmor %vm926, %vm927
    %vm1024 = vmor %vm927, %vm986
    %vm1025 = vmor %vm928, %vm929
    %vm1026 = vmor %vm929, %vm987
    %vm1027 = vmor %vm930, %vm931
    %vm1028 = vmor %vm931, %vm988
    %vm1029 = vmor %vm932, %vm933
    %vm1030 = vmor %vm933, %vm989
    %vm1031 = vmor %vm934, %vm935
    %vm1032 = vmor %vm935, %vm990
    %vm1033 = vmor %vm936, %vm937
    %vm1034 = vmor %vm937, %vm991
    %vm1035 = vmor %vm938, %vm939
    %vm1036 = vmor %vm939, %vm992
    %vm1037 = vmor %vm940, %vm941
    %vm1038 = vmor %vm941, %vm993
    %vm1039 = vmor %vm942, %vm943
    %vm1040 = vmor %vm943, %vm994
    %vm1041 = vmor %vm944, %vm945
    %vm1042 = vmor %vm945, %vm995
    %vm1043 = vmor %vm946, %vm947
    %vm1044 = vmor %vm947, %vm996
    %vm1045 = vmor %vm948, %vm949
    %vm1046 = vmor %vm949, %vm997
    %vm1047 = vmor %vm950, %vm951
    %vm1048 = vmor %vm951, %vm998
    %vm1049 = vmor %vm952, %vm953
    %vm1050 = vmor %vm953, %vm999
    %vm1051 = vmor %vm954, %vm955
    %vm1052 = vmor %vm955, %vm1000
    %vm1053 = vmor %vm956, %vm957
    %vm1054 = vmor %vm957, %vm1001
    %vm1055 = vmor %vm958, %vm959
    %vm1056 = vmor %vm959, %vm1002
    %vm1057 = vmor %vm960, %vm961
    %vm1058 = vmor %vm961, %vm1003
    %vm1059 = vmor %vm962, %vm963
    %vm1060 = vmor %vm963, %vm1004
    %vm1061 = vmor %vm964, %vm965
    %vm1062 = vmor %vm965, %vm1005
    %vm1063 = vmor %vm966, %vm967
    %vm1064 = vmor %vm967, %vm1006
    %vm1065 = vmor %vm968, %vm969
    %vm1066 = vmor %vm969, %vm1007
    %vm1067 = vmor %vm970, %vm971
    %vm1068 = vmor %vm971, %vm1008
    %vm1069 = vmor %vm972, %vm973
    %vm1070 = vmor %vm973, %vm1009
    %vm1071 = vmor %vm974, %vm975
    %vm1072 = vmor %vm975, %vm1010
    %vm1073 = vmor %vm976, %vm977
    %vm1074 = vmor %vm977, %vm1011
    %vm1075 = vmor %vm978, %vm979
    %vm1076 = vmor %vm979, %vm1012
    %v1077 = vadd.s32 %v882, 128
    %v1078 = vadd.s32 %v883, 128
    %v1079 = vadd.s32 %v884, 128
    %v1080 = vadd.s32 %v885, 128
    %v1081 = vadd.s32 %v886, 128
    %v1082 = vadd.s32 %v887, 128
    %v1083 = vadd.s32 %v888, 128
    %v1084 = vadd.s32 %v889, 128
    %v1085 = vadd.s32 %v890, 128
    %v1086 = vadd.s32 %v891, 128
    %v1087 = vadd.s32 %v892, 128
    %v1088 = vadd.s32 %v893, 128
    %v1089 = vadd.s32 %v894, 128
    %v1090 = vadd.s32 %v895, 128
    %v1091 = vadd.s32 %v896, 128
    %v1092 = vadd.s32 %v897, 128
    %v1093 = vadd.s32 %v898, 128
    %v1094 = vadd.s32 %v899, 128
    %v1095 = vadd.s32 %v900, 128
    %v1096 = vadd.s32 %v901, 128
    %v1097 = vadd.s32 %v902, 128
    %v1098 = vadd.s32 %v903, 128
    %v1099 = vadd.s32 %v904, 128
    %v1100 = vadd.s32 %v905, 128
    %v1101 = vadd.s32 %v906, 128
    %v1102 = vadd.s32 %v907, 128
    %v1103 = vadd.s32 %v908, 128
    %v1104 = vadd.s32 %v909, 128
    %v1105 = vadd.s32 %v910, 128
    %v1106 = vadd.s32 %v911, 128
    %v1107 = vadd.s32 %v912, 128
    %vm1108 = vcmp.eq.s32.totalorder %v914, %v897
    %vm1109 = vcmp.eq.s32.totalorder %v915, %v897
    %vm1110 = vcmp.eq.s32.totalorder %v914, %v1077
    %vm1111 = vcmp.eq.s32.totalorder %v915, %v1077
    %vm1112 = vcmp.eq.s32.totalorder %v914, %v1078
    %vm1113 = vcmp.eq.s32.totalorder %v915, %v1078
    %vm1114 = vcmp.eq.s32.totalorder %v914, %v1079
    %vm1115 = vcmp.eq.s32.totalorder %v915, %v1079
    %vm1116 = vcmp.eq.s32.totalorder %v914, %v1080
    %vm1117 = vcmp.eq.s32.totalorder %v915, %v1080
    %vm1118 = vcmp.eq.s32.totalorder %v914, %v1081
    %vm1119 = vcmp.eq.s32.totalorder %v915, %v1081
    %vm1120 = vcmp.eq.s32.totalorder %v914, %v1082
    %vm1121 = vcmp.eq.s32.totalorder %v915, %v1082
    %vm1122 = vcmp.eq.s32.totalorder %v914, %v1083
    %vm1123 = vcmp.eq.s32.totalorder %v915, %v1083
    %vm1124 = vcmp.eq.s32.totalorder %v914, %v1084
    %vm1125 = vcmp.eq.s32.totalorder %v915, %v1084
    %vm1126 = vcmp.eq.s32.totalorder %v914, %v1085
    %vm1127 = vcmp.eq.s32.totalorder %v915, %v1085
    %vm1128 = vcmp.eq.s32.totalorder %v914, %v1086
    %vm1129 = vcmp.eq.s32.totalorder %v915, %v1086
    %vm1130 = vcmp.eq.s32.totalorder %v914, %v1087
    %vm1131 = vcmp.eq.s32.totalorder %v915, %v1087
    %vm1132 = vcmp.eq.s32.totalorder %v914, %v1088
    %vm1133 = vcmp.eq.s32.totalorder %v915, %v1088
    %vm1134 = vcmp.eq.s32.totalorder %v914, %v1089
    %vm1135 = vcmp.eq.s32.totalorder %v915, %v1089
    %vm1136 = vcmp.eq.s32.totalorder %v914, %v1090
    %vm1137 = vcmp.eq.s32.totalorder %v915, %v1090
    %vm1138 = vcmp.eq.s32.totalorder %v914, %v1091
    %vm1139 = vcmp.eq.s32.totalorder %v915, %v1091
    %vm1140 = vcmp.eq.s32.totalorder %v914, %v1092
    %vm1141 = vcmp.eq.s32.totalorder %v915, %v1092
    %vm1142 = vcmp.eq.s32.totalorder %v914, %v1093
    %vm1143 = vcmp.eq.s32.totalorder %v915, %v1093
    %vm1144 = vcmp.eq.s32.totalorder %v914, %v1094
    %vm1145 = vcmp.eq.s32.totalorder %v915, %v1094
    %vm1146 = vcmp.eq.s32.totalorder %v914, %v1095
    %vm1147 = vcmp.eq.s32.totalorder %v915, %v1095
    %vm1148 = vcmp.eq.s32.totalorder %v914, %v1096
    %vm1149 = vcmp.eq.s32.totalorder %v915, %v1096
    %vm1150 = vcmp.eq.s32.totalorder %v914, %v1097
    %vm1151 = vcmp.eq.s32.totalorder %v915, %v1097
    %vm1152 = vcmp.eq.s32.totalorder %v914, %v1098
    %vm1153 = vcmp.eq.s32.totalorder %v915, %v1098
    %vm1154 = vcmp.eq.s32.totalorder %v914, %v1099
    %vm1155 = vcmp.eq.s32.totalorder %v915, %v1099
    %vm1156 = vcmp.eq.s32.totalorder %v914, %v1100
    %vm1157 = vcmp.eq.s32.totalorder %v915, %v1100
    %vm1158 = vcmp.eq.s32.totalorder %v914, %v1101
    %vm1159 = vcmp.eq.s32.totalorder %v915, %v1101
    %vm1160 = vcmp.eq.s32.totalorder %v914, %v1102
    %vm1161 = vcmp.eq.s32.totalorder %v915, %v1102
    %vm1162 = vcmp.eq.s32.totalorder %v914, %v1103
    %vm1163 = vcmp.eq.s32.totalorder %v915, %v1103
    %vm1164 = vcmp.eq.s32.totalorder %v914, %v1104
    %vm1165 = vcmp.eq.s32.totalorder %v915, %v1104
    %vm1166 = vcmp.eq.s32.totalorder %v914, %v1105
    %vm1167 = vcmp.eq.s32.totalorder %v915, %v1105
    %vm1168 = vcmp.eq.s32.totalorder %v914, %v1106
    %vm1169 = vcmp.eq.s32.totalorder %v915, %v1106
    %vm1170 = vcmp.eq.s32.totalorder %v914, %v1107
    %vm1171 = vcmp.eq.s32.totalorder %v915, %v1107
    %vm1172 = vmor %vm1013, %vm1108
    %vm1173 = vmor %vm1014, %vm1109
    %vm1174 = vmor %vm1015, %vm1110
    %vm1175 = vmor %vm1016, %vm1111
    %vm1176 = vmor %vm1017, %vm1112
    %vm1177 = vmor %vm1018, %vm1113
    %vm1178 = vmor %vm1019, %vm1114
    %vm1179 = vmor %vm1020, %vm1115
    %vm1180 = vmor %vm1021, %vm1116
    %vm1181 = vmor %vm1022, %vm1117
    %vm1182 = vmor %vm1023, %vm1118
    %vm1183 = vmor %vm1024, %vm1119
    %vm1184 = vmor %vm1025, %vm1120
    %vm1185 = vmor %vm1026, %vm1121
    %vm1186 = vmor %vm1027, %vm1122
    %vm1187 = vmor %vm1028, %vm1123
    %vm1188 = vmor %vm1029, %vm1124
    %vm1189 = vmor %vm1030, %vm1125
    %vm1190 = vmor %vm1031, %vm1126
    %vm1191 = vmor %vm1032, %vm1127
    %vm1192 = vmor %vm1033, %vm1128
    %vm1193 = vmor %vm1034, %vm1129
    %vm1194 = vmor %vm1035, %vm1130
    %vm1195 = vmor %vm1036, %vm1131
    %vm1196 = vmor %vm1037, %vm1132
    %vm1197 = vmor %vm1038, %vm1133
    %vm1198 = vmor %vm1039, %vm1134
    %vm1199 = vmor %vm1040, %vm1135
    %vm1200 = vmor %vm1041, %vm1136
    %vm1201 = vmor %vm1042, %vm1137
    %vm1202 = vmor %vm1043, %vm1138
    %vm1203 = vmor %vm1044, %vm1139
    %vm1204 = vmor %vm1045, %vm1140
    %vm1205 = vmor %vm1046, %vm1141
    %vm1206 = vmor %vm1047, %vm1142
    %vm1207 = vmor %vm1048, %vm1143
    %vm1208 = vmor %vm1049, %vm1144
    %vm1209 = vmor %vm1050, %vm1145
    %vm1210 = vmor %vm1051, %vm1146
    %vm1211 = vmor %vm1052, %vm1147
    %vm1212 = vmor %vm1053, %vm1148
    %vm1213 = vmor %vm1054, %vm1149
    %vm1214 = vmor %vm1055, %vm1150
    %vm1215 = vmor %vm1056, %vm1151
    %vm1216 = vmor %vm1057, %vm1152
    %vm1217 = vmor %vm1058, %vm1153
    %vm1218 = vmor %vm1059, %vm1154
    %vm1219 = vmor %vm1060, %vm1155
    %vm1220 = vmor %vm1061, %vm1156
    %vm1221 = vmor %vm1062, %vm1157
    %vm1222 = vmor %vm1063, %vm1158
    %vm1223 = vmor %vm1064, %vm1159
    %vm1224 = vmor %vm1065, %vm1160
    %vm1225 = vmor %vm1066, %vm1161
    %vm1226 = vmor %vm1067, %vm1162
    %vm1227 = vmor %vm1068, %vm1163
    %vm1228 = vmor %vm1069, %vm1164
    %vm1229 = vmor %vm1070, %vm1165
    %vm1230 = vmor %vm1071, %vm1166
    %vm1231 = vmor %vm1072, %vm1167
    %vm1232 = vmor %vm1073, %vm1168
    %vm1233 = vmor %vm1074, %vm1169
    %vm1234 = vmor %vm1075, %vm1170
    %vm1235 = vmor %vm1076, %vm1171
    %v1236 = vsel %vm1172, inf, %v816
    %v1237 = vsel %vm1173, inf, %v817
    %v1238 = vsel %vm1174, inf, %v818
    %v1239 = vsel %vm1175, inf, %v819
    %v1240 = vsel %vm1176, inf, %v820
    %v1241 = vsel %vm1177, inf, %v821
    %v1242 = vsel %vm1178, inf, %v822
    %v1243 = vsel %vm1179, inf, %v823
    %v1244 = vsel %vm1180, inf, %v824
    %v1245 = vsel %vm1181, inf, %v825
    %v1246 = vsel %vm1182, inf, %v826
    %v1247 = vsel %vm1183, inf, %v827
    %v1248 = vsel %vm1184, inf, %v828
    %v1249 = vsel %vm1185, inf, %v829
    %v1250 = vsel %vm1186, inf, %v830
    %v1251 = vsel %vm1187, inf, %v831
    %v1252 = vsel %vm1188, inf, %v832
    %v1253 = vsel %vm1189, inf, %v833
    %v1254 = vsel %vm1190, inf, %v834
    %v1255 = vsel %vm1191, inf, %v835
    %v1256 = vsel %vm1192, inf, %v836
    %v1257 = vsel %vm1193, inf, %v837
    %v1258 = vsel %vm1194, inf, %v838
    %v1259 = vsel %vm1195, inf, %v839
    %v1260 = vsel %vm1196, inf, %v840
    %v1261 = vsel %vm1197, inf, %v841
    %v1262 = vsel %vm1198, inf, %v842
    %v1263 = vsel %vm1199, inf, %v843
    %v1264 = vsel %vm1200, inf, %v844
    %v1265 = vsel %vm1201, inf, %v845
    %v1266 = vsel %vm1202, inf, %v846
    %v1267 = vsel %vm1203, inf, %v847
    %v1268 = vsel %vm1204, inf, %v848
    %v1269 = vsel %vm1205, inf, %v849
    %v1270 = vsel %vm1206, inf, %v850
    %v1271 = vsel %vm1207, inf, %v851
    %v1272 = vsel %vm1208, inf, %v852
    %v1273 = vsel %vm1209, inf, %v853
    %v1274 = vsel %vm1210, inf, %v854
    %v1275 = vsel %vm1211, inf, %v855
    %v1276 = vsel %vm1212, inf, %v856
    %v1277 = vsel %vm1213, inf, %v857
    %v1278 = vsel %vm1214, inf, %v858
    %v1279 = vsel %vm1215, inf, %v859
    %v1280 = vsel %vm1216, inf, %v860
    %v1281 = vsel %vm1217, inf, %v861
    %v1282 = vsel %vm1218, inf, %v862
    %v1283 = vsel %vm1219, inf, %v863
    %v1284 = vsel %vm1220, inf, %v864
    %v1285 = vsel %vm1221, inf, %v865
    %v1286 = vsel %vm1222, inf, %v866
    %v1287 = vsel %vm1223, inf, %v867
    %v1288 = vsel %vm1224, inf, %v868
    %v1289 = vsel %vm1225, inf, %v869
    %v1290 = vsel %vm1226, inf, %v870
    %v1291 = vsel %vm1227, inf, %v871
    %v1292 = vsel %vm1228, inf, %v872
    %v1293 = vsel %vm1229, inf, %v873
    %v1294 = vsel %vm1230, inf, %v874
    %v1295 = vsel %vm1231, inf, %v875
    %v1296 = vsel %vm1232, inf, %v876
    %v1297 = vsel %vm1233, inf, %v877
    %v1298 = vsel %vm1234, inf, %v878
    %v1299 = vsel %vm1235, inf, %v879
    %v1300 = vmin.f32 %v1236, %v1237
    %1301 = vmin.xlane.f32.xlu0 %v1300
    %v1302 = vpop.xlane.xlu0 %1301
    %v1303 = vmin.f32 %v1238, %v1239
    %1304 = vmin.xlane.f32.xlu0 %v1303
    %v1305 = vpop.xlane.xlu0 %1304
    %v1306 = vmin.f32 %v1240, %v1241
    %1307 = vmin.xlane.f32.xlu0 %v1306
    %v1308 = vpop.xlane.xlu0 %1307
    %v1309 = vmin.f32 %v1242, %v1243
    %1310 = vmin.xlane.f32.xlu0 %v1309
    %v1311 = vpop.xlane.xlu0 %1310
    %v1312 = vmin.f32 %v1244, %v1245
    %1313 = vmin.xlane.f32.xlu0 %v1312
    %v1314 = vpop.xlane.xlu0 %1313
    %v1315 = vmin.f32 %v1246, %v1247
    %1316 = vmin.xlane.f32.xlu0 %v1315
    %v1317 = vpop.xlane.xlu0 %1316
    %v1318 = vmin.f32 %v1248, %v1249
    %1319 = vmin.xlane.f32.xlu0 %v1318
    %v1320 = vpop.xlane.xlu0 %1319
    %v1321 = vmin.f32 %v1250, %v1251
    %1322 = vmin.xlane.f32.xlu0 %v1321
    %v1323 = vpop.xlane.xlu0 %1322
    %v1324 = vmin.f32 %v1252, %v1253
    %1325 = vmin.xlane.f32.xlu0 %v1324
    %v1326 = vpop.xlane.xlu0 %1325
    %v1327 = vmin.f32 %v1254, %v1255
    %1328 = vmin.xlane.f32.xlu0 %v1327
    %v1329 = vpop.xlane.xlu0 %1328
    %v1330 = vmin.f32 %v1256, %v1257
    %1331 = vmin.xlane.f32.xlu0 %v1330
    %v1332 = vpop.xlane.xlu0 %1331
    %v1333 = vmin.f32 %v1258, %v1259
    %1334 = vmin.xlane.f32.xlu0 %v1333
    %v1335 = vpop.xlane.xlu0 %1334
    %v1336 = vmin.f32 %v1260, %v1261
    %1337 = vmin.xlane.f32.xlu0 %v1336
    %v1338 = vpop.xlane.xlu0 %1337
    %v1339 = vmin.f32 %v1262, %v1263
    %1340 = vmin.xlane.f32.xlu0 %v1339
    %v1341 = vpop.xlane.xlu0 %1340
    %v1342 = vmin.f32 %v1264, %v1265
    %1343 = vmin.xlane.f32.xlu0 %v1342
    %v1344 = vpop.xlane.xlu0 %1343
    %v1345 = vmin.f32 %v1266, %v1267
    %1346 = vmin.xlane.f32.xlu0 %v1345
    %v1347 = vpop.xlane.xlu0 %1346
    %v1348 = vmin.f32 %v1268, %v1269
    %1349 = vmin.xlane.f32.xlu0 %v1348
    %v1350 = vpop.xlane.xlu0 %1349
    %v1351 = vmin.f32 %v1270, %v1271
    %1352 = vmin.xlane.f32.xlu0 %v1351
    %v1353 = vpop.xlane.xlu0 %1352
    %v1354 = vmin.f32 %v1272, %v1273
    %1355 = vmin.xlane.f32.xlu0 %v1354
    %v1356 = vpop.xlane.xlu0 %1355
    %v1357 = vmin.f32 %v1274, %v1275
    %1358 = vmin.xlane.f32.xlu0 %v1357
    %v1359 = vpop.xlane.xlu0 %1358
    %v1360 = vmin.f32 %v1276, %v1277
    %1361 = vmin.xlane.f32.xlu0 %v1360
    %v1362 = vpop.xlane.xlu0 %1361
    %v1363 = vmin.f32 %v1278, %v1279
    %1364 = vmin.xlane.f32.xlu0 %v1363
    %v1365 = vpop.xlane.xlu0 %1364
    %v1366 = vmin.f32 %v1280, %v1281
    %1367 = vmin.xlane.f32.xlu0 %v1366
    %v1368 = vpop.xlane.xlu0 %1367
    %v1369 = vmin.f32 %v1282, %v1283
    %1370 = vmin.xlane.f32.xlu0 %v1369
    %v1371 = vpop.xlane.xlu0 %1370
    %v1372 = vmin.f32 %v1284, %v1285
    %1373 = vmin.xlane.f32.xlu0 %v1372
    %v1374 = vpop.xlane.xlu0 %1373
    %v1375 = vmin.f32 %v1286, %v1287
    %1376 = vmin.xlane.f32.xlu0 %v1375
    %v1377 = vpop.xlane.xlu0 %1376
    %v1378 = vmin.f32 %v1288, %v1289
    %1379 = vmin.xlane.f32.xlu0 %v1378
    %v1380 = vpop.xlane.xlu0 %1379
    %v1381 = vmin.f32 %v1290, %v1291
    %1382 = vmin.xlane.f32.xlu0 %v1381
    %v1383 = vpop.xlane.xlu0 %1382
    %v1384 = vmin.f32 %v1292, %v1293
    %1385 = vmin.xlane.f32.xlu0 %v1384
    %v1386 = vpop.xlane.xlu0 %1385
    %v1387 = vmin.f32 %v1294, %v1295
    %1388 = vmin.xlane.f32.xlu0 %v1387
    %v1389 = vpop.xlane.xlu0 %1388
    %v1390 = vmin.f32 %v1296, %v1297
    %1391 = vmin.xlane.f32.xlu0 %v1390
    %v1392 = vpop.xlane.xlu0 %1391
    %v1393 = vmin.f32 %v1298, %v1299
    %1394 = vmin.xlane.f32.xlu0 %v1393
    %v1395 = vpop.xlane.xlu0 %1394
    %v1396 = vmul.f32 %v1302, 1e-05
    %v1397 = vmul.f32 %v1305, 1e-05
    %v1398 = vmul.f32 %v1308, 1e-05
    %v1399 = vmul.f32 %v1311, 1e-05
    %v1400 = vmul.f32 %v1314, 1e-05
    %v1401 = vmul.f32 %v1317, 1e-05
    %v1402 = vmul.f32 %v1320, 1e-05
    %v1403 = vmul.f32 %v1323, 1e-05
    %v1404 = vmul.f32 %v1326, 1e-05
    %v1405 = vmul.f32 %v1329, 1e-05
    %v1406 = vmul.f32 %v1332, 1e-05
    %v1407 = vmul.f32 %v1335, 1e-05
    %v1408 = vmul.f32 %v1338, 1e-05
    %v1409 = vmul.f32 %v1341, 1e-05
    %v1410 = vmul.f32 %v1344, 1e-05
    %v1411 = vmul.f32 %v1347, 1e-05
    %v1412 = vmul.f32 %v1350, 1e-05
    %v1413 = vmul.f32 %v1353, 1e-05
    %v1414 = vmul.f32 %v1356, 1e-05
    %v1415 = vmul.f32 %v1359, 1e-05
    %v1416 = vmul.f32 %v1362, 1e-05
    %v1417 = vmul.f32 %v1365, 1e-05
    %v1418 = vmul.f32 %v1368, 1e-05
    %v1419 = vmul.f32 %v1371, 1e-05
    %v1420 = vmul.f32 %v1374, 1e-05
    %v1421 = vmul.f32 %v1377, 1e-05
    %v1422 = vmul.f32 %v1380, 1e-05
    %v1423 = vmul.f32 %v1383, 1e-05
    %v1424 = vmul.f32 %v1386, 1e-05
    %v1425 = vmul.f32 %v1389, 1e-05
    %v1426 = vmul.f32 %v1392, 1e-05
    %v1427 = vmul.f32 %v1395, 1e-05
    %vm1428 = vcmp.ge.s32.totalorder %v881, 128
    %vm1429 = vcmp.ge.s32.totalorder %v882, 128
    %vm1430 = vcmp.ge.s32.totalorder %v883, 128
    %vm1431 = vcmp.ge.s32.totalorder %v884, 128
    %vm1432 = vcmp.ge.s32.totalorder %v885, 128
    %vm1433 = vcmp.ge.s32.totalorder %v886, 128
    %vm1434 = vcmp.ge.s32.totalorder %v887, 128
    %vm1435 = vcmp.ge.s32.totalorder %v888, 128
    %vm1436 = vcmp.ge.s32.totalorder %v889, 128
    %vm1437 = vcmp.ge.s32.totalorder %v890, 128
    %vm1438 = vcmp.ge.s32.totalorder %v891, 128
    %vm1439 = vcmp.ge.s32.totalorder %v892, 128
    %vm1440 = vcmp.ge.s32.totalorder %v893, 128
    %vm1441 = vcmp.ge.s32.totalorder %v894, 128
    %vm1442 = vcmp.ge.s32.totalorder %v895, 128
    %vm1443 = vcmp.ge.s32.totalorder %v896, 128
    %vm1444 = vcmp.ge.s32.totalorder %v897, 128
    %vm1445 = vcmp.ge.s32.totalorder %v898, 128
    %vm1446 = vcmp.ge.s32.totalorder %v899, 128
    %vm1447 = vcmp.ge.s32.totalorder %v900, 128
    %vm1448 = vcmp.ge.s32.totalorder %v901, 128
    %vm1449 = vcmp.ge.s32.totalorder %v902, 128
    %vm1450 = vcmp.ge.s32.totalorder %v903, 128
    %vm1451 = vcmp.ge.s32.totalorder %v904, 128
    %vm1452 = vcmp.ge.s32.totalorder %v905, 128
    %vm1453 = vcmp.ge.s32.totalorder %v906, 128
    %vm1454 = vcmp.ge.s32.totalorder %v907, 128
    %vm1455 = vcmp.ge.s32.totalorder %v908, 128
    %vm1456 = vcmp.ge.s32.totalorder %v909, 128
    %vm1457 = vcmp.ge.s32.totalorder %v910, 128
    %vm1458 = vcmp.ge.s32.totalorder %v911, 128
    %vm1459 = vcmp.ge.s32.totalorder %v912, 128
    %v1460 = vsel %vm1428, 1, 0
    %v1461 = vsel %vm1429, 1, 0
    %v1462 = vsel %vm1430, 1, 0
    %v1463 = vsel %vm1431, 1, 0
    %v1464 = vsel %vm1432, 1, 0
    %v1465 = vsel %vm1433, 1, 0
    %v1466 = vsel %vm1434, 1, 0
    %v1467 = vsel %vm1435, 1, 0
    %v1468 = vsel %vm1436, 1, 0
    %v1469 = vsel %vm1437, 1, 0
    %v1470 = vsel %vm1438, 1, 0
    %v1471 = vsel %vm1439, 1, 0
    %v1472 = vsel %vm1440, 1, 0
    %v1473 = vsel %vm1441, 1, 0
    %v1474 = vsel %vm1442, 1, 0
    %v1475 = vsel %vm1443, 1, 0
    %v1476 = vsel %vm1444, 1, 0
    %v1477 = vsel %vm1445, 1, 0
    %v1478 = vsel %vm1446, 1, 0
    %v1479 = vsel %vm1447, 1, 0
    %v1480 = vsel %vm1448, 1, 0
    %v1481 = vsel %vm1449, 1, 0
    %v1482 = vsel %vm1450, 1, 0
    %v1483 = vsel %vm1451, 1, 0
    %v1484 = vsel %vm1452, 1, 0
    %v1485 = vsel %vm1453, 1, 0
    %v1486 = vsel %vm1454, 1, 0
    %v1487 = vsel %vm1455, 1, 0
    %v1488 = vsel %vm1456, 1, 0
    %v1489 = vsel %vm1457, 1, 0
    %v1490 = vsel %vm1458, 1, 0
    %v1491 = vsel %vm1459, 1, 0
    %v1492 = vcvt.s32.f32 %v1460
    %v1493 = vcvt.s32.f32 %v1461
    %v1494 = vcvt.s32.f32 %v1462
    %v1495 = vcvt.s32.f32 %v1463
    %v1496 = vcvt.s32.f32 %v1464
    %v1497 = vcvt.s32.f32 %v1465
    %v1498 = vcvt.s32.f32 %v1466
    %v1499 = vcvt.s32.f32 %v1467
    %v1500 = vcvt.s32.f32 %v1468
    %v1501 = vcvt.s32.f32 %v1469
    %v1502 = vcvt.s32.f32 %v1470
    %v1503 = vcvt.s32.f32 %v1471
    %v1504 = vcvt.s32.f32 %v1472
    %v1505 = vcvt.s32.f32 %v1473
    %v1506 = vcvt.s32.f32 %v1474
    %v1507 = vcvt.s32.f32 %v1475
    %v1508 = vcvt.s32.f32 %v1476
    %v1509 = vcvt.s32.f32 %v1477
    %v1510 = vcvt.s32.f32 %v1478
    %v1511 = vcvt.s32.f32 %v1479
    %v1512 = vcvt.s32.f32 %v1480
    %v1513 = vcvt.s32.f32 %v1481
    %v1514 = vcvt.s32.f32 %v1482
    %v1515 = vcvt.s32.f32 %v1483
    %v1516 = vcvt.s32.f32 %v1484
    %v1517 = vcvt.s32.f32 %v1485
    %v1518 = vcvt.s32.f32 %v1486
    %v1519 = vcvt.s32.f32 %v1487
    %v1520 = vcvt.s32.f32 %v1488
    %v1521 = vcvt.s32.f32 %v1489
    %v1522 = vcvt.s32.f32 %v1490
    %v1523 = vcvt.s32.f32 %v1491
    %v1524 = vmul.f32 %v1492, %v1396
    %v1525 = vmul.f32 %v1493, %v1397
    %v1526 = vmul.f32 %v1494, %v1398
    %v1527 = vmul.f32 %v1495, %v1399
    %v1528 = vmul.f32 %v1496, %v1400
    %v1529 = vmul.f32 %v1497, %v1401
    %v1530 = vmul.f32 %v1498, %v1402
    %v1531 = vmul.f32 %v1499, %v1403
    %v1532 = vmul.f32 %v1500, %v1404
    %v1533 = vmul.f32 %v1501, %v1405
    %v1534 = vmul.f32 %v1502, %v1406
    %v1535 = vmul.f32 %v1503, %v1407
    %v1536 = vmul.f32 %v1504, %v1408
    %v1537 = vmul.f32 %v1505, %v1409
    %v1538 = vmul.f32 %v1506, %v1410
    %v1539 = vmul.f32 %v1507, %v1411
    %v1540 = vmul.f32 %v1508, %v1412
    %v1541 = vmul.f32 %v1509, %v1413
    %v1542 = vmul.f32 %v1510, %v1414
    %v1543 = vmul.f32 %v1511, %v1415
    %v1544 = vmul.f32 %v1512, %v1416
    %v1545 = vmul.f32 %v1513, %v1417
    %v1546 = vmul.f32 %v1514, %v1418
    %v1547 = vmul.f32 %v1515, %v1419
    %v1548 = vmul.f32 %v1516, %v1420
    %v1549 = vmul.f32 %v1517, %v1421
    %v1550 = vmul.f32 %v1518, %v1422
    %v1551 = vmul.f32 %v1519, %v1423
    %v1552 = vmul.f32 %v1520, %v1424
    %v1553 = vmul.f32 %v1521, %v1425
    %v1554 = vmul.f32 %v1522, %v1426
    %v1555 = vmul.f32 %v1523, %v1427
    %v1556 = vadd.f32 %v816, %v1524
    %v1557 = vadd.f32 %v817, %v1524
    %v1558 = vadd.f32 %v818, %v1525
    %v1559 = vadd.f32 %v819, %v1525
    %v1560 = vadd.f32 %v820, %v1526
    %v1561 = vadd.f32 %v821, %v1526
    %v1562 = vadd.f32 %v822, %v1527
    %v1563 = vadd.f32 %v823, %v1527
    %v1564 = vadd.f32 %v824, %v1528
    %v1565 = vadd.f32 %v825, %v1528
    %v1566 = vadd.f32 %v826, %v1529
    %v1567 = vadd.f32 %v827, %v1529
    %v1568 = vadd.f32 %v828, %v1530
    %v1569 = vadd.f32 %v829, %v1530
    %v1570 = vadd.f32 %v830, %v1531
    %v1571 = vadd.f32 %v831, %v1531
    %v1572 = vadd.f32 %v832, %v1532
    %v1573 = vadd.f32 %v833, %v1532
    %v1574 = vadd.f32 %v834, %v1533
    %v1575 = vadd.f32 %v835, %v1533
    %v1576 = vadd.f32 %v836, %v1534
    %v1577 = vadd.f32 %v837, %v1534
    %v1578 = vadd.f32 %v838, %v1535
    %v1579 = vadd.f32 %v839, %v1535
    %v1580 = vadd.f32 %v840, %v1536
    %v1581 = vadd.f32 %v841, %v1536
    %v1582 = vadd.f32 %v842, %v1537
    %v1583 = vadd.f32 %v843, %v1537
    %v1584 = vadd.f32 %v844, %v1538
    %v1585 = vadd.f32 %v845, %v1538
    %v1586 = vadd.f32 %v846, %v1539
    %v1587 = vadd.f32 %v847, %v1539
    %v1588 = vadd.f32 %v848, %v1540
    %v1589 = vadd.f32 %v849, %v1540
    %v1590 = vadd.f32 %v850, %v1541
    %v1591 = vadd.f32 %v851, %v1541
    %v1592 = vadd.f32 %v852, %v1542
    %v1593 = vadd.f32 %v853, %v1542
    %v1594 = vadd.f32 %v854, %v1543
    %v1595 = vadd.f32 %v855, %v1543
    %v1596 = vadd.f32 %v856, %v1544
    %v1597 = vadd.f32 %v857, %v1544
    %v1598 = vadd.f32 %v858, %v1545
    %v1599 = vadd.f32 %v859, %v1545
    %v1600 = vadd.f32 %v860, %v1546
    %v1601 = vadd.f32 %v861, %v1546
    %v1602 = vadd.f32 %v862, %v1547
    %v1603 = vadd.f32 %v863, %v1547
    %v1604 = vadd.f32 %v864, %v1548
    %v1605 = vadd.f32 %v865, %v1548
    %v1606 = vadd.f32 %v866, %v1549
    %v1607 = vadd.f32 %v867, %v1549
    %v1608 = vadd.f32 %v868, %v1550
    %v1609 = vadd.f32 %v869, %v1550
    %v1610 = vadd.f32 %v870, %v1551
    %v1611 = vadd.f32 %v871, %v1551
    %v1612 = vadd.f32 %v872, %v1552
    %v1613 = vadd.f32 %v873, %v1552
    %v1614 = vadd.f32 %v874, %v1553
    %v1615 = vadd.f32 %v875, %v1553
    %v1616 = vadd.f32 %v876, %v1554
    %v1617 = vadd.f32 %v877, %v1554
    %v1618 = vadd.f32 %v878, %v1555
    %v1619 = vadd.f32 %v879, %v1555
    %1620 = vxpose.xlu0.b32.start [1/16] %v1524, 128
    %1621 = vxpose.xlu0.b32.cont [2/16] %v1525, 128
    %1622 = vxpose.xlu0.b32.cont [3/16] %v1526, 128
    %1623 = vxpose.xlu0.b32.cont [4/16] %v1527, 128
    %1624 = vxpose.xlu0.b32.cont [5/16] %v1528, 128
    %1625 = vxpose.xlu0.b32.cont [6/16] %v1529, 128
    %1626 = vxpose.xlu0.b32.cont [7/16] %v1530, 128
    %1627 = vxpose.xlu0.b32.cont [8/16] %v1531, 128
    %1628 = vxpose.xlu0.b32.cont [9/16] %v1532, 128
    %1629 = vxpose.xlu0.b32.cont [10/16] %v1533, 128
    %1630 = vxpose.xlu0.b32.cont [11/16] %v1534, 128
    %1631 = vxpose.xlu0.b32.cont [12/16] %v1535, 128
    %1632 = vxpose.xlu0.b32.cont [13/16] %v1536, 128
    %1633 = vxpose.xlu0.b32.cont [14/16] %v1537, 128
    %1634 = vxpose.xlu0.b32.cont [15/16] %v1538, 128
    %1635 = vxpose.xlu0.b32.end [16/16] %v1539, 128
    %v1636 = vpop.trf.xlu0
    %v1637 = vpop.trf.xlu0
    %v1638 = vpop.trf.xlu0
    %v1639 = vpop.trf.xlu0
    %v1640 = vpop.trf.xlu0
    %v1641 = vpop.trf.xlu0
    %v1642 = vpop.trf.xlu0
    %v1643 = vpop.trf.xlu0
    %v1644 = vpop.trf.xlu0
    %v1645 = vpop.trf.xlu0
    %v1646 = vpop.trf.xlu0
    %v1647 = vpop.trf.xlu0
    %v1648 = vpop.trf.xlu0
    %v1649 = vpop.trf.xlu0
    %v1650 = vpop.trf.xlu0
    %v1651 = vpop.trf.xlu0
    %1652 = vxpose.xlu0.b32.start [1/16] %v1540, 128
    %1653 = vxpose.xlu0.b32.cont [2/16] %v1541, 128
    %1654 = vxpose.xlu0.b32.cont [3/16] %v1542, 128
    %1655 = vxpose.xlu0.b32.cont [4/16] %v1543, 128
    %1656 = vxpose.xlu0.b32.cont [5/16] %v1544, 128
    %1657 = vxpose.xlu0.b32.cont [6/16] %v1545, 128
    %1658 = vxpose.xlu0.b32.cont [7/16] %v1546, 128
    %1659 = vxpose.xlu0.b32.cont [8/16] %v1547, 128
    %1660 = vxpose.xlu0.b32.cont [9/16] %v1548, 128
    %1661 = vxpose.xlu0.b32.cont [10/16] %v1549, 128
    %1662 = vxpose.xlu0.b32.cont [11/16] %v1550, 128
    %1663 = vxpose.xlu0.b32.cont [12/16] %v1551, 128
    %1664 = vxpose.xlu0.b32.cont [13/16] %v1552, 128
    %1665 = vxpose.xlu0.b32.cont [14/16] %v1553, 128
    %1666 = vxpose.xlu0.b32.cont [15/16] %v1554, 128
    %1667 = vxpose.xlu0.b32.end [16/16] %v1555, 128
    %v1668 = vpop.trf.xlu0
    %v1669 = vpop.trf.xlu0
    %v1670 = vpop.trf.xlu0
    %v1671 = vpop.trf.xlu0
    %v1672 = vpop.trf.xlu0
    %v1673 = vpop.trf.xlu0
    %v1674 = vpop.trf.xlu0
    %v1675 = vpop.trf.xlu0
    %v1676 = vpop.trf.xlu0
    %v1677 = vpop.trf.xlu0
    %v1678 = vpop.trf.xlu0
    %v1679 = vpop.trf.xlu0
    %v1680 = vpop.trf.xlu0
    %v1681 = vpop.trf.xlu0
    %v1682 = vpop.trf.xlu0
    %v1683 = vpop.trf.xlu0
    %v1684 = vlaneseq
    %v1685 = vshrl.u32 %v1684, 7
    %v1686 = vsub.s32 0, %v1685
    %v1687 = vrot.slane %v1636, %v1686
    %v1688 = vlaneseq
    %v1689 = vshrl.u32 %v1688, 7
    %v1690 = vsub.s32 0, %v1689
    %v1691 = vrot.slane %v1668, %v1690
    %v1692 = vadd.f32 %v1556, %v1687
    %v1693 = vadd.f32 %v1557, %v1691
    %v1694 = vadd.f32 %v1558, %v1687
    %v1695 = vadd.f32 %v1559, %v1691
    %v1696 = vadd.f32 %v1560, %v1687
    %v1697 = vadd.f32 %v1561, %v1691
    %v1698 = vadd.f32 %v1562, %v1687
    %v1699 = vadd.f32 %v1563, %v1691
    %v1700 = vadd.f32 %v1564, %v1687
    %v1701 = vadd.f32 %v1565, %v1691
    %v1702 = vadd.f32 %v1566, %v1687
    %v1703 = vadd.f32 %v1567, %v1691
    %v1704 = vadd.f32 %v1568, %v1687
    %v1705 = vadd.f32 %v1569, %v1691
    %v1706 = vadd.f32 %v1570, %v1687
    %v1707 = vadd.f32 %v1571, %v1691
    %v1708 = vadd.f32 %v1572, %v1687
    %v1709 = vadd.f32 %v1573, %v1691
    %v1710 = vadd.f32 %v1574, %v1687
    %v1711 = vadd.f32 %v1575, %v1691
    %v1712 = vadd.f32 %v1576, %v1687
    %v1713 = vadd.f32 %v1577, %v1691
    %v1714 = vadd.f32 %v1578, %v1687
    %v1715 = vadd.f32 %v1579, %v1691
    %v1716 = vadd.f32 %v1580, %v1687
    %v1717 = vadd.f32 %v1581, %v1691
    %v1718 = vadd.f32 %v1582, %v1687
    %v1719 = vadd.f32 %v1583, %v1691
    %v1720 = vadd.f32 %v1584, %v1687
    %v1721 = vadd.f32 %v1585, %v1691
    %v1722 = vadd.f32 %v1586, %v1687
    %v1723 = vadd.f32 %v1587, %v1691
    %v1724 = vadd.f32 %v1588, %v1687
    %v1725 = vadd.f32 %v1589, %v1691
    %v1726 = vadd.f32 %v1590, %v1687
    %v1727 = vadd.f32 %v1591, %v1691
    %v1728 = vadd.f32 %v1592, %v1687
    %v1729 = vadd.f32 %v1593, %v1691
    %v1730 = vadd.f32 %v1594, %v1687
    %v1731 = vadd.f32 %v1595, %v1691
    %v1732 = vadd.f32 %v1596, %v1687
    %v1733 = vadd.f32 %v1597, %v1691
    %v1734 = vadd.f32 %v1598, %v1687
    %v1735 = vadd.f32 %v1599, %v1691
    %v1736 = vadd.f32 %v1600, %v1687
    %v1737 = vadd.f32 %v1601, %v1691
    %v1738 = vadd.f32 %v1602, %v1687
    %v1739 = vadd.f32 %v1603, %v1691
    %v1740 = vadd.f32 %v1604, %v1687
    %v1741 = vadd.f32 %v1605, %v1691
    %v1742 = vadd.f32 %v1606, %v1687
    %v1743 = vadd.f32 %v1607, %v1691
    %v1744 = vadd.f32 %v1608, %v1687
    %v1745 = vadd.f32 %v1609, %v1691
    %v1746 = vadd.f32 %v1610, %v1687
    %v1747 = vadd.f32 %v1611, %v1691
    %v1748 = vadd.f32 %v1612, %v1687
    %v1749 = vadd.f32 %v1613, %v1691
    %v1750 = vadd.f32 %v1614, %v1687
    %v1751 = vadd.f32 %v1615, %v1691
    %v1752 = vadd.f32 %v1616, %v1687
    %v1753 = vadd.f32 %v1617, %v1691
    %v1754 = vadd.f32 %v1618, %v1687
    %v1755 = vadd.f32 %v1619, %v1691
    %v1756 = vmul.f32 %v103, %v103
    %v1757 = vmul.f32 %v104, %v104
    %v1758 = vmul.f32 %v105, %v105
    %v1759 = vmul.f32 %v106, %v106
    %v1760 = vmul.f32 %v107, %v107
    %v1761 = vmul.f32 %v108, %v108
    %v1762 = vmul.f32 %v109, %v109
    %v1763 = vmul.f32 %v110, %v110
    %v1764 = vmul.f32 %v111, %v111
    %v1765 = vmul.f32 %v112, %v112
    %v1766 = vmul.f32 %v113, %v113
    %v1767 = vmul.f32 %v114, %v114
    %v1768 = vmul.f32 %v115, %v115
    %v1769 = vmul.f32 %v116, %v116
    %v1770 = vmul.f32 %v117, %v117
    %v1771 = vmul.f32 %v118, %v118
    %v1772 = vmul.f32 %v119, %v119
    %v1773 = vmul.f32 %v120, %v120
    %v1774 = vmul.f32 %v121, %v121
    %v1775 = vmul.f32 %v122, %v122
    %v1776 = vmul.f32 %v123, %v123
    %v1777 = vmul.f32 %v124, %v124
    %v1778 = vmul.f32 %v125, %v125
    %v1779 = vmul.f32 %v126, %v126
    %v1780 = vmul.f32 %v127, %v127
    %v1781 = vmul.f32 %v128, %v128
    %v1782 = vmul.f32 %v129, %v129
    %v1783 = vmul.f32 %v130, %v130
    %v1784 = vmul.f32 %v131, %v131
    %v1785 = vmul.f32 %v132, %v132
    %v1786 = vmul.f32 %v133, %v133
    %v1787 = vmul.f32 %v134, %v134
    %1788 = vadd.xlane.f32.xlu0 %v1756
    %v1789 = vpop.xlane.xlu0 %1788
    %1790 = vadd.xlane.f32.xlu0 %v1757
    %v1791 = vpop.xlane.xlu0 %1790
    %1792 = vadd.xlane.f32.xlu0 %v1758
    %v1793 = vpop.xlane.xlu0 %1792
    %1794 = vadd.xlane.f32.xlu0 %v1759
    %v1795 = vpop.xlane.xlu0 %1794
    %1796 = vadd.xlane.f32.xlu0 %v1760
    %v1797 = vpop.xlane.xlu0 %1796
    %1798 = vadd.xlane.f32.xlu0 %v1761
    %v1799 = vpop.xlane.xlu0 %1798
    %1800 = vadd.xlane.f32.xlu0 %v1762
    %v1801 = vpop.xlane.xlu0 %1800
    %1802 = vadd.xlane.f32.xlu0 %v1763
    %v1803 = vpop.xlane.xlu0 %1802
    %1804 = vadd.xlane.f32.xlu0 %v1764
    %v1805 = vpop.xlane.xlu0 %1804
    %1806 = vadd.xlane.f32.xlu0 %v1765
    %v1807 = vpop.xlane.xlu0 %1806
    %1808 = vadd.xlane.f32.xlu0 %v1766
    %v1809 = vpop.xlane.xlu0 %1808
    %1810 = vadd.xlane.f32.xlu0 %v1767
    %v1811 = vpop.xlane.xlu0 %1810
    %1812 = vadd.xlane.f32.xlu0 %v1768
    %v1813 = vpop.xlane.xlu0 %1812
    %1814 = vadd.xlane.f32.xlu0 %v1769
    %v1815 = vpop.xlane.xlu0 %1814
    %1816 = vadd.xlane.f32.xlu0 %v1770
    %v1817 = vpop.xlane.xlu0 %1816
    %1818 = vadd.xlane.f32.xlu0 %v1771
    %v1819 = vpop.xlane.xlu0 %1818
    %1820 = vadd.xlane.f32.xlu0 %v1772
    %v1821 = vpop.xlane.xlu0 %1820
    %1822 = vadd.xlane.f32.xlu0 %v1773
    %v1823 = vpop.xlane.xlu0 %1822
    %1824 = vadd.xlane.f32.xlu0 %v1774
    %v1825 = vpop.xlane.xlu0 %1824
    %1826 = vadd.xlane.f32.xlu0 %v1775
    %v1827 = vpop.xlane.xlu0 %1826
    %1828 = vadd.xlane.f32.xlu0 %v1776
    %v1829 = vpop.xlane.xlu0 %1828
    %1830 = vadd.xlane.f32.xlu0 %v1777
    %v1831 = vpop.xlane.xlu0 %1830
    %1832 = vadd.xlane.f32.xlu0 %v1778
    %v1833 = vpop.xlane.xlu0 %1832
    %1834 = vadd.xlane.f32.xlu0 %v1779
    %v1835 = vpop.xlane.xlu0 %1834
    %1836 = vadd.xlane.f32.xlu0 %v1780
    %v1837 = vpop.xlane.xlu0 %1836
    %1838 = vadd.xlane.f32.xlu0 %v1781
    %v1839 = vpop.xlane.xlu0 %1838
    %1840 = vadd.xlane.f32.xlu0 %v1782
    %v1841 = vpop.xlane.xlu0 %1840
    %1842 = vadd.xlane.f32.xlu0 %v1783
    %v1843 = vpop.xlane.xlu0 %1842
    %1844 = vadd.xlane.f32.xlu0 %v1784
    %v1845 = vpop.xlane.xlu0 %1844
    %1846 = vadd.xlane.f32.xlu0 %v1785
    %v1847 = vpop.xlane.xlu0 %1846
    %1848 = vadd.xlane.f32.xlu0 %v1786
    %v1849 = vpop.xlane.xlu0 %1848
    %1850 = vadd.xlane.f32.xlu0 %v1787
    %v1851 = vpop.xlane.xlu0 %1850
    %1852 = vxpose.xlu0.b32.start [1/16] %v1789, 128
    %1853 = vxpose.xlu0.b32.cont [2/16] %v1791, 128
    %1854 = vxpose.xlu0.b32.cont [3/16] %v1793, 128
    %1855 = vxpose.xlu0.b32.cont [4/16] %v1795, 128
    %1856 = vxpose.xlu0.b32.cont [5/16] %v1797, 128
    %1857 = vxpose.xlu0.b32.cont [6/16] %v1799, 128
    %1858 = vxpose.xlu0.b32.cont [7/16] %v1801, 128
    %1859 = vxpose.xlu0.b32.cont [8/16] %v1803, 128
    %1860 = vxpose.xlu0.b32.cont [9/16] %v1805, 128
    %1861 = vxpose.xlu0.b32.cont [10/16] %v1807, 128
    %1862 = vxpose.xlu0.b32.cont [11/16] %v1809, 128
    %1863 = vxpose.xlu0.b32.cont [12/16] %v1811, 128
    %1864 = vxpose.xlu0.b32.cont [13/16] %v1813, 128
    %1865 = vxpose.xlu0.b32.cont [14/16] %v1815, 128
    %1866 = vxpose.xlu0.b32.cont [15/16] %v1817, 128
    %1867 = vxpose.xlu0.b32.end [16/16] %v1819, 128
    %v1868 = vpop.trf.xlu0
    %v1869 = vpop.trf.xlu0
    %v1870 = vpop.trf.xlu0
    %v1871 = vpop.trf.xlu0
    %v1872 = vpop.trf.xlu0
    %v1873 = vpop.trf.xlu0
    %v1874 = vpop.trf.xlu0
    %v1875 = vpop.trf.xlu0
    %v1876 = vpop.trf.xlu0
    %v1877 = vpop.trf.xlu0
    %v1878 = vpop.trf.xlu0
    %v1879 = vpop.trf.xlu0
    %v1880 = vpop.trf.xlu0
    %v1881 = vpop.trf.xlu0
    %v1882 = vpop.trf.xlu0
    %v1883 = vpop.trf.xlu0
    %1884 = vxpose.xlu0.b32.start [1/16] %v1821, 128
    %1885 = vxpose.xlu0.b32.cont [2/16] %v1823, 128
    %1886 = vxpose.xlu0.b32.cont [3/16] %v1825, 128
    %1887 = vxpose.xlu0.b32.cont [4/16] %v1827, 128
    %1888 = vxpose.xlu0.b32.cont [5/16] %v1829, 128
    %1889 = vxpose.xlu0.b32.cont [6/16] %v1831, 128
    %1890 = vxpose.xlu0.b32.cont [7/16] %v1833, 128
    %1891 = vxpose.xlu0.b32.cont [8/16] %v1835, 128
    %1892 = vxpose.xlu0.b32.cont [9/16] %v1837, 128
    %1893 = vxpose.xlu0.b32.cont [10/16] %v1839, 128
    %1894 = vxpose.xlu0.b32.cont [11/16] %v1841, 128
    %1895 = vxpose.xlu0.b32.cont [12/16] %v1843, 128
    %1896 = vxpose.xlu0.b32.cont [13/16] %v1845, 128
    %1897 = vxpose.xlu0.b32.cont [14/16] %v1847, 128
    %1898 = vxpose.xlu0.b32.cont [15/16] %v1849, 128
    %1899 = vxpose.xlu0.b32.end [16/16] %v1851, 128
    %v1900 = vpop.trf.xlu0
    %v1901 = vpop.trf.xlu0
    %v1902 = vpop.trf.xlu0
    %v1903 = vpop.trf.xlu0
    %v1904 = vpop.trf.xlu0
    %v1905 = vpop.trf.xlu0
    %v1906 = vpop.trf.xlu0
    %v1907 = vpop.trf.xlu0
    %v1908 = vpop.trf.xlu0
    %v1909 = vpop.trf.xlu0
    %v1910 = vpop.trf.xlu0
    %v1911 = vpop.trf.xlu0
    %v1912 = vpop.trf.xlu0
    %v1913 = vpop.trf.xlu0
    %v1914 = vpop.trf.xlu0
    %v1915 = vpop.trf.xlu0
    %1916 = vmatprep.subr.mxu0 0.0
    %1917 = vmatpush1.xpose.msra.mxu0 %v118
    %1918 = vmatprep.subr.mxu0 0.0
    %1919 = vmatpush1.xpose.msra.mxu0 %v117
    %1920 = vmatprep.subr.mxu0 0.0
    %1921 = vmatpush1.xpose.msra.mxu0 %v116
    %1922 = vmatprep.subr.mxu0 0.0
    %1923 = vmatpush1.xpose.msra.mxu0 %v115
    %1924 = vmatprep.subr.mxu0 0.0
    %1925 = vmatpush1.xpose.msra.mxu0 %v114
    %1926 = vmatprep.subr.mxu0 0.0
    %1927 = vmatpush1.xpose.msra.mxu0 %v113
    %1928 = vmatprep.subr.mxu0 0.0
    %1929 = vmatpush1.xpose.msra.mxu0 %v112
    %1930 = vmatprep.subr.mxu0 0.0
    %1931 = vmatpush1.xpose.msra.mxu0 %v111
    %1932 = vmatprep.subr.mxu0 0.0
    %1933 = vmatpush1.xpose.msra.mxu0 %v110
    %1934 = vmatprep.subr.mxu0 0.0
    %1935 = vmatpush1.xpose.msra.mxu0 %v109
    %1936 = vmatprep.subr.mxu0 0.0
    %1937 = vmatpush1.xpose.msra.mxu0 %v108
    %1938 = vmatprep.subr.mxu0 0.0
    %1939 = vmatpush1.xpose.msra.mxu0 %v107
    %1940 = vmatprep.subr.mxu0 0.0
    %1941 = vmatpush1.xpose.msra.mxu0 %v106
    %1942 = vmatprep.subr.mxu0 0.0
    %1943 = vmatpush1.xpose.msra.mxu0 %v105
    %1944 = vmatprep.subr.mxu0 0.0
    %1945 = vmatpush1.xpose.msra.mxu0 %v104
    %1946 = vmatprep.subr.mxu0 0.0
    %1947 = vmatpush1.xpose.msra.mxu0 %v103
    %1948 = vmatprep.subr.mxu0 0.0
    %1949 = vmatpush2.xpose.msra.mxu0 %v134
    %1950 = vmatprep.subr.mxu0 0.0
    %1951 = vmatpush2.xpose.msra.mxu0 %v133
    %1952 = vmatprep.subr.mxu0 0.0
    %1953 = vmatpush2.xpose.msra.mxu0 %v132
    %1954 = vmatprep.subr.mxu0 0.0
    %1955 = vmatpush2.xpose.msra.mxu0 %v131
    %1956 = vmatprep.subr.mxu0 0.0
    %1957 = vmatpush2.xpose.msra.mxu0 %v130
    %1958 = vmatprep.subr.mxu0 0.0
    %1959 = vmatpush2.xpose.msra.mxu0 %v129
    %1960 = vmatprep.subr.mxu0 0.0
    %1961 = vmatpush2.xpose.msra.mxu0 %v128
    %1962 = vmatprep.subr.mxu0 0.0
    %1963 = vmatpush2.xpose.msra.mxu0 %v127
    %1964 = vmatprep.subr.mxu0 0.0
    %1965 = vmatpush2.xpose.msra.mxu0 %v126
    %1966 = vmatprep.subr.mxu0 0.0
    %1967 = vmatpush2.xpose.msra.mxu0 %v125
    %1968 = vmatprep.subr.mxu0 0.0
    %1969 = vmatpush2.xpose.msra.mxu0 %v124
    %1970 = vmatprep.subr.mxu0 0.0
    %1971 = vmatpush2.xpose.msra.mxu0 %v123
    %1972 = vmatprep.subr.mxu0 0.0
    %1973 = vmatpush2.xpose.msra.mxu0 %v122
    %1974 = vmatprep.subr.mxu0 0.0
    %1975 = vmatpush2.xpose.msra.mxu0 %v121
    %1976 = vmatprep.subr.mxu0 0.0
    %1977 = vmatpush2.xpose.msra.mxu0 %v120
    %1978 = vmatprep.subr.mxu0 0.0
    %1979 = vmatpush2.xpose.msra.mxu0 %v119
    %1980 = vmatprep.mubr.f32.mxu0 0.0
    %1981 = vmatmul.mubr.f32.gmra.mxu0 %v103
    %v1982 = vpop.f32.mrf.mxu0
    %v1983 = vadd.f32 0.0, %v1982
    %v1984 = vpop.f32.mrf.mxu0
    %v1985 = vadd.f32 0.0, %v1984
    %1986 = vmatprep.mubr.f32.mxu0 0.0
    %1987 = vmatmul.mubr.f32.gmra.mxu0 %v104
    %v1988 = vpop.f32.mrf.mxu0
    %v1989 = vadd.f32 0.0, %v1988
    %v1990 = vpop.f32.mrf.mxu0
    %v1991 = vadd.f32 0.0, %v1990
    %1992 = vmatprep.mubr.f32.mxu0 0.0
    %1993 = vmatmul.mubr.f32.gmra.mxu0 %v105
    %v1994 = vpop.f32.mrf.mxu0
    %v1995 = vadd.f32 0.0, %v1994
    %v1996 = vpop.f32.mrf.mxu0
    %v1997 = vadd.f32 0.0, %v1996
    %1998 = vmatprep.mubr.f32.mxu0 0.0
    %1999 = vmatmul.mubr.f32.gmra.mxu0 %v106
    %v2000 = vpop.f32.mrf.mxu0
    %v2001 = vadd.f32 0.0, %v2000
    %v2002 = vpop.f32.mrf.mxu0
    %v2003 = vadd.f32 0.0, %v2002
    %2004 = vmatprep.mubr.f32.mxu0 0.0
    %2005 = vmatmul.mubr.f32.gmra.mxu0 %v107
    %v2006 = vpop.f32.mrf.mxu0
    %v2007 = vadd.f32 0.0, %v2006
    %v2008 = vpop.f32.mrf.mxu0
    %v2009 = vadd.f32 0.0, %v2008
    %2010 = vmatprep.mubr.f32.mxu0 0.0
    %2011 = vmatmul.mubr.f32.gmra.mxu0 %v108
    %v2012 = vpop.f32.mrf.mxu0
    %v2013 = vadd.f32 0.0, %v2012
    %v2014 = vpop.f32.mrf.mxu0
    %v2015 = vadd.f32 0.0, %v2014
    %2016 = vmatprep.mubr.f32.mxu0 0.0
    %2017 = vmatmul.mubr.f32.gmra.mxu0 %v109
    %v2018 = vpop.f32.mrf.mxu0
    %v2019 = vadd.f32 0.0, %v2018
    %v2020 = vpop.f32.mrf.mxu0
    %v2021 = vadd.f32 0.0, %v2020
    %2022 = vmatprep.mubr.f32.mxu0 0.0
    %2023 = vmatmul.mubr.f32.gmra.mxu0 %v110
    %v2024 = vpop.f32.mrf.mxu0
    %v2025 = vadd.f32 0.0, %v2024
    %v2026 = vpop.f32.mrf.mxu0
    %v2027 = vadd.f32 0.0, %v2026
    %2028 = vmatprep.mubr.f32.mxu0 0.0
    %2029 = vmatmul.mubr.f32.gmra.mxu0 %v111
    %v2030 = vpop.f32.mrf.mxu0
    %v2031 = vadd.f32 0.0, %v2030
    %v2032 = vpop.f32.mrf.mxu0
    %v2033 = vadd.f32 0.0, %v2032
    %2034 = vmatprep.mubr.f32.mxu0 0.0
    %2035 = vmatmul.mubr.f32.gmra.mxu0 %v112
    %v2036 = vpop.f32.mrf.mxu0
    %v2037 = vadd.f32 0.0, %v2036
    %v2038 = vpop.f32.mrf.mxu0
    %v2039 = vadd.f32 0.0, %v2038
    %2040 = vmatprep.mubr.f32.mxu0 0.0
    %2041 = vmatmul.mubr.f32.gmra.mxu0 %v113
    %v2042 = vpop.f32.mrf.mxu0
    %v2043 = vadd.f32 0.0, %v2042
    %v2044 = vpop.f32.mrf.mxu0
    %v2045 = vadd.f32 0.0, %v2044
    %2046 = vmatprep.mubr.f32.mxu0 0.0
    %2047 = vmatmul.mubr.f32.gmra.mxu0 %v114
    %v2048 = vpop.f32.mrf.mxu0
    %v2049 = vadd.f32 0.0, %v2048
    %v2050 = vpop.f32.mrf.mxu0
    %v2051 = vadd.f32 0.0, %v2050
    %2052 = vmatprep.mubr.f32.mxu0 0.0
    %2053 = vmatmul.mubr.f32.gmra.mxu0 %v115
    %v2054 = vpop.f32.mrf.mxu0
    %v2055 = vadd.f32 0.0, %v2054
    %v2056 = vpop.f32.mrf.mxu0
    %v2057 = vadd.f32 0.0, %v2056
    %2058 = vmatprep.mubr.f32.mxu0 0.0
    %2059 = vmatmul.mubr.f32.gmra.mxu0 %v116
    %v2060 = vpop.f32.mrf.mxu0
    %v2061 = vadd.f32 0.0, %v2060
    %v2062 = vpop.f32.mrf.mxu0
    %v2063 = vadd.f32 0.0, %v2062
    %2064 = vmatprep.mubr.f32.mxu0 0.0
    %2065 = vmatmul.mubr.f32.gmra.mxu0 %v117
    %v2066 = vpop.f32.mrf.mxu0
    %v2067 = vadd.f32 0.0, %v2066
    %v2068 = vpop.f32.mrf.mxu0
    %v2069 = vadd.f32 0.0, %v2068
    %2070 = vmatprep.mubr.f32.mxu0 0.0
    %2071 = vmatmul.mubr.f32.gmra.mxu0 %v118
    %v2072 = vpop.f32.mrf.mxu0
    %v2073 = vadd.f32 0.0, %v2072
    %v2074 = vpop.f32.mrf.mxu0
    %v2075 = vadd.f32 0.0, %v2074
    %2076 = vmatprep.mubr.f32.mxu0 0.0
    %2077 = vmatmul.mubr.f32.gmra.mxu0 %v119
    %v2078 = vpop.f32.mrf.mxu0
    %v2079 = vadd.f32 0.0, %v2078
    %v2080 = vpop.f32.mrf.mxu0
    %v2081 = vadd.f32 0.0, %v2080
    %2082 = vmatprep.mubr.f32.mxu0 0.0
    %2083 = vmatmul.mubr.f32.gmra.mxu0 %v120
    %v2084 = vpop.f32.mrf.mxu0
    %v2085 = vadd.f32 0.0, %v2084
    %v2086 = vpop.f32.mrf.mxu0
    %v2087 = vadd.f32 0.0, %v2086
    %2088 = vmatprep.mubr.f32.mxu0 0.0
    %2089 = vmatmul.mubr.f32.gmra.mxu0 %v121
    %v2090 = vpop.f32.mrf.mxu0
    %v2091 = vadd.f32 0.0, %v2090
    %v2092 = vpop.f32.mrf.mxu0
    %v2093 = vadd.f32 0.0, %v2092
    %2094 = vmatprep.mubr.f32.mxu0 0.0
    %2095 = vmatmul.mubr.f32.gmra.mxu0 %v122
    %v2096 = vpop.f32.mrf.mxu0
    %v2097 = vadd.f32 0.0, %v2096
    %v2098 = vpop.f32.mrf.mxu0
    %v2099 = vadd.f32 0.0, %v2098
    %2100 = vmatprep.mubr.f32.mxu0 0.0
    %2101 = vmatmul.mubr.f32.gmra.mxu0 %v123
    %v2102 = vpop.f32.mrf.mxu0
    %v2103 = vadd.f32 0.0, %v2102
    %v2104 = vpop.f32.mrf.mxu0
    %v2105 = vadd.f32 0.0, %v2104
    %2106 = vmatprep.mubr.f32.mxu0 0.0
    %2107 = vmatmul.mubr.f32.gmra.mxu0 %v124
    %v2108 = vpop.f32.mrf.mxu0
    %v2109 = vadd.f32 0.0, %v2108
    %v2110 = vpop.f32.mrf.mxu0
    %v2111 = vadd.f32 0.0, %v2110
    %2112 = vmatprep.mubr.f32.mxu0 0.0
    %2113 = vmatmul.mubr.f32.gmra.mxu0 %v125
    %v2114 = vpop.f32.mrf.mxu0
    %v2115 = vadd.f32 0.0, %v2114
    %v2116 = vpop.f32.mrf.mxu0
    %v2117 = vadd.f32 0.0, %v2116
    %2118 = vmatprep.mubr.f32.mxu0 0.0
    %2119 = vmatmul.mubr.f32.gmra.mxu0 %v126
    %v2120 = vpop.f32.mrf.mxu0
    %v2121 = vadd.f32 0.0, %v2120
    %v2122 = vpop.f32.mrf.mxu0
    %v2123 = vadd.f32 0.0, %v2122
    %2124 = vmatprep.mubr.f32.mxu0 0.0
    %2125 = vmatmul.mubr.f32.gmra.mxu0 %v127
    %v2126 = vpop.f32.mrf.mxu0
    %v2127 = vadd.f32 0.0, %v2126
    %v2128 = vpop.f32.mrf.mxu0
    %v2129 = vadd.f32 0.0, %v2128
    %2130 = vmatprep.mubr.f32.mxu0 0.0
    %2131 = vmatmul.mubr.f32.gmra.mxu0 %v128
    %v2132 = vpop.f32.mrf.mxu0
    %v2133 = vadd.f32 0.0, %v2132
    %v2134 = vpop.f32.mrf.mxu0
    %v2135 = vadd.f32 0.0, %v2134
    %2136 = vmatprep.mubr.f32.mxu0 0.0
    %2137 = vmatmul.mubr.f32.gmra.mxu0 %v129
    %v2138 = vpop.f32.mrf.mxu0
    %v2139 = vadd.f32 0.0, %v2138
    %v2140 = vpop.f32.mrf.mxu0
    %v2141 = vadd.f32 0.0, %v2140
    %2142 = vmatprep.mubr.f32.mxu0 0.0
    %2143 = vmatmul.mubr.f32.gmra.mxu0 %v130
    %v2144 = vpop.f32.mrf.mxu0
    %v2145 = vadd.f32 0.0, %v2144
    %v2146 = vpop.f32.mrf.mxu0
    %v2147 = vadd.f32 0.0, %v2146
    %2148 = vmatprep.mubr.f32.mxu0 0.0
    %2149 = vmatmul.mubr.f32.gmra.mxu0 %v131
    %v2150 = vpop.f32.mrf.mxu0
    %v2151 = vadd.f32 0.0, %v2150
    %v2152 = vpop.f32.mrf.mxu0
    %v2153 = vadd.f32 0.0, %v2152
    %2154 = vmatprep.mubr.f32.mxu0 0.0
    %2155 = vmatmul.mubr.f32.gmra.mxu0 %v132
    %v2156 = vpop.f32.mrf.mxu0
    %v2157 = vadd.f32 0.0, %v2156
    %v2158 = vpop.f32.mrf.mxu0
    %v2159 = vadd.f32 0.0, %v2158
    %2160 = vmatprep.mubr.f32.mxu0 0.0
    %2161 = vmatmul.mubr.f32.gmra.mxu0 %v133
    %v2162 = vpop.f32.mrf.mxu0
    %v2163 = vadd.f32 0.0, %v2162
    %v2164 = vpop.f32.mrf.mxu0
    %v2165 = vadd.f32 0.0, %v2164
    %2166 = vmatprep.mubr.f32.mxu0 0.0
    %2167 = vmatmul.mubr.f32.gmra.mxu0 %v134
    %v2168 = vpop.f32.mrf.mxu0
    %v2169 = vadd.f32 0.0, %v2168
    %v2170 = vpop.f32.mrf.mxu0
    %v2171 = vadd.f32 0.0, %v2170
    %2172 = vdwg.mxu0
    %v2173 = vlaneseq
    %v2174 = vshrl.u32 %v2173, 7
    %v2175 = vsub.s32 0, %v2174
    %v2176 = vrot.slane %v1868, %v2175
    %v2177 = vlaneseq
    %v2178 = vshrl.u32 %v2177, 7
    %v2179 = vsub.s32 0, %v2178
    %v2180 = vrot.slane %v1900, %v2179
    %v2181 = vadd.f32 %v1789, %v2176
    %v2182 = vadd.f32 %v1789, %v2180
    %v2183 = vadd.f32 %v1791, %v2176
    %v2184 = vadd.f32 %v1791, %v2180
    %v2185 = vadd.f32 %v1793, %v2176
    %v2186 = vadd.f32 %v1793, %v2180
    %v2187 = vadd.f32 %v1795, %v2176
    %v2188 = vadd.f32 %v1795, %v2180
    %v2189 = vadd.f32 %v1797, %v2176
    %v2190 = vadd.f32 %v1797, %v2180
    %v2191 = vadd.f32 %v1799, %v2176
    %v2192 = vadd.f32 %v1799, %v2180
    %v2193 = vadd.f32 %v1801, %v2176
    %v2194 = vadd.f32 %v1801, %v2180
    %v2195 = vadd.f32 %v1803, %v2176
    %v2196 = vadd.f32 %v1803, %v2180
    %v2197 = vadd.f32 %v1805, %v2176
    %v2198 = vadd.f32 %v1805, %v2180
    %v2199 = vadd.f32 %v1807, %v2176
    %v2200 = vadd.f32 %v1807, %v2180
    %v2201 = vadd.f32 %v1809, %v2176
    %v2202 = vadd.f32 %v1809, %v2180
    %v2203 = vadd.f32 %v1811, %v2176
    %v2204 = vadd.f32 %v1811, %v2180
    %v2205 = vadd.f32 %v1813, %v2176
    %v2206 = vadd.f32 %v1813, %v2180
    %v2207 = vadd.f32 %v1815, %v2176
    %v2208 = vadd.f32 %v1815, %v2180
    %v2209 = vadd.f32 %v1817, %v2176
    %v2210 = vadd.f32 %v1817, %v2180
    %v2211 = vadd.f32 %v1819, %v2176
    %v2212 = vadd.f32 %v1819, %v2180
    %v2213 = vadd.f32 %v1821, %v2176
    %v2214 = vadd.f32 %v1821, %v2180
    %v2215 = vadd.f32 %v1823, %v2176
    %v2216 = vadd.f32 %v1823, %v2180
    %v2217 = vadd.f32 %v1825, %v2176
    %v2218 = vadd.f32 %v1825, %v2180
    %v2219 = vadd.f32 %v1827, %v2176
    %v2220 = vadd.f32 %v1827, %v2180
    %v2221 = vadd.f32 %v1829, %v2176
    %v2222 = vadd.f32 %v1829, %v2180
    %v2223 = vadd.f32 %v1831, %v2176
    %v2224 = vadd.f32 %v1831, %v2180
    %v2225 = vadd.f32 %v1833, %v2176
    %v2226 = vadd.f32 %v1833, %v2180
    %v2227 = vadd.f32 %v1835, %v2176
    %v2228 = vadd.f32 %v1835, %v2180
    %v2229 = vadd.f32 %v1837, %v2176
    %v2230 = vadd.f32 %v1837, %v2180
    %v2231 = vadd.f32 %v1839, %v2176
    %v2232 = vadd.f32 %v1839, %v2180
    %v2233 = vadd.f32 %v1841, %v2176
    %v2234 = vadd.f32 %v1841, %v2180
    %v2235 = vadd.f32 %v1843, %v2176
    %v2236 = vadd.f32 %v1843, %v2180
    %v2237 = vadd.f32 %v1845, %v2176
    %v2238 = vadd.f32 %v1845, %v2180
    %v2239 = vadd.f32 %v1847, %v2176
    %v2240 = vadd.f32 %v1847, %v2180
    %v2241 = vadd.f32 %v1849, %v2176
    %v2242 = vadd.f32 %v1849, %v2180
    %v2243 = vadd.f32 %v1851, %v2176
    %v2244 = vadd.f32 %v1851, %v2180
    %v2245 = vmul.f32 %v1983, 2.0
    %v2246 = vmul.f32 %v1985, 2.0
    %v2247 = vmul.f32 %v1989, 2.0
    %v2248 = vmul.f32 %v1991, 2.0
    %v2249 = vmul.f32 %v1995, 2.0
    %v2250 = vmul.f32 %v1997, 2.0
    %v2251 = vmul.f32 %v2001, 2.0
    %v2252 = vmul.f32 %v2003, 2.0
    %v2253 = vmul.f32 %v2007, 2.0
    %v2254 = vmul.f32 %v2009, 2.0
    %v2255 = vmul.f32 %v2013, 2.0
    %v2256 = vmul.f32 %v2015, 2.0
    %v2257 = vmul.f32 %v2019, 2.0
    %v2258 = vmul.f32 %v2021, 2.0
    %v2259 = vmul.f32 %v2025, 2.0
    %v2260 = vmul.f32 %v2027, 2.0
    %v2261 = vmul.f32 %v2031, 2.0
    %v2262 = vmul.f32 %v2033, 2.0
    %v2263 = vmul.f32 %v2037, 2.0
    %v2264 = vmul.f32 %v2039, 2.0
    %v2265 = vmul.f32 %v2043, 2.0
    %v2266 = vmul.f32 %v2045, 2.0
    %v2267 = vmul.f32 %v2049, 2.0
    %v2268 = vmul.f32 %v2051, 2.0
    %v2269 = vmul.f32 %v2055, 2.0
    %v2270 = vmul.f32 %v2057, 2.0
    %v2271 = vmul.f32 %v2061, 2.0
    %v2272 = vmul.f32 %v2063, 2.0
    %v2273 = vmul.f32 %v2067, 2.0
    %v2274 = vmul.f32 %v2069, 2.0
    %v2275 = vmul.f32 %v2073, 2.0
    %v2276 = vmul.f32 %v2075, 2.0
    %v2277 = vmul.f32 %v2079, 2.0
    %v2278 = vmul.f32 %v2081, 2.0
    %v2279 = vmul.f32 %v2085, 2.0
    %v2280 = vmul.f32 %v2087, 2.0
    %v2281 = vmul.f32 %v2091, 2.0
    %v2282 = vmul.f32 %v2093, 2.0
    %v2283 = vmul.f32 %v2097, 2.0
    %v2284 = vmul.f32 %v2099, 2.0
    %v2285 = vmul.f32 %v2103, 2.0
    %v2286 = vmul.f32 %v2105, 2.0
    %v2287 = vmul.f32 %v2109, 2.0
    %v2288 = vmul.f32 %v2111, 2.0
    %v2289 = vmul.f32 %v2115, 2.0
    %v2290 = vmul.f32 %v2117, 2.0
    %v2291 = vmul.f32 %v2121, 2.0
    %v2292 = vmul.f32 %v2123, 2.0
    %v2293 = vmul.f32 %v2127, 2.0
    %v2294 = vmul.f32 %v2129, 2.0
    %v2295 = vmul.f32 %v2133, 2.0
    %v2296 = vmul.f32 %v2135, 2.0
    %v2297 = vmul.f32 %v2139, 2.0
    %v2298 = vmul.f32 %v2141, 2.0
    %v2299 = vmul.f32 %v2145, 2.0
    %v2300 = vmul.f32 %v2147, 2.0
    %v2301 = vmul.f32 %v2151, 2.0
    %v2302 = vmul.f32 %v2153, 2.0
    %v2303 = vmul.f32 %v2157, 2.0
    %v2304 = vmul.f32 %v2159, 2.0
    %v2305 = vmul.f32 %v2163, 2.0
    %v2306 = vmul.f32 %v2165, 2.0
    %v2307 = vmul.f32 %v2169, 2.0
    %v2308 = vmul.f32 %v2171, 2.0
    %v2309 = vsub.f32 %v2181, %v2245
    %v2310 = vsub.f32 %v2182, %v2246
    %v2311 = vsub.f32 %v2183, %v2247
    %v2312 = vsub.f32 %v2184, %v2248
    %v2313 = vsub.f32 %v2185, %v2249
    %v2314 = vsub.f32 %v2186, %v2250
    %v2315 = vsub.f32 %v2187, %v2251
    %v2316 = vsub.f32 %v2188, %v2252
    %v2317 = vsub.f32 %v2189, %v2253
    %v2318 = vsub.f32 %v2190, %v2254
    %v2319 = vsub.f32 %v2191, %v2255
    %v2320 = vsub.f32 %v2192, %v2256
    %v2321 = vsub.f32 %v2193, %v2257
    %v2322 = vsub.f32 %v2194, %v2258
    %v2323 = vsub.f32 %v2195, %v2259
    %v2324 = vsub.f32 %v2196, %v2260
    %v2325 = vsub.f32 %v2197, %v2261
    %v2326 = vsub.f32 %v2198, %v2262
    %v2327 = vsub.f32 %v2199, %v2263
    %v2328 = vsub.f32 %v2200, %v2264
    %v2329 = vsub.f32 %v2201, %v2265
    %v2330 = vsub.f32 %v2202, %v2266
    %v2331 = vsub.f32 %v2203, %v2267
    %v2332 = vsub.f32 %v2204, %v2268
    %v2333 = vsub.f32 %v2205, %v2269
    %v2334 = vsub.f32 %v2206, %v2270
    %v2335 = vsub.f32 %v2207, %v2271
    %v2336 = vsub.f32 %v2208, %v2272
    %v2337 = vsub.f32 %v2209, %v2273
    %v2338 = vsub.f32 %v2210, %v2274
    %v2339 = vsub.f32 %v2211, %v2275
    %v2340 = vsub.f32 %v2212, %v2276
    %v2341 = vsub.f32 %v2213, %v2277
    %v2342 = vsub.f32 %v2214, %v2278
    %v2343 = vsub.f32 %v2215, %v2279
    %v2344 = vsub.f32 %v2216, %v2280
    %v2345 = vsub.f32 %v2217, %v2281
    %v2346 = vsub.f32 %v2218, %v2282
    %v2347 = vsub.f32 %v2219, %v2283
    %v2348 = vsub.f32 %v2220, %v2284
    %v2349 = vsub.f32 %v2221, %v2285
    %v2350 = vsub.f32 %v2222, %v2286
    %v2351 = vsub.f32 %v2223, %v2287
    %v2352 = vsub.f32 %v2224, %v2288
    %v2353 = vsub.f32 %v2225, %v2289
    %v2354 = vsub.f32 %v2226, %v2290
    %v2355 = vsub.f32 %v2227, %v2291
    %v2356 = vsub.f32 %v2228, %v2292
    %v2357 = vsub.f32 %v2229, %v2293
    %v2358 = vsub.f32 %v2230, %v2294
    %v2359 = vsub.f32 %v2231, %v2295
    %v2360 = vsub.f32 %v2232, %v2296
    %v2361 = vsub.f32 %v2233, %v2297
    %v2362 = vsub.f32 %v2234, %v2298
    %v2363 = vsub.f32 %v2235, %v2299
    %v2364 = vsub.f32 %v2236, %v2300
    %v2365 = vsub.f32 %v2237, %v2301
    %v2366 = vsub.f32 %v2238, %v2302
    %v2367 = vsub.f32 %v2239, %v2303
    %v2368 = vsub.f32 %v2240, %v2304
    %v2369 = vsub.f32 %v2241, %v2305
    %v2370 = vsub.f32 %v2242, %v2306
    %v2371 = vsub.f32 %v2243, %v2307
    %v2372 = vsub.f32 %v2244, %v2308
    %v2373 = vmax.f32 %v2309, 0.0
    %v2374 = vmax.f32 %v2310, 0.0
    %v2375 = vmax.f32 %v2311, 0.0
    %v2376 = vmax.f32 %v2312, 0.0
    %v2377 = vmax.f32 %v2313, 0.0
    %v2378 = vmax.f32 %v2314, 0.0
    %v2379 = vmax.f32 %v2315, 0.0
    %v2380 = vmax.f32 %v2316, 0.0
    %v2381 = vmax.f32 %v2317, 0.0
    %v2382 = vmax.f32 %v2318, 0.0
    %v2383 = vmax.f32 %v2319, 0.0
    %v2384 = vmax.f32 %v2320, 0.0
    %v2385 = vmax.f32 %v2321, 0.0
    %v2386 = vmax.f32 %v2322, 0.0
    %v2387 = vmax.f32 %v2323, 0.0
    %v2388 = vmax.f32 %v2324, 0.0
    %v2389 = vmax.f32 %v2325, 0.0
    %v2390 = vmax.f32 %v2326, 0.0
    %v2391 = vmax.f32 %v2327, 0.0
    %v2392 = vmax.f32 %v2328, 0.0
    %v2393 = vmax.f32 %v2329, 0.0
    %v2394 = vmax.f32 %v2330, 0.0
    %v2395 = vmax.f32 %v2331, 0.0
    %v2396 = vmax.f32 %v2332, 0.0
    %v2397 = vmax.f32 %v2333, 0.0
    %v2398 = vmax.f32 %v2334, 0.0
    %v2399 = vmax.f32 %v2335, 0.0
    %v2400 = vmax.f32 %v2336, 0.0
    %v2401 = vmax.f32 %v2337, 0.0
    %v2402 = vmax.f32 %v2338, 0.0
    %v2403 = vmax.f32 %v2339, 0.0
    %v2404 = vmax.f32 %v2340, 0.0
    %v2405 = vmax.f32 %v2341, 0.0
    %v2406 = vmax.f32 %v2342, 0.0
    %v2407 = vmax.f32 %v2343, 0.0
    %v2408 = vmax.f32 %v2344, 0.0
    %v2409 = vmax.f32 %v2345, 0.0
    %v2410 = vmax.f32 %v2346, 0.0
    %v2411 = vmax.f32 %v2347, 0.0
    %v2412 = vmax.f32 %v2348, 0.0
    %v2413 = vmax.f32 %v2349, 0.0
    %v2414 = vmax.f32 %v2350, 0.0
    %v2415 = vmax.f32 %v2351, 0.0
    %v2416 = vmax.f32 %v2352, 0.0
    %v2417 = vmax.f32 %v2353, 0.0
    %v2418 = vmax.f32 %v2354, 0.0
    %v2419 = vmax.f32 %v2355, 0.0
    %v2420 = vmax.f32 %v2356, 0.0
    %v2421 = vmax.f32 %v2357, 0.0
    %v2422 = vmax.f32 %v2358, 0.0
    %v2423 = vmax.f32 %v2359, 0.0
    %v2424 = vmax.f32 %v2360, 0.0
    %v2425 = vmax.f32 %v2361, 0.0
    %v2426 = vmax.f32 %v2362, 0.0
    %v2427 = vmax.f32 %v2363, 0.0
    %v2428 = vmax.f32 %v2364, 0.0
    %v2429 = vmax.f32 %v2365, 0.0
    %v2430 = vmax.f32 %v2366, 0.0
    %v2431 = vmax.f32 %v2367, 0.0
    %v2432 = vmax.f32 %v2368, 0.0
    %v2433 = vmax.f32 %v2369, 0.0
    %v2434 = vmax.f32 %v2370, 0.0
    %v2435 = vmax.f32 %v2371, 0.0
    %v2436 = vmax.f32 %v2372, 0.0
    %v2437 = vmul.f32 %v1692, 0.01
    %v2438 = vmul.f32 %v1693, 0.01
    %v2439 = vmul.f32 %v1694, 0.01
    %v2440 = vmul.f32 %v1695, 0.01
    %v2441 = vmul.f32 %v1696, 0.01
    %v2442 = vmul.f32 %v1697, 0.01
    %v2443 = vmul.f32 %v1698, 0.01
    %v2444 = vmul.f32 %v1699, 0.01
    %v2445 = vmul.f32 %v1700, 0.01
    %v2446 = vmul.f32 %v1701, 0.01
    %v2447 = vmul.f32 %v1702, 0.01
    %v2448 = vmul.f32 %v1703, 0.01
    %v2449 = vmul.f32 %v1704, 0.01
    %v2450 = vmul.f32 %v1705, 0.01
    %v2451 = vmul.f32 %v1706, 0.01
    %v2452 = vmul.f32 %v1707, 0.01
    %v2453 = vmul.f32 %v1708, 0.01
    %v2454 = vmul.f32 %v1709, 0.01
    %v2455 = vmul.f32 %v1710, 0.01
    %v2456 = vmul.f32 %v1711, 0.01
    %v2457 = vmul.f32 %v1712, 0.01
    %v2458 = vmul.f32 %v1713, 0.01
    %v2459 = vmul.f32 %v1714, 0.01
    %v2460 = vmul.f32 %v1715, 0.01
    %v2461 = vmul.f32 %v1716, 0.01
    %v2462 = vmul.f32 %v1717, 0.01
    %v2463 = vmul.f32 %v1718, 0.01
    %v2464 = vmul.f32 %v1719, 0.01
    %v2465 = vmul.f32 %v1720, 0.01
    %v2466 = vmul.f32 %v1721, 0.01
    %v2467 = vmul.f32 %v1722, 0.01
    %v2468 = vmul.f32 %v1723, 0.01
    %v2469 = vmul.f32 %v1724, 0.01
    %v2470 = vmul.f32 %v1725, 0.01
    %v2471 = vmul.f32 %v1726, 0.01
    %v2472 = vmul.f32 %v1727, 0.01
    %v2473 = vmul.f32 %v1728, 0.01
    %v2474 = vmul.f32 %v1729, 0.01
    %v2475 = vmul.f32 %v1730, 0.01
    %v2476 = vmul.f32 %v1731, 0.01
    %v2477 = vmul.f32 %v1732, 0.01
    %v2478 = vmul.f32 %v1733, 0.01
    %v2479 = vmul.f32 %v1734, 0.01
    %v2480 = vmul.f32 %v1735, 0.01
    %v2481 = vmul.f32 %v1736, 0.01
    %v2482 = vmul.f32 %v1737, 0.01
    %v2483 = vmul.f32 %v1738, 0.01
    %v2484 = vmul.f32 %v1739, 0.01
    %v2485 = vmul.f32 %v1740, 0.01
    %v2486 = vmul.f32 %v1741, 0.01
    %v2487 = vmul.f32 %v1742, 0.01
    %v2488 = vmul.f32 %v1743, 0.01
    %v2489 = vmul.f32 %v1744, 0.01
    %v2490 = vmul.f32 %v1745, 0.01
    %v2491 = vmul.f32 %v1746, 0.01
    %v2492 = vmul.f32 %v1747, 0.01
    %v2493 = vmul.f32 %v1748, 0.01
    %v2494 = vmul.f32 %v1749, 0.01
    %v2495 = vmul.f32 %v1750, 0.01
    %v2496 = vmul.f32 %v1751, 0.01
    %v2497 = vmul.f32 %v1752, 0.01
    %v2498 = vmul.f32 %v1753, 0.01
    %v2499 = vmul.f32 %v1754, 0.01
    %v2500 = vmul.f32 %v1755, 0.01
    %v2501 = vadd.f32 %v2437, 1.0
    %v2502 = vadd.f32 %v2438, 1.0
    %v2503 = vadd.f32 %v2439, 1.0
    %v2504 = vadd.f32 %v2440, 1.0
    %v2505 = vadd.f32 %v2441, 1.0
    %v2506 = vadd.f32 %v2442, 1.0
    %v2507 = vadd.f32 %v2443, 1.0
    %v2508 = vadd.f32 %v2444, 1.0
    %v2509 = vadd.f32 %v2445, 1.0
    %v2510 = vadd.f32 %v2446, 1.0
    %v2511 = vadd.f32 %v2447, 1.0
    %v2512 = vadd.f32 %v2448, 1.0
    %v2513 = vadd.f32 %v2449, 1.0
    %v2514 = vadd.f32 %v2450, 1.0
    %v2515 = vadd.f32 %v2451, 1.0
    %v2516 = vadd.f32 %v2452, 1.0
    %v2517 = vadd.f32 %v2453, 1.0
    %v2518 = vadd.f32 %v2454, 1.0
    %v2519 = vadd.f32 %v2455, 1.0
    %v2520 = vadd.f32 %v2456, 1.0
    %v2521 = vadd.f32 %v2457, 1.0
    %v2522 = vadd.f32 %v2458, 1.0
    %v2523 = vadd.f32 %v2459, 1.0
    %v2524 = vadd.f32 %v2460, 1.0
    %v2525 = vadd.f32 %v2461, 1.0
    %v2526 = vadd.f32 %v2462, 1.0
    %v2527 = vadd.f32 %v2463, 1.0
    %v2528 = vadd.f32 %v2464, 1.0
    %v2529 = vadd.f32 %v2465, 1.0
    %v2530 = vadd.f32 %v2466, 1.0
    %v2531 = vadd.f32 %v2467, 1.0
    %v2532 = vadd.f32 %v2468, 1.0
    %v2533 = vadd.f32 %v2469, 1.0
    %v2534 = vadd.f32 %v2470, 1.0
    %v2535 = vadd.f32 %v2471, 1.0
    %v2536 = vadd.f32 %v2472, 1.0
    %v2537 = vadd.f32 %v2473, 1.0
    %v2538 = vadd.f32 %v2474, 1.0
    %v2539 = vadd.f32 %v2475, 1.0
    %v2540 = vadd.f32 %v2476, 1.0
    %v2541 = vadd.f32 %v2477, 1.0
    %v2542 = vadd.f32 %v2478, 1.0
    %v2543 = vadd.f32 %v2479, 1.0
    %v2544 = vadd.f32 %v2480, 1.0
    %v2545 = vadd.f32 %v2481, 1.0
    %v2546 = vadd.f32 %v2482, 1.0
    %v2547 = vadd.f32 %v2483, 1.0
    %v2548 = vadd.f32 %v2484, 1.0
    %v2549 = vadd.f32 %v2485, 1.0
    %v2550 = vadd.f32 %v2486, 1.0
    %v2551 = vadd.f32 %v2487, 1.0
    %v2552 = vadd.f32 %v2488, 1.0
    %v2553 = vadd.f32 %v2489, 1.0
    %v2554 = vadd.f32 %v2490, 1.0
    %v2555 = vadd.f32 %v2491, 1.0
    %v2556 = vadd.f32 %v2492, 1.0
    %v2557 = vadd.f32 %v2493, 1.0
    %v2558 = vadd.f32 %v2494, 1.0
    %v2559 = vadd.f32 %v2495, 1.0
    %v2560 = vadd.f32 %v2496, 1.0
    %v2561 = vadd.f32 %v2497, 1.0
    %v2562 = vadd.f32 %v2498, 1.0
    %v2563 = vadd.f32 %v2499, 1.0
    %v2564 = vadd.f32 %v2500, 1.0
    %v2565 = vlog2.pop %v2501
    %v2566 = vmul.f32 %v2565, 0.6931472
    %v2567 = vlog2.pop %v2502
    %v2568 = vmul.f32 %v2567, 0.6931472
    %v2569 = vlog2.pop %v2503
    %v2570 = vmul.f32 %v2569, 0.6931472
    %v2571 = vlog2.pop %v2504
    %v2572 = vmul.f32 %v2571, 0.6931472
    %v2573 = vlog2.pop %v2505
    %v2574 = vmul.f32 %v2573, 0.6931472
    %v2575 = vlog2.pop %v2506
    %v2576 = vmul.f32 %v2575, 0.6931472
    %v2577 = vlog2.pop %v2507
    %v2578 = vmul.f32 %v2577, 0.6931472
    %v2579 = vlog2.pop %v2508
    %v2580 = vmul.f32 %v2579, 0.6931472
    %v2581 = vlog2.pop %v2509
    %v2582 = vmul.f32 %v2581, 0.6931472
    %v2583 = vlog2.pop %v2510
    %v2584 = vmul.f32 %v2583, 0.6931472
    %v2585 = vlog2.pop %v2511
    %v2586 = vmul.f32 %v2585, 0.6931472
    %v2587 = vlog2.pop %v2512
    %v2588 = vmul.f32 %v2587, 0.6931472
    %v2589 = vlog2.pop %v2513
    %v2590 = vmul.f32 %v2589, 0.6931472
    %v2591 = vlog2.pop %v2514
    %v2592 = vmul.f32 %v2591, 0.6931472
    %v2593 = vlog2.pop %v2515
    %v2594 = vmul.f32 %v2593, 0.6931472
    %v2595 = vlog2.pop %v2516
    %v2596 = vmul.f32 %v2595, 0.6931472
    %v2597 = vlog2.pop %v2517
    %v2598 = vmul.f32 %v2597, 0.6931472
    %v2599 = vlog2.pop %v2518
    %v2600 = vmul.f32 %v2599, 0.6931472
    %v2601 = vlog2.pop %v2519
    %v2602 = vmul.f32 %v2601, 0.6931472
    %v2603 = vlog2.pop %v2520
    %v2604 = vmul.f32 %v2603, 0.6931472
    %v2605 = vlog2.pop %v2521
    %v2606 = vmul.f32 %v2605, 0.6931472
    %v2607 = vlog2.pop %v2522
    %v2608 = vmul.f32 %v2607, 0.6931472
    %v2609 = vlog2.pop %v2523
    %v2610 = vmul.f32 %v2609, 0.6931472
    %v2611 = vlog2.pop %v2524
    %v2612 = vmul.f32 %v2611, 0.6931472
    %v2613 = vlog2.pop %v2525
    %v2614 = vmul.f32 %v2613, 0.6931472
    %v2615 = vlog2.pop %v2526
    %v2616 = vmul.f32 %v2615, 0.6931472
    %v2617 = vlog2.pop %v2527
    %v2618 = vmul.f32 %v2617, 0.6931472
    %v2619 = vlog2.pop %v2528
    %v2620 = vmul.f32 %v2619, 0.6931472
    %v2621 = vlog2.pop %v2529
    %v2622 = vmul.f32 %v2621, 0.6931472
    %v2623 = vlog2.pop %v2530
    %v2624 = vmul.f32 %v2623, 0.6931472
    %v2625 = vlog2.pop %v2531
    %v2626 = vmul.f32 %v2625, 0.6931472
    %v2627 = vlog2.pop %v2532
    %v2628 = vmul.f32 %v2627, 0.6931472
    %v2629 = vlog2.pop %v2533
    %v2630 = vmul.f32 %v2629, 0.6931472
    %v2631 = vlog2.pop %v2534
    %v2632 = vmul.f32 %v2631, 0.6931472
    %v2633 = vlog2.pop %v2535
    %v2634 = vmul.f32 %v2633, 0.6931472
    %v2635 = vlog2.pop %v2536
    %v2636 = vmul.f32 %v2635, 0.6931472
    %v2637 = vlog2.pop %v2537
    %v2638 = vmul.f32 %v2637, 0.6931472
    %v2639 = vlog2.pop %v2538
    %v2640 = vmul.f32 %v2639, 0.6931472
    %v2641 = vlog2.pop %v2539
    %v2642 = vmul.f32 %v2641, 0.6931472
    %v2643 = vlog2.pop %v2540
    %v2644 = vmul.f32 %v2643, 0.6931472
    %v2645 = vlog2.pop %v2541
    %v2646 = vmul.f32 %v2645, 0.6931472
    %v2647 = vlog2.pop %v2542
    %v2648 = vmul.f32 %v2647, 0.6931472
    %v2649 = vlog2.pop %v2543
    %v2650 = vmul.f32 %v2649, 0.6931472
    %v2651 = vlog2.pop %v2544
    %v2652 = vmul.f32 %v2651, 0.6931472
    %v2653 = vlog2.pop %v2545
    %v2654 = vmul.f32 %v2653, 0.6931472
    %v2655 = vlog2.pop %v2546
    %v2656 = vmul.f32 %v2655, 0.6931472
    %v2657 = vlog2.pop %v2547
    %v2658 = vmul.f32 %v2657, 0.6931472
    %v2659 = vlog2.pop %v2548
    %v2660 = vmul.f32 %v2659, 0.6931472
    %v2661 = vlog2.pop %v2549
    %v2662 = vmul.f32 %v2661, 0.6931472
    %v2663 = vlog2.pop %v2550
    %v2664 = vmul.f32 %v2663, 0.6931472
    %v2665 = vlog2.pop %v2551
    %v2666 = vmul.f32 %v2665, 0.6931472
    %v2667 = vlog2.pop %v2552
    %v2668 = vmul.f32 %v2667, 0.6931472
    %v2669 = vlog2.pop %v2553
    %v2670 = vmul.f32 %v2669, 0.6931472
    %v2671 = vlog2.pop %v2554
    %v2672 = vmul.f32 %v2671, 0.6931472
    %v2673 = vlog2.pop %v2555
    %v2674 = vmul.f32 %v2673, 0.6931472
    %v2675 = vlog2.pop %v2556
    %v2676 = vmul.f32 %v2675, 0.6931472
    %v2677 = vlog2.pop %v2557
    %v2678 = vmul.f32 %v2677, 0.6931472
    %v2679 = vlog2.pop %v2558
    %v2680 = vmul.f32 %v2679, 0.6931472
    %v2681 = vlog2.pop %v2559
    %v2682 = vmul.f32 %v2681, 0.6931472
    %v2683 = vlog2.pop %v2560
    %v2684 = vmul.f32 %v2683, 0.6931472
    %v2685 = vlog2.pop %v2561
    %v2686 = vmul.f32 %v2685, 0.6931472
    %v2687 = vlog2.pop %v2562
    %v2688 = vmul.f32 %v2687, 0.6931472
    %v2689 = vlog2.pop %v2563
    %v2690 = vmul.f32 %v2689, 0.6931472
    %v2691 = vlog2.pop %v2564
    %v2692 = vmul.f32 %v2691, 0.6931472
    %v2693 = vmul.f32 %v2566, -50.5
    %v2694 = vmul.f32 %v2568, -50.5
    %v2695 = vmul.f32 %v2570, -50.5
    %v2696 = vmul.f32 %v2572, -50.5
    %v2697 = vmul.f32 %v2574, -50.5
    %v2698 = vmul.f32 %v2576, -50.5
    %v2699 = vmul.f32 %v2578, -50.5
    %v2700 = vmul.f32 %v2580, -50.5
    %v2701 = vmul.f32 %v2582, -50.5
    %v2702 = vmul.f32 %v2584, -50.5
    %v2703 = vmul.f32 %v2586, -50.5
    %v2704 = vmul.f32 %v2588, -50.5
    %v2705 = vmul.f32 %v2590, -50.5
    %v2706 = vmul.f32 %v2592, -50.5
    %v2707 = vmul.f32 %v2594, -50.5
    %v2708 = vmul.f32 %v2596, -50.5
    %v2709 = vmul.f32 %v2598, -50.5
    %v2710 = vmul.f32 %v2600, -50.5
    %v2711 = vmul.f32 %v2602, -50.5
    %v2712 = vmul.f32 %v2604, -50.5
    %v2713 = vmul.f32 %v2606, -50.5
    %v2714 = vmul.f32 %v2608, -50.5
    %v2715 = vmul.f32 %v2610, -50.5
    %v2716 = vmul.f32 %v2612, -50.5
    %v2717 = vmul.f32 %v2614, -50.5
    %v2718 = vmul.f32 %v2616, -50.5
    %v2719 = vmul.f32 %v2618, -50.5
    %v2720 = vmul.f32 %v2620, -50.5
    %v2721 = vmul.f32 %v2622, -50.5
    %v2722 = vmul.f32 %v2624, -50.5
    %v2723 = vmul.f32 %v2626, -50.5
    %v2724 = vmul.f32 %v2628, -50.5
    %v2725 = vmul.f32 %v2630, -50.5
    %v2726 = vmul.f32 %v2632, -50.5
    %v2727 = vmul.f32 %v2634, -50.5
    %v2728 = vmul.f32 %v2636, -50.5
    %v2729 = vmul.f32 %v2638, -50.5
    %v2730 = vmul.f32 %v2640, -50.5
    %v2731 = vmul.f32 %v2642, -50.5
    %v2732 = vmul.f32 %v2644, -50.5
    %v2733 = vmul.f32 %v2646, -50.5
    %v2734 = vmul.f32 %v2648, -50.5
    %v2735 = vmul.f32 %v2650, -50.5
    %v2736 = vmul.f32 %v2652, -50.5
    %v2737 = vmul.f32 %v2654, -50.5
    %v2738 = vmul.f32 %v2656, -50.5
    %v2739 = vmul.f32 %v2658, -50.5
    %v2740 = vmul.f32 %v2660, -50.5
    %v2741 = vmul.f32 %v2662, -50.5
    %v2742 = vmul.f32 %v2664, -50.5
    %v2743 = vmul.f32 %v2666, -50.5
    %v2744 = vmul.f32 %v2668, -50.5
    %v2745 = vmul.f32 %v2670, -50.5
    %v2746 = vmul.f32 %v2672, -50.5
    %v2747 = vmul.f32 %v2674, -50.5
    %v2748 = vmul.f32 %v2676, -50.5
    %v2749 = vmul.f32 %v2678, -50.5
    %v2750 = vmul.f32 %v2680, -50.5
    %v2751 = vmul.f32 %v2682, -50.5
    %v2752 = vmul.f32 %v2684, -50.5
    %v2753 = vmul.f32 %v2686, -50.5
    %v2754 = vmul.f32 %v2688, -50.5
    %v2755 = vmul.f32 %v2690, -50.5
    %v2756 = vmul.f32 %v2692, -50.5
    %v2757 = vmul.f32 %v2693, 1.442695
    %v2758 = vpow.pop %v2757
    %v2759 = vmul.f32 %v2694, 1.442695
    %v2760 = vpow.pop %v2759
    %v2761 = vmul.f32 %v2695, 1.442695
    %v2762 = vpow.pop %v2761
    %v2763 = vmul.f32 %v2696, 1.442695
    %v2764 = vpow.pop %v2763
    %v2765 = vmul.f32 %v2697, 1.442695
    %v2766 = vpow.pop %v2765
    %v2767 = vmul.f32 %v2698, 1.442695
    %v2768 = vpow.pop %v2767
    %v2769 = vmul.f32 %v2699, 1.442695
    %v2770 = vpow.pop %v2769
    %v2771 = vmul.f32 %v2700, 1.442695
    %v2772 = vpow.pop %v2771
    %v2773 = vmul.f32 %v2701, 1.442695
    %v2774 = vpow.pop %v2773
    %v2775 = vmul.f32 %v2702, 1.442695
    %v2776 = vpow.pop %v2775
    %v2777 = vmul.f32 %v2703, 1.442695
    %v2778 = vpow.pop %v2777
    %v2779 = vmul.f32 %v2704, 1.442695
    %v2780 = vpow.pop %v2779
    %v2781 = vmul.f32 %v2705, 1.442695
    %v2782 = vpow.pop %v2781
    %v2783 = vmul.f32 %v2706, 1.442695
    %v2784 = vpow.pop %v2783
    %v2785 = vmul.f32 %v2707, 1.442695
    %v2786 = vpow.pop %v2785
    %v2787 = vmul.f32 %v2708, 1.442695
    %v2788 = vpow.pop %v2787
    %v2789 = vmul.f32 %v2709, 1.442695
    %v2790 = vpow.pop %v2789
    %v2791 = vmul.f32 %v2710, 1.442695
    %v2792 = vpow.pop %v2791
    %v2793 = vmul.f32 %v2711, 1.442695
    %v2794 = vpow.pop %v2793
    %v2795 = vmul.f32 %v2712, 1.442695
    %v2796 = vpow.pop %v2795
    %v2797 = vmul.f32 %v2713, 1.442695
    %v2798 = vpow.pop %v2797
    %v2799 = vmul.f32 %v2714, 1.442695
    %v2800 = vpow.pop %v2799
    %v2801 = vmul.f32 %v2715, 1.442695
    %v2802 = vpow.pop %v2801
    %v2803 = vmul.f32 %v2716, 1.442695
    %v2804 = vpow.pop %v2803
    %v2805 = vmul.f32 %v2717, 1.442695
    %v2806 = vpow.pop %v2805
    %v2807 = vmul.f32 %v2718, 1.442695
    %v2808 = vpow.pop %v2807
    %v2809 = vmul.f32 %v2719, 1.442695
    %v2810 = vpow.pop %v2809
    %v2811 = vmul.f32 %v2720, 1.442695
    %v2812 = vpow.pop %v2811
    %v2813 = vmul.f32 %v2721, 1.442695
    %v2814 = vpow.pop %v2813
    %v2815 = vmul.f32 %v2722, 1.442695
    %v2816 = vpow.pop %v2815
    %v2817 = vmul.f32 %v2723, 1.442695
    %v2818 = vpow.pop %v2817
    %v2819 = vmul.f32 %v2724, 1.442695
    %v2820 = vpow.pop %v2819
    %v2821 = vmul.f32 %v2725, 1.442695
    %v2822 = vpow.pop %v2821
    %v2823 = vmul.f32 %v2726, 1.442695
    %v2824 = vpow.pop %v2823
    %v2825 = vmul.f32 %v2727, 1.442695
    %v2826 = vpow.pop %v2825
    %v2827 = vmul.f32 %v2728, 1.442695
    %v2828 = vpow.pop %v2827
    %v2829 = vmul.f32 %v2729, 1.442695
    %v2830 = vpow.pop %v2829
    %v2831 = vmul.f32 %v2730, 1.442695
    %v2832 = vpow.pop %v2831
    %v2833 = vmul.f32 %v2731, 1.442695
    %v2834 = vpow.pop %v2833
    %v2835 = vmul.f32 %v2732, 1.442695
    %v2836 = vpow.pop %v2835
    %v2837 = vmul.f32 %v2733, 1.442695
    %v2838 = vpow.pop %v2837
    %v2839 = vmul.f32 %v2734, 1.442695
    %v2840 = vpow.pop %v2839
    %v2841 = vmul.f32 %v2735, 1.442695
    %v2842 = vpow.pop %v2841
    %v2843 = vmul.f32 %v2736, 1.442695
    %v2844 = vpow.pop %v2843
    %v2845 = vmul.f32 %v2737, 1.442695
    %v2846 = vpow.pop %v2845
    %v2847 = vmul.f32 %v2738, 1.442695
    %v2848 = vpow.pop %v2847
    %v2849 = vmul.f32 %v2739, 1.442695
    %v2850 = vpow.pop %v2849
    %v2851 = vmul.f32 %v2740, 1.442695
    %v2852 = vpow.pop %v2851
    %v2853 = vmul.f32 %v2741, 1.442695
    %v2854 = vpow.pop %v2853
    %v2855 = vmul.f32 %v2742, 1.442695
    %v2856 = vpow.pop %v2855
    %v2857 = vmul.f32 %v2743, 1.442695
    %v2858 = vpow.pop %v2857
    %v2859 = vmul.f32 %v2744, 1.442695
    %v2860 = vpow.pop %v2859
    %v2861 = vmul.f32 %v2745, 1.442695
    %v2862 = vpow.pop %v2861
    %v2863 = vmul.f32 %v2746, 1.442695
    %v2864 = vpow.pop %v2863
    %v2865 = vmul.f32 %v2747, 1.442695
    %v2866 = vpow.pop %v2865
    %v2867 = vmul.f32 %v2748, 1.442695
    %v2868 = vpow.pop %v2867
    %v2869 = vmul.f32 %v2749, 1.442695
    %v2870 = vpow.pop %v2869
    %v2871 = vmul.f32 %v2750, 1.442695
    %v2872 = vpow.pop %v2871
    %v2873 = vmul.f32 %v2751, 1.442695
    %v2874 = vpow.pop %v2873
    %v2875 = vmul.f32 %v2752, 1.442695
    %v2876 = vpow.pop %v2875
    %v2877 = vmul.f32 %v2753, 1.442695
    %v2878 = vpow.pop %v2877
    %v2879 = vmul.f32 %v2754, 1.442695
    %v2880 = vpow.pop %v2879
    %v2881 = vmul.f32 %v2755, 1.442695
    %v2882 = vpow.pop %v2881
    %v2883 = vmul.f32 %v2756, 1.442695
    %v2884 = vpow.pop %v2883
    %v2885 = vmul.f32 %v2758, 0.39794618
    %v2886 = vmul.f32 %v2760, 0.39794618
    %v2887 = vmul.f32 %v2762, 0.39794618
    %v2888 = vmul.f32 %v2764, 0.39794618
    %v2889 = vmul.f32 %v2766, 0.39794618
    %v2890 = vmul.f32 %v2768, 0.39794618
    %v2891 = vmul.f32 %v2770, 0.39794618
    %v2892 = vmul.f32 %v2772, 0.39794618
    %v2893 = vmul.f32 %v2774, 0.39794618
    %v2894 = vmul.f32 %v2776, 0.39794618
    %v2895 = vmul.f32 %v2778, 0.39794618
    %v2896 = vmul.f32 %v2780, 0.39794618
    %v2897 = vmul.f32 %v2782, 0.39794618
    %v2898 = vmul.f32 %v2784, 0.39794618
    %v2899 = vmul.f32 %v2786, 0.39794618
    %v2900 = vmul.f32 %v2788, 0.39794618
    %v2901 = vmul.f32 %v2790, 0.39794618
    %v2902 = vmul.f32 %v2792, 0.39794618
    %v2903 = vmul.f32 %v2794, 0.39794618
    %v2904 = vmul.f32 %v2796, 0.39794618
    %v2905 = vmul.f32 %v2798, 0.39794618
    %v2906 = vmul.f32 %v2800, 0.39794618
    %v2907 = vmul.f32 %v2802, 0.39794618
    %v2908 = vmul.f32 %v2804, 0.39794618
    %v2909 = vmul.f32 %v2806, 0.39794618
    %v2910 = vmul.f32 %v2808, 0.39794618
    %v2911 = vmul.f32 %v2810, 0.39794618
    %v2912 = vmul.f32 %v2812, 0.39794618
    %v2913 = vmul.f32 %v2814, 0.39794618
    %v2914 = vmul.f32 %v2816, 0.39794618
    %v2915 = vmul.f32 %v2818, 0.39794618
    %v2916 = vmul.f32 %v2820, 0.39794618
    %v2917 = vmul.f32 %v2822, 0.39794618
    %v2918 = vmul.f32 %v2824, 0.39794618
    %v2919 = vmul.f32 %v2826, 0.39794618
    %v2920 = vmul.f32 %v2828, 0.39794618
    %v2921 = vmul.f32 %v2830, 0.39794618
    %v2922 = vmul.f32 %v2832, 0.39794618
    %v2923 = vmul.f32 %v2834, 0.39794618
    %v2924 = vmul.f32 %v2836, 0.39794618
    %v2925 = vmul.f32 %v2838, 0.39794618
    %v2926 = vmul.f32 %v2840, 0.39794618
    %v2927 = vmul.f32 %v2842, 0.39794618
    %v2928 = vmul.f32 %v2844, 0.39794618
    %v2929 = vmul.f32 %v2846, 0.39794618
    %v2930 = vmul.f32 %v2848, 0.39794618
    %v2931 = vmul.f32 %v2850, 0.39794618
    %v2932 = vmul.f32 %v2852, 0.39794618
    %v2933 = vmul.f32 %v2854, 0.39794618
    %v2934 = vmul.f32 %v2856, 0.39794618
    %v2935 = vmul.f32 %v2858, 0.39794618
    %v2936 = vmul.f32 %v2860, 0.39794618
    %v2937 = vmul.f32 %v2862, 0.39794618
    %v2938 = vmul.f32 %v2864, 0.39794618
    %v2939 = vmul.f32 %v2866, 0.39794618
    %v2940 = vmul.f32 %v2868, 0.39794618
    %v2941 = vmul.f32 %v2870, 0.39794618
    %v2942 = vmul.f32 %v2872, 0.39794618
    %v2943 = vmul.f32 %v2874, 0.39794618
    %v2944 = vmul.f32 %v2876, 0.39794618
    %v2945 = vmul.f32 %v2878, 0.39794618
    %v2946 = vmul.f32 %v2880, 0.39794618
    %v2947 = vmul.f32 %v2882, 0.39794618
    %v2948 = vmul.f32 %v2884, 0.39794618
    %v2949 = vmul.f32 %v2373, 100.0
    %v2950 = vmul.f32 %v2374, 100.0
    %v2951 = vmul.f32 %v2375, 100.0
    %v2952 = vmul.f32 %v2376, 100.0
    %v2953 = vmul.f32 %v2377, 100.0
    %v2954 = vmul.f32 %v2378, 100.0
    %v2955 = vmul.f32 %v2379, 100.0
    %v2956 = vmul.f32 %v2380, 100.0
    %v2957 = vmul.f32 %v2381, 100.0
    %v2958 = vmul.f32 %v2382, 100.0
    %v2959 = vmul.f32 %v2383, 100.0
    %v2960 = vmul.f32 %v2384, 100.0
    %v2961 = vmul.f32 %v2385, 100.0
    %v2962 = vmul.f32 %v2386, 100.0
    %v2963 = vmul.f32 %v2387, 100.0
    %v2964 = vmul.f32 %v2388, 100.0
    %v2965 = vmul.f32 %v2389, 100.0
    %v2966 = vmul.f32 %v2390, 100.0
    %v2967 = vmul.f32 %v2391, 100.0
    %v2968 = vmul.f32 %v2392, 100.0
    %v2969 = vmul.f32 %v2393, 100.0
    %v2970 = vmul.f32 %v2394, 100.0
    %v2971 = vmul.f32 %v2395, 100.0
    %v2972 = vmul.f32 %v2396, 100.0
    %v2973 = vmul.f32 %v2397, 100.0
    %v2974 = vmul.f32 %v2398, 100.0
    %v2975 = vmul.f32 %v2399, 100.0
    %v2976 = vmul.f32 %v2400, 100.0
    %v2977 = vmul.f32 %v2401, 100.0
    %v2978 = vmul.f32 %v2402, 100.0
    %v2979 = vmul.f32 %v2403, 100.0
    %v2980 = vmul.f32 %v2404, 100.0
    %v2981 = vmul.f32 %v2405, 100.0
    %v2982 = vmul.f32 %v2406, 100.0
    %v2983 = vmul.f32 %v2407, 100.0
    %v2984 = vmul.f32 %v2408, 100.0
    %v2985 = vmul.f32 %v2409, 100.0
    %v2986 = vmul.f32 %v2410, 100.0
    %v2987 = vmul.f32 %v2411, 100.0
    %v2988 = vmul.f32 %v2412, 100.0
    %v2989 = vmul.f32 %v2413, 100.0
    %v2990 = vmul.f32 %v2414, 100.0
    %v2991 = vmul.f32 %v2415, 100.0
    %v2992 = vmul.f32 %v2416, 100.0
    %v2993 = vmul.f32 %v2417, 100.0
    %v2994 = vmul.f32 %v2418, 100.0
    %v2995 = vmul.f32 %v2419, 100.0
    %v2996 = vmul.f32 %v2420, 100.0
    %v2997 = vmul.f32 %v2421, 100.0
    %v2998 = vmul.f32 %v2422, 100.0
    %v2999 = vmul.f32 %v2423, 100.0
    %v3000 = vmul.f32 %v2424, 100.0
    %v3001 = vmul.f32 %v2425, 100.0
    %v3002 = vmul.f32 %v2426, 100.0
    %v3003 = vmul.f32 %v2427, 100.0
    %v3004 = vmul.f32 %v2428, 100.0
    %v3005 = vmul.f32 %v2429, 100.0
    %v3006 = vmul.f32 %v2430, 100.0
    %v3007 = vmul.f32 %v2431, 100.0
    %v3008 = vmul.f32 %v2432, 100.0
    %v3009 = vmul.f32 %v2433, 100.0
    %v3010 = vmul.f32 %v2434, 100.0
    %v3011 = vmul.f32 %v2435, 100.0
    %v3012 = vmul.f32 %v2436, 100.0
    %v3013 = vadd.f32 %v2949, 1.0
    %v3014 = vadd.f32 %v2950, 1.0
    %v3015 = vadd.f32 %v2951, 1.0
    %v3016 = vadd.f32 %v2952, 1.0
    %v3017 = vadd.f32 %v2953, 1.0
    %v3018 = vadd.f32 %v2954, 1.0
    %v3019 = vadd.f32 %v2955, 1.0
    %v3020 = vadd.f32 %v2956, 1.0
    %v3021 = vadd.f32 %v2957, 1.0
    %v3022 = vadd.f32 %v2958, 1.0
    %v3023 = vadd.f32 %v2959, 1.0
    %v3024 = vadd.f32 %v2960, 1.0
    %v3025 = vadd.f32 %v2961, 1.0
    %v3026 = vadd.f32 %v2962, 1.0
    %v3027 = vadd.f32 %v2963, 1.0
    %v3028 = vadd.f32 %v2964, 1.0
    %v3029 = vadd.f32 %v2965, 1.0
    %v3030 = vadd.f32 %v2966, 1.0
    %v3031 = vadd.f32 %v2967, 1.0
    %v3032 = vadd.f32 %v2968, 1.0
    %v3033 = vadd.f32 %v2969, 1.0
    %v3034 = vadd.f32 %v2970, 1.0
    %v3035 = vadd.f32 %v2971, 1.0
    %v3036 = vadd.f32 %v2972, 1.0
    %v3037 = vadd.f32 %v2973, 1.0
    %v3038 = vadd.f32 %v2974, 1.0
    %v3039 = vadd.f32 %v2975, 1.0
    %v3040 = vadd.f32 %v2976, 1.0
    %v3041 = vadd.f32 %v2977, 1.0
    %v3042 = vadd.f32 %v2978, 1.0
    %v3043 = vadd.f32 %v2979, 1.0
    %v3044 = vadd.f32 %v2980, 1.0
    %v3045 = vadd.f32 %v2981, 1.0
    %v3046 = vadd.f32 %v2982, 1.0
    %v3047 = vadd.f32 %v2983, 1.0
    %v3048 = vadd.f32 %v2984, 1.0
    %v3049 = vadd.f32 %v2985, 1.0
    %v3050 = vadd.f32 %v2986, 1.0
    %v3051 = vadd.f32 %v2987, 1.0
    %v3052 = vadd.f32 %v2988, 1.0
    %v3053 = vadd.f32 %v2989, 1.0
    %v3054 = vadd.f32 %v2990, 1.0
    %v3055 = vadd.f32 %v2991, 1.0
    %v3056 = vadd.f32 %v2992, 1.0
    %v3057 = vadd.f32 %v2993, 1.0
    %v3058 = vadd.f32 %v2994, 1.0
    %v3059 = vadd.f32 %v2995, 1.0
    %v3060 = vadd.f32 %v2996, 1.0
    %v3061 = vadd.f32 %v2997, 1.0
    %v3062 = vadd.f32 %v2998, 1.0
    %v3063 = vadd.f32 %v2999, 1.0
    %v3064 = vadd.f32 %v3000, 1.0
    %v3065 = vadd.f32 %v3001, 1.0
    %v3066 = vadd.f32 %v3002, 1.0
    %v3067 = vadd.f32 %v3003, 1.0
    %v3068 = vadd.f32 %v3004, 1.0
    %v3069 = vadd.f32 %v3005, 1.0
    %v3070 = vadd.f32 %v3006, 1.0
    %v3071 = vadd.f32 %v3007, 1.0
    %v3072 = vadd.f32 %v3008, 1.0
    %v3073 = vadd.f32 %v3009, 1.0
    %v3074 = vadd.f32 %v3010, 1.0
    %v3075 = vadd.f32 %v3011, 1.0
    %v3076 = vadd.f32 %v3012, 1.0
    %v3077 = vlog2.pop %v3013
    %v3078 = vmul.f32 %v3077, 0.6931472
    %v3079 = vlog2.pop %v3014
    %v3080 = vmul.f32 %v3079, 0.6931472
    %v3081 = vlog2.pop %v3015
    %v3082 = vmul.f32 %v3081, 0.6931472
    %v3083 = vlog2.pop %v3016
    %v3084 = vmul.f32 %v3083, 0.6931472
    %v3085 = vlog2.pop %v3017
    %v3086 = vmul.f32 %v3085, 0.6931472
    %v3087 = vlog2.pop %v3018
    %v3088 = vmul.f32 %v3087, 0.6931472
    %v3089 = vlog2.pop %v3019
    %v3090 = vmul.f32 %v3089, 0.6931472
    %v3091 = vlog2.pop %v3020
    %v3092 = vmul.f32 %v3091, 0.6931472
    %v3093 = vlog2.pop %v3021
    %v3094 = vmul.f32 %v3093, 0.6931472
    %v3095 = vlog2.pop %v3022
    %v3096 = vmul.f32 %v3095, 0.6931472
    %v3097 = vlog2.pop %v3023
    %v3098 = vmul.f32 %v3097, 0.6931472
    %v3099 = vlog2.pop %v3024
    %v3100 = vmul.f32 %v3099, 0.6931472
    %v3101 = vlog2.pop %v3025
    %v3102 = vmul.f32 %v3101, 0.6931472
    %v3103 = vlog2.pop %v3026
    %v3104 = vmul.f32 %v3103, 0.6931472
    %v3105 = vlog2.pop %v3027
    %v3106 = vmul.f32 %v3105, 0.6931472
    %v3107 = vlog2.pop %v3028
    %v3108 = vmul.f32 %v3107, 0.6931472
    %v3109 = vlog2.pop %v3029
    %v3110 = vmul.f32 %v3109, 0.6931472
    %v3111 = vlog2.pop %v3030
    %v3112 = vmul.f32 %v3111, 0.6931472
    %v3113 = vlog2.pop %v3031
    %v3114 = vmul.f32 %v3113, 0.6931472
    %v3115 = vlog2.pop %v3032
    %v3116 = vmul.f32 %v3115, 0.6931472
    %v3117 = vlog2.pop %v3033
    %v3118 = vmul.f32 %v3117, 0.6931472
    %v3119 = vlog2.pop %v3034
    %v3120 = vmul.f32 %v3119, 0.6931472
    %v3121 = vlog2.pop %v3035
    %v3122 = vmul.f32 %v3121, 0.6931472
    %v3123 = vlog2.pop %v3036
    %v3124 = vmul.f32 %v3123, 0.6931472
    %v3125 = vlog2.pop %v3037
    %v3126 = vmul.f32 %v3125, 0.6931472
    %v3127 = vlog2.pop %v3038
    %v3128 = vmul.f32 %v3127, 0.6931472
    %v3129 = vlog2.pop %v3039
    %v3130 = vmul.f32 %v3129, 0.6931472
    %v3131 = vlog2.pop %v3040
    %v3132 = vmul.f32 %v3131, 0.6931472
    %v3133 = vlog2.pop %v3041
    %v3134 = vmul.f32 %v3133, 0.6931472
    %v3135 = vlog2.pop %v3042
    %v3136 = vmul.f32 %v3135, 0.6931472
    %v3137 = vlog2.pop %v3043
    %v3138 = vmul.f32 %v3137, 0.6931472
    %v3139 = vlog2.pop %v3044
    %v3140 = vmul.f32 %v3139, 0.6931472
    %v3141 = vlog2.pop %v3045
    %v3142 = vmul.f32 %v3141, 0.6931472
    %v3143 = vlog2.pop %v3046
    %v3144 = vmul.f32 %v3143, 0.6931472
    %v3145 = vlog2.pop %v3047
    %v3146 = vmul.f32 %v3145, 0.6931472
    %v3147 = vlog2.pop %v3048
    %v3148 = vmul.f32 %v3147, 0.6931472
    %v3149 = vlog2.pop %v3049
    %v3150 = vmul.f32 %v3149, 0.6931472
    %v3151 = vlog2.pop %v3050
    %v3152 = vmul.f32 %v3151, 0.6931472
    %v3153 = vlog2.pop %v3051
    %v3154 = vmul.f32 %v3153, 0.6931472
    %v3155 = vlog2.pop %v3052
    %v3156 = vmul.f32 %v3155, 0.6931472
    %v3157 = vlog2.pop %v3053
    %v3158 = vmul.f32 %v3157, 0.6931472
    %v3159 = vlog2.pop %v3054
    %v3160 = vmul.f32 %v3159, 0.6931472
    %v3161 = vlog2.pop %v3055
    %v3162 = vmul.f32 %v3161, 0.6931472
    %v3163 = vlog2.pop %v3056
    %v3164 = vmul.f32 %v3163, 0.6931472
    %v3165 = vlog2.pop %v3057
    %v3166 = vmul.f32 %v3165, 0.6931472
    %v3167 = vlog2.pop %v3058
    %v3168 = vmul.f32 %v3167, 0.6931472
    %v3169 = vlog2.pop %v3059
    %v3170 = vmul.f32 %v3169, 0.6931472
    %v3171 = vlog2.pop %v3060
    %v3172 = vmul.f32 %v3171, 0.6931472
    %v3173 = vlog2.pop %v3061
    %v3174 = vmul.f32 %v3173, 0.6931472
    %v3175 = vlog2.pop %v3062
    %v3176 = vmul.f32 %v3175, 0.6931472
    %v3177 = vlog2.pop %v3063
    %v3178 = vmul.f32 %v3177, 0.6931472
    %v3179 = vlog2.pop %v3064
    %v3180 = vmul.f32 %v3179, 0.6931472
    %v3181 = vlog2.pop %v3065
    %v3182 = vmul.f32 %v3181, 0.6931472
    %v3183 = vlog2.pop %v3066
    %v3184 = vmul.f32 %v3183, 0.6931472
    %v3185 = vlog2.pop %v3067
    %v3186 = vmul.f32 %v3185, 0.6931472
    %v3187 = vlog2.pop %v3068
    %v3188 = vmul.f32 %v3187, 0.6931472
    %v3189 = vlog2.pop %v3069
    %v3190 = vmul.f32 %v3189, 0.6931472
    %v3191 = vlog2.pop %v3070
    %v3192 = vmul.f32 %v3191, 0.6931472
    %v3193 = vlog2.pop %v3071
    %v3194 = vmul.f32 %v3193, 0.6931472
    %v3195 = vlog2.pop %v3072
    %v3196 = vmul.f32 %v3195, 0.6931472
    %v3197 = vlog2.pop %v3073
    %v3198 = vmul.f32 %v3197, 0.6931472
    %v3199 = vlog2.pop %v3074
    %v3200 = vmul.f32 %v3199, 0.6931472
    %v3201 = vlog2.pop %v3075
    %v3202 = vmul.f32 %v3201, 0.6931472
    %v3203 = vlog2.pop %v3076
    %v3204 = vmul.f32 %v3203, 0.6931472
    %v3205 = vmul.f32 %v3078, -0.505
    %v3206 = vmul.f32 %v3080, -0.505
    %v3207 = vmul.f32 %v3082, -0.505
    %v3208 = vmul.f32 %v3084, -0.505
    %v3209 = vmul.f32 %v3086, -0.505
    %v3210 = vmul.f32 %v3088, -0.505
    %v3211 = vmul.f32 %v3090, -0.505
    %v3212 = vmul.f32 %v3092, -0.505
    %v3213 = vmul.f32 %v3094, -0.505
    %v3214 = vmul.f32 %v3096, -0.505
    %v3215 = vmul.f32 %v3098, -0.505
    %v3216 = vmul.f32 %v3100, -0.505
    %v3217 = vmul.f32 %v3102, -0.505
    %v3218 = vmul.f32 %v3104, -0.505
    %v3219 = vmul.f32 %v3106, -0.505
    %v3220 = vmul.f32 %v3108, -0.505
    %v3221 = vmul.f32 %v3110, -0.505
    %v3222 = vmul.f32 %v3112, -0.505
    %v3223 = vmul.f32 %v3114, -0.505
    %v3224 = vmul.f32 %v3116, -0.505
    %v3225 = vmul.f32 %v3118, -0.505
    %v3226 = vmul.f32 %v3120, -0.505
    %v3227 = vmul.f32 %v3122, -0.505
    %v3228 = vmul.f32 %v3124, -0.505
    %v3229 = vmul.f32 %v3126, -0.505
    %v3230 = vmul.f32 %v3128, -0.505
    %v3231 = vmul.f32 %v3130, -0.505
    %v3232 = vmul.f32 %v3132, -0.505
    %v3233 = vmul.f32 %v3134, -0.505
    %v3234 = vmul.f32 %v3136, -0.505
    %v3235 = vmul.f32 %v3138, -0.505
    %v3236 = vmul.f32 %v3140, -0.505
    %v3237 = vmul.f32 %v3142, -0.505
    %v3238 = vmul.f32 %v3144, -0.505
    %v3239 = vmul.f32 %v3146, -0.505
    %v3240 = vmul.f32 %v3148, -0.505
    %v3241 = vmul.f32 %v3150, -0.505
    %v3242 = vmul.f32 %v3152, -0.505
    %v3243 = vmul.f32 %v3154, -0.505
    %v3244 = vmul.f32 %v3156, -0.505
    %v3245 = vmul.f32 %v3158, -0.505
    %v3246 = vmul.f32 %v3160, -0.505
    %v3247 = vmul.f32 %v3162, -0.505
    %v3248 = vmul.f32 %v3164, -0.505
    %v3249 = vmul.f32 %v3166, -0.505
    %v3250 = vmul.f32 %v3168, -0.505
    %v3251 = vmul.f32 %v3170, -0.505
    %v3252 = vmul.f32 %v3172, -0.505
    %v3253 = vmul.f32 %v3174, -0.505
    %v3254 = vmul.f32 %v3176, -0.505
    %v3255 = vmul.f32 %v3178, -0.505
    %v3256 = vmul.f32 %v3180, -0.505
    %v3257 = vmul.f32 %v3182, -0.505
    %v3258 = vmul.f32 %v3184, -0.505
    %v3259 = vmul.f32 %v3186, -0.505
    %v3260 = vmul.f32 %v3188, -0.505
    %v3261 = vmul.f32 %v3190, -0.505
    %v3262 = vmul.f32 %v3192, -0.505
    %v3263 = vmul.f32 %v3194, -0.505
    %v3264 = vmul.f32 %v3196, -0.505
    %v3265 = vmul.f32 %v3198, -0.505
    %v3266 = vmul.f32 %v3200, -0.505
    %v3267 = vmul.f32 %v3202, -0.505
    %v3268 = vmul.f32 %v3204, -0.505
    %v3269 = vadd.f32 %v3205, -3.0026228
    %v3270 = vadd.f32 %v3206, -3.0026228
    %v3271 = vadd.f32 %v3207, -3.0026228
    %v3272 = vadd.f32 %v3208, -3.0026228
    %v3273 = vadd.f32 %v3209, -3.0026228
    %v3274 = vadd.f32 %v3210, -3.0026228
    %v3275 = vadd.f32 %v3211, -3.0026228
    %v3276 = vadd.f32 %v3212, -3.0026228
    %v3277 = vadd.f32 %v3213, -3.0026228
    %v3278 = vadd.f32 %v3214, -3.0026228
    %v3279 = vadd.f32 %v3215, -3.0026228
    %v3280 = vadd.f32 %v3216, -3.0026228
    %v3281 = vadd.f32 %v3217, -3.0026228
    %v3282 = vadd.f32 %v3218, -3.0026228
    %v3283 = vadd.f32 %v3219, -3.0026228
    %v3284 = vadd.f32 %v3220, -3.0026228
    %v3285 = vadd.f32 %v3221, -3.0026228
    %v3286 = vadd.f32 %v3222, -3.0026228
    %v3287 = vadd.f32 %v3223, -3.0026228
    %v3288 = vadd.f32 %v3224, -3.0026228
    %v3289 = vadd.f32 %v3225, -3.0026228
    %v3290 = vadd.f32 %v3226, -3.0026228
    %v3291 = vadd.f32 %v3227, -3.0026228
    %v3292 = vadd.f32 %v3228, -3.0026228
    %v3293 = vadd.f32 %v3229, -3.0026228
    %v3294 = vadd.f32 %v3230, -3.0026228
    %v3295 = vadd.f32 %v3231, -3.0026228
    %v3296 = vadd.f32 %v3232, -3.0026228
    %v3297 = vadd.f32 %v3233, -3.0026228
    %v3298 = vadd.f32 %v3234, -3.0026228
    %v3299 = vadd.f32 %v3235, -3.0026228
    %v3300 = vadd.f32 %v3236, -3.0026228
    %v3301 = vadd.f32 %v3237, -3.0026228
    %v3302 = vadd.f32 %v3238, -3.0026228
    %v3303 = vadd.f32 %v3239, -3.0026228
    %v3304 = vadd.f32 %v3240, -3.0026228
    %v3305 = vadd.f32 %v3241, -3.0026228
    %v3306 = vadd.f32 %v3242, -3.0026228
    %v3307 = vadd.f32 %v3243, -3.0026228
    %v3308 = vadd.f32 %v3244, -3.0026228
    %v3309 = vadd.f32 %v3245, -3.0026228
    %v3310 = vadd.f32 %v3246, -3.0026228
    %v3311 = vadd.f32 %v3247, -3.0026228
    %v3312 = vadd.f32 %v3248, -3.0026228
    %v3313 = vadd.f32 %v3249, -3.0026228
    %v3314 = vadd.f32 %v3250, -3.0026228
    %v3315 = vadd.f32 %v3251, -3.0026228
    %v3316 = vadd.f32 %v3252, -3.0026228
    %v3317 = vadd.f32 %v3253, -3.0026228
    %v3318 = vadd.f32 %v3254, -3.0026228
    %v3319 = vadd.f32 %v3255, -3.0026228
    %v3320 = vadd.f32 %v3256, -3.0026228
    %v3321 = vadd.f32 %v3257, -3.0026228
    %v3322 = vadd.f32 %v3258, -3.0026228
    %v3323 = vadd.f32 %v3259, -3.0026228
    %v3324 = vadd.f32 %v3260, -3.0026228
    %v3325 = vadd.f32 %v3261, -3.0026228
    %v3326 = vadd.f32 %v3262, -3.0026228
    %v3327 = vadd.f32 %v3263, -3.0026228
    %v3328 = vadd.f32 %v3264, -3.0026228
    %v3329 = vadd.f32 %v3265, -3.0026228
    %v3330 = vadd.f32 %v3266, -3.0026228
    %v3331 = vadd.f32 %v3267, -3.0026228
    %v3332 = vadd.f32 %v3268, -3.0026228
    %v3333 = vmul.f32 %v3269, 1.442695
    %v3334 = vpow.pop %v3333
    %v3335 = vmul.f32 %v3270, 1.442695
    %v3336 = vpow.pop %v3335
    %v3337 = vmul.f32 %v3271, 1.442695
    %v3338 = vpow.pop %v3337
    %v3339 = vmul.f32 %v3272, 1.442695
    %v3340 = vpow.pop %v3339
    %v3341 = vmul.f32 %v3273, 1.442695
    %v3342 = vpow.pop %v3341
    %v3343 = vmul.f32 %v3274, 1.442695
    %v3344 = vpow.pop %v3343
    %v3345 = vmul.f32 %v3275, 1.442695
    %v3346 = vpow.pop %v3345
    %v3347 = vmul.f32 %v3276, 1.442695
    %v3348 = vpow.pop %v3347
    %v3349 = vmul.f32 %v3277, 1.442695
    %v3350 = vpow.pop %v3349
    %v3351 = vmul.f32 %v3278, 1.442695
    %v3352 = vpow.pop %v3351
    %v3353 = vmul.f32 %v3279, 1.442695
    %v3354 = vpow.pop %v3353
    %v3355 = vmul.f32 %v3280, 1.442695
    %v3356 = vpow.pop %v3355
    %v3357 = vmul.f32 %v3281, 1.442695
    %v3358 = vpow.pop %v3357
    %v3359 = vmul.f32 %v3282, 1.442695
    %v3360 = vpow.pop %v3359
    %v3361 = vmul.f32 %v3283, 1.442695
    %v3362 = vpow.pop %v3361
    %v3363 = vmul.f32 %v3284, 1.442695
    %v3364 = vpow.pop %v3363
    %v3365 = vmul.f32 %v3285, 1.442695
    %v3366 = vpow.pop %v3365
    %v3367 = vmul.f32 %v3286, 1.442695
    %v3368 = vpow.pop %v3367
    %v3369 = vmul.f32 %v3287, 1.442695
    %v3370 = vpow.pop %v3369
    %v3371 = vmul.f32 %v3288, 1.442695
    %v3372 = vpow.pop %v3371
    %v3373 = vmul.f32 %v3289, 1.442695
    %v3374 = vpow.pop %v3373
    %v3375 = vmul.f32 %v3290, 1.442695
    %v3376 = vpow.pop %v3375
    %v3377 = vmul.f32 %v3291, 1.442695
    %v3378 = vpow.pop %v3377
    %v3379 = vmul.f32 %v3292, 1.442695
    %v3380 = vpow.pop %v3379
    %v3381 = vmul.f32 %v3293, 1.442695
    %v3382 = vpow.pop %v3381
    %v3383 = vmul.f32 %v3294, 1.442695
    %v3384 = vpow.pop %v3383
    %v3385 = vmul.f32 %v3295, 1.442695
    %v3386 = vpow.pop %v3385
    %v3387 = vmul.f32 %v3296, 1.442695
    %v3388 = vpow.pop %v3387
    %v3389 = vmul.f32 %v3297, 1.442695
    %v3390 = vpow.pop %v3389
    %v3391 = vmul.f32 %v3298, 1.442695
    %v3392 = vpow.pop %v3391
    %v3393 = vmul.f32 %v3299, 1.442695
    %v3394 = vpow.pop %v3393
    %v3395 = vmul.f32 %v3300, 1.442695
    %v3396 = vpow.pop %v3395
    %v3397 = vmul.f32 %v3301, 1.442695
    %v3398 = vpow.pop %v3397
    %v3399 = vmul.f32 %v3302, 1.442695
    %v3400 = vpow.pop %v3399
    %v3401 = vmul.f32 %v3303, 1.442695
    %v3402 = vpow.pop %v3401
    %v3403 = vmul.f32 %v3304, 1.442695
    %v3404 = vpow.pop %v3403
    %v3405 = vmul.f32 %v3305, 1.442695
    %v3406 = vpow.pop %v3405
    %v3407 = vmul.f32 %v3306, 1.442695
    %v3408 = vpow.pop %v3407
    %v3409 = vmul.f32 %v3307, 1.442695
    %v3410 = vpow.pop %v3409
    %v3411 = vmul.f32 %v3308, 1.442695
    %v3412 = vpow.pop %v3411
    %v3413 = vmul.f32 %v3309, 1.442695
    %v3414 = vpow.pop %v3413
    %v3415 = vmul.f32 %v3310, 1.442695
    %v3416 = vpow.pop %v3415
    %v3417 = vmul.f32 %v3311, 1.442695
    %v3418 = vpow.pop %v3417
    %v3419 = vmul.f32 %v3312, 1.442695
    %v3420 = vpow.pop %v3419
    %v3421 = vmul.f32 %v3313, 1.442695
    %v3422 = vpow.pop %v3421
    %v3423 = vmul.f32 %v3314, 1.442695
    %v3424 = vpow.pop %v3423
    %v3425 = vmul.f32 %v3315, 1.442695
    %v3426 = vpow.pop %v3425
    %v3427 = vmul.f32 %v3316, 1.442695
    %v3428 = vpow.pop %v3427
    %v3429 = vmul.f32 %v3317, 1.442695
    %v3430 = vpow.pop %v3429
    %v3431 = vmul.f32 %v3318, 1.442695
    %v3432 = vpow.pop %v3431
    %v3433 = vmul.f32 %v3319, 1.442695
    %v3434 = vpow.pop %v3433
    %v3435 = vmul.f32 %v3320, 1.442695
    %v3436 = vpow.pop %v3435
    %v3437 = vmul.f32 %v3321, 1.442695
    %v3438 = vpow.pop %v3437
    %v3439 = vmul.f32 %v3322, 1.442695
    %v3440 = vpow.pop %v3439
    %v3441 = vmul.f32 %v3323, 1.442695
    %v3442 = vpow.pop %v3441
    %v3443 = vmul.f32 %v3324, 1.442695
    %v3444 = vpow.pop %v3443
    %v3445 = vmul.f32 %v3325, 1.442695
    %v3446 = vpow.pop %v3445
    %v3447 = vmul.f32 %v3326, 1.442695
    %v3448 = vpow.pop %v3447
    %v3449 = vmul.f32 %v3327, 1.442695
    %v3450 = vpow.pop %v3449
    %v3451 = vmul.f32 %v3328, 1.442695
    %v3452 = vpow.pop %v3451
    %v3453 = vmul.f32 %v3329, 1.442695
    %v3454 = vpow.pop %v3453
    %v3455 = vmul.f32 %v3330, 1.442695
    %v3456 = vpow.pop %v3455
    %v3457 = vmul.f32 %v3331, 1.442695
    %v3458 = vpow.pop %v3457
    %v3459 = vmul.f32 %v3332, 1.442695
    %v3460 = vpow.pop %v3459
    %v3461 = vmax.f32 %v3269, -27.631021
    %v3462 = vmax.f32 %v3270, -27.631021
    %v3463 = vmax.f32 %v3271, -27.631021
    %v3464 = vmax.f32 %v3272, -27.631021
    %v3465 = vmax.f32 %v3273, -27.631021
    %v3466 = vmax.f32 %v3274, -27.631021
    %v3467 = vmax.f32 %v3275, -27.631021
    %v3468 = vmax.f32 %v3276, -27.631021
    %v3469 = vmax.f32 %v3277, -27.631021
    %v3470 = vmax.f32 %v3278, -27.631021
    %v3471 = vmax.f32 %v3279, -27.631021
    %v3472 = vmax.f32 %v3280, -27.631021
    %v3473 = vmax.f32 %v3281, -27.631021
    %v3474 = vmax.f32 %v3282, -27.631021
    %v3475 = vmax.f32 %v3283, -27.631021
    %v3476 = vmax.f32 %v3284, -27.631021
    %v3477 = vmax.f32 %v3285, -27.631021
    %v3478 = vmax.f32 %v3286, -27.631021
    %v3479 = vmax.f32 %v3287, -27.631021
    %v3480 = vmax.f32 %v3288, -27.631021
    %v3481 = vmax.f32 %v3289, -27.631021
    %v3482 = vmax.f32 %v3290, -27.631021
    %v3483 = vmax.f32 %v3291, -27.631021
    %v3484 = vmax.f32 %v3292, -27.631021
    %v3485 = vmax.f32 %v3293, -27.631021
    %v3486 = vmax.f32 %v3294, -27.631021
    %v3487 = vmax.f32 %v3295, -27.631021
    %v3488 = vmax.f32 %v3296, -27.631021
    %v3489 = vmax.f32 %v3297, -27.631021
    %v3490 = vmax.f32 %v3298, -27.631021
    %v3491 = vmax.f32 %v3299, -27.631021
    %v3492 = vmax.f32 %v3300, -27.631021
    %v3493 = vmax.f32 %v3301, -27.631021
    %v3494 = vmax.f32 %v3302, -27.631021
    %v3495 = vmax.f32 %v3303, -27.631021
    %v3496 = vmax.f32 %v3304, -27.631021
    %v3497 = vmax.f32 %v3305, -27.631021
    %v3498 = vmax.f32 %v3306, -27.631021
    %v3499 = vmax.f32 %v3307, -27.631021
    %v3500 = vmax.f32 %v3308, -27.631021
    %v3501 = vmax.f32 %v3309, -27.631021
    %v3502 = vmax.f32 %v3310, -27.631021
    %v3503 = vmax.f32 %v3311, -27.631021
    %v3504 = vmax.f32 %v3312, -27.631021
    %v3505 = vmax.f32 %v3313, -27.631021
    %v3506 = vmax.f32 %v3314, -27.631021
    %v3507 = vmax.f32 %v3315, -27.631021
    %v3508 = vmax.f32 %v3316, -27.631021
    %v3509 = vmax.f32 %v3317, -27.631021
    %v3510 = vmax.f32 %v3318, -27.631021
    %v3511 = vmax.f32 %v3319, -27.631021
    %v3512 = vmax.f32 %v3320, -27.631021
    %v3513 = vmax.f32 %v3321, -27.631021
    %v3514 = vmax.f32 %v3322, -27.631021
    %v3515 = vmax.f32 %v3323, -27.631021
    %v3516 = vmax.f32 %v3324, -27.631021
    %v3517 = vmax.f32 %v3325, -27.631021
    %v3518 = vmax.f32 %v3326, -27.631021
    %v3519 = vmax.f32 %v3327, -27.631021
    %v3520 = vmax.f32 %v3328, -27.631021
    %v3521 = vmax.f32 %v3329, -27.631021
    %v3522 = vmax.f32 %v3330, -27.631021
    %v3523 = vmax.f32 %v3331, -27.631021
    %v3524 = vmax.f32 %v3332, -27.631021
    %v3525 = vmul.f32 %v3334, %v3334
    %v3526 = vmul.f32 %v3336, %v3336
    %v3527 = vmul.f32 %v3338, %v3338
    %v3528 = vmul.f32 %v3340, %v3340
    %v3529 = vmul.f32 %v3342, %v3342
    %v3530 = vmul.f32 %v3344, %v3344
    %v3531 = vmul.f32 %v3346, %v3346
    %v3532 = vmul.f32 %v3348, %v3348
    %v3533 = vmul.f32 %v3350, %v3350
    %v3534 = vmul.f32 %v3352, %v3352
    %v3535 = vmul.f32 %v3354, %v3354
    %v3536 = vmul.f32 %v3356, %v3356
    %v3537 = vmul.f32 %v3358, %v3358
    %v3538 = vmul.f32 %v3360, %v3360
    %v3539 = vmul.f32 %v3362, %v3362
    %v3540 = vmul.f32 %v3364, %v3364
    %v3541 = vmul.f32 %v3366, %v3366
    %v3542 = vmul.f32 %v3368, %v3368
    %v3543 = vmul.f32 %v3370, %v3370
    %v3544 = vmul.f32 %v3372, %v3372
    %v3545 = vmul.f32 %v3374, %v3374
    %v3546 = vmul.f32 %v3376, %v3376
    %v3547 = vmul.f32 %v3378, %v3378
    %v3548 = vmul.f32 %v3380, %v3380
    %v3549 = vmul.f32 %v3382, %v3382
    %v3550 = vmul.f32 %v3384, %v3384
    %v3551 = vmul.f32 %v3386, %v3386
    %v3552 = vmul.f32 %v3388, %v3388
    %v3553 = vmul.f32 %v3390, %v3390
    %v3554 = vmul.f32 %v3392, %v3392
    %v3555 = vmul.f32 %v3394, %v3394
    %v3556 = vmul.f32 %v3396, %v3396
    %v3557 = vmul.f32 %v3398, %v3398
    %v3558 = vmul.f32 %v3400, %v3400
    %v3559 = vmul.f32 %v3402, %v3402
    %v3560 = vmul.f32 %v3404, %v3404
    %v3561 = vmul.f32 %v3406, %v3406
    %v3562 = vmul.f32 %v3408, %v3408
    %v3563 = vmul.f32 %v3410, %v3410
    %v3564 = vmul.f32 %v3412, %v3412
    %v3565 = vmul.f32 %v3414, %v3414
    %v3566 = vmul.f32 %v3416, %v3416
    %v3567 = vmul.f32 %v3418, %v3418
    %v3568 = vmul.f32 %v3420, %v3420
    %v3569 = vmul.f32 %v3422, %v3422
    %v3570 = vmul.f32 %v3424, %v3424
    %v3571 = vmul.f32 %v3426, %v3426
    %v3572 = vmul.f32 %v3428, %v3428
    %v3573 = vmul.f32 %v3430, %v3430
    %v3574 = vmul.f32 %v3432, %v3432
    %v3575 = vmul.f32 %v3434, %v3434
    %v3576 = vmul.f32 %v3436, %v3436
    %v3577 = vmul.f32 %v3438, %v3438
    %v3578 = vmul.f32 %v3440, %v3440
    %v3579 = vmul.f32 %v3442, %v3442
    %v3580 = vmul.f32 %v3444, %v3444
    %v3581 = vmul.f32 %v3446, %v3446
    %v3582 = vmul.f32 %v3448, %v3448
    %v3583 = vmul.f32 %v3450, %v3450
    %v3584 = vmul.f32 %v3452, %v3452
    %v3585 = vmul.f32 %v3454, %v3454
    %v3586 = vmul.f32 %v3456, %v3456
    %v3587 = vmul.f32 %v3458, %v3458
    %v3588 = vmul.f32 %v3460, %v3460
    %v3589 = vmul.f32 %v3525, 0.5
    %v3590 = vmul.f32 %v3526, 0.5
    %v3591 = vmul.f32 %v3527, 0.5
    %v3592 = vmul.f32 %v3528, 0.5
    %v3593 = vmul.f32 %v3529, 0.5
    %v3594 = vmul.f32 %v3530, 0.5
    %v3595 = vmul.f32 %v3531, 0.5
    %v3596 = vmul.f32 %v3532, 0.5
    %v3597 = vmul.f32 %v3533, 0.5
    %v3598 = vmul.f32 %v3534, 0.5
    %v3599 = vmul.f32 %v3535, 0.5
    %v3600 = vmul.f32 %v3536, 0.5
    %v3601 = vmul.f32 %v3537, 0.5
    %v3602 = vmul.f32 %v3538, 0.5
    %v3603 = vmul.f32 %v3539, 0.5
    %v3604 = vmul.f32 %v3540, 0.5
    %v3605 = vmul.f32 %v3541, 0.5
    %v3606 = vmul.f32 %v3542, 0.5
    %v3607 = vmul.f32 %v3543, 0.5
    %v3608 = vmul.f32 %v3544, 0.5
    %v3609 = vmul.f32 %v3545, 0.5
    %v3610 = vmul.f32 %v3546, 0.5
    %v3611 = vmul.f32 %v3547, 0.5
    %v3612 = vmul.f32 %v3548, 0.5
    %v3613 = vmul.f32 %v3549, 0.5
    %v3614 = vmul.f32 %v3550, 0.5
    %v3615 = vmul.f32 %v3551, 0.5
    %v3616 = vmul.f32 %v3552, 0.5
    %v3617 = vmul.f32 %v3553, 0.5
    %v3618 = vmul.f32 %v3554, 0.5
    %v3619 = vmul.f32 %v3555, 0.5
    %v3620 = vmul.f32 %v3556, 0.5
    %v3621 = vmul.f32 %v3557, 0.5
    %v3622 = vmul.f32 %v3558, 0.5
    %v3623 = vmul.f32 %v3559, 0.5
    %v3624 = vmul.f32 %v3560, 0.5
    %v3625 = vmul.f32 %v3561, 0.5
    %v3626 = vmul.f32 %v3562, 0.5
    %v3627 = vmul.f32 %v3563, 0.5
    %v3628 = vmul.f32 %v3564, 0.5
    %v3629 = vmul.f32 %v3565, 0.5
    %v3630 = vmul.f32 %v3566, 0.5
    %v3631 = vmul.f32 %v3567, 0.5
    %v3632 = vmul.f32 %v3568, 0.5
    %v3633 = vmul.f32 %v3569, 0.5
    %v3634 = vmul.f32 %v3570, 0.5
    %v3635 = vmul.f32 %v3571, 0.5
    %v3636 = vmul.f32 %v3572, 0.5
    %v3637 = vmul.f32 %v3573, 0.5
    %v3638 = vmul.f32 %v3574, 0.5
    %v3639 = vmul.f32 %v3575, 0.5
    %v3640 = vmul.f32 %v3576, 0.5
    %v3641 = vmul.f32 %v3577, 0.5
    %v3642 = vmul.f32 %v3578, 0.5
    %v3643 = vmul.f32 %v3579, 0.5
    %v3644 = vmul.f32 %v3580, 0.5
    %v3645 = vmul.f32 %v3581, 0.5
    %v3646 = vmul.f32 %v3582, 0.5
    %v3647 = vmul.f32 %v3583, 0.5
    %v3648 = vmul.f32 %v3584, 0.5
    %v3649 = vmul.f32 %v3585, 0.5
    %v3650 = vmul.f32 %v3586, 0.5
    %v3651 = vmul.f32 %v3587, 0.5
    %v3652 = vmul.f32 %v3588, 0.5
    %v3653 = vadd.f32 %v3334, %v3589
    %v3654 = vadd.f32 %v3336, %v3590
    %v3655 = vadd.f32 %v3338, %v3591
    %v3656 = vadd.f32 %v3340, %v3592
    %v3657 = vadd.f32 %v3342, %v3593
    %v3658 = vadd.f32 %v3344, %v3594
    %v3659 = vadd.f32 %v3346, %v3595
    %v3660 = vadd.f32 %v3348, %v3596
    %v3661 = vadd.f32 %v3350, %v3597
    %v3662 = vadd.f32 %v3352, %v3598
    %v3663 = vadd.f32 %v3354, %v3599
    %v3664 = vadd.f32 %v3356, %v3600
    %v3665 = vadd.f32 %v3358, %v3601
    %v3666 = vadd.f32 %v3360, %v3602
    %v3667 = vadd.f32 %v3362, %v3603
    %v3668 = vadd.f32 %v3364, %v3604
    %v3669 = vadd.f32 %v3366, %v3605
    %v3670 = vadd.f32 %v3368, %v3606
    %v3671 = vadd.f32 %v3370, %v3607
    %v3672 = vadd.f32 %v3372, %v3608
    %v3673 = vadd.f32 %v3374, %v3609
    %v3674 = vadd.f32 %v3376, %v3610
    %v3675 = vadd.f32 %v3378, %v3611
    %v3676 = vadd.f32 %v3380, %v3612
    %v3677 = vadd.f32 %v3382, %v3613
    %v3678 = vadd.f32 %v3384, %v3614
    %v3679 = vadd.f32 %v3386, %v3615
    %v3680 = vadd.f32 %v3388, %v3616
    %v3681 = vadd.f32 %v3390, %v3617
    %v3682 = vadd.f32 %v3392, %v3618
    %v3683 = vadd.f32 %v3394, %v3619
    %v3684 = vadd.f32 %v3396, %v3620
    %v3685 = vadd.f32 %v3398, %v3621
    %v3686 = vadd.f32 %v3400, %v3622
    %v3687 = vadd.f32 %v3402, %v3623
    %v3688 = vadd.f32 %v3404, %v3624
    %v3689 = vadd.f32 %v3406, %v3625
    %v3690 = vadd.f32 %v3408, %v3626
    %v3691 = vadd.f32 %v3410, %v3627
    %v3692 = vadd.f32 %v3412, %v3628
    %v3693 = vadd.f32 %v3414, %v3629
    %v3694 = vadd.f32 %v3416, %v3630
    %v3695 = vadd.f32 %v3418, %v3631
    %v3696 = vadd.f32 %v3420, %v3632
    %v3697 = vadd.f32 %v3422, %v3633
    %v3698 = vadd.f32 %v3424, %v3634
    %v3699 = vadd.f32 %v3426, %v3635
    %v3700 = vadd.f32 %v3428, %v3636
    %v3701 = vadd.f32 %v3430, %v3637
    %v3702 = vadd.f32 %v3432, %v3638
    %v3703 = vadd.f32 %v3434, %v3639
    %v3704 = vadd.f32 %v3436, %v3640
    %v3705 = vadd.f32 %v3438, %v3641
    %v3706 = vadd.f32 %v3440, %v3642
    %v3707 = vadd.f32 %v3442, %v3643
    %v3708 = vadd.f32 %v3444, %v3644
    %v3709 = vadd.f32 %v3446, %v3645
    %v3710 = vadd.f32 %v3448, %v3646
    %v3711 = vadd.f32 %v3450, %v3647
    %v3712 = vadd.f32 %v3452, %v3648
    %v3713 = vadd.f32 %v3454, %v3649
    %v3714 = vadd.f32 %v3456, %v3650
    %v3715 = vadd.f32 %v3458, %v3651
    %v3716 = vadd.f32 %v3460, %v3652
    %v3717 = vmul.f32 %v3525, 0.33333334
    %v3718 = vmul.f32 %v3526, 0.33333334
    %v3719 = vmul.f32 %v3527, 0.33333334
    %v3720 = vmul.f32 %v3528, 0.33333334
    %v3721 = vmul.f32 %v3529, 0.33333334
    %v3722 = vmul.f32 %v3530, 0.33333334
    %v3723 = vmul.f32 %v3531, 0.33333334
    %v3724 = vmul.f32 %v3532, 0.33333334
    %v3725 = vmul.f32 %v3533, 0.33333334
    %v3726 = vmul.f32 %v3534, 0.33333334
    %v3727 = vmul.f32 %v3535, 0.33333334
    %v3728 = vmul.f32 %v3536, 0.33333334
    %v3729 = vmul.f32 %v3537, 0.33333334
    %v3730 = vmul.f32 %v3538, 0.33333334
    %v3731 = vmul.f32 %v3539, 0.33333334
    %v3732 = vmul.f32 %v3540, 0.33333334
    %v3733 = vmul.f32 %v3541, 0.33333334
    %v3734 = vmul.f32 %v3542, 0.33333334
    %v3735 = vmul.f32 %v3543, 0.33333334
    %v3736 = vmul.f32 %v3544, 0.33333334
    %v3737 = vmul.f32 %v3545, 0.33333334
    %v3738 = vmul.f32 %v3546, 0.33333334
    %v3739 = vmul.f32 %v3547, 0.33333334
    %v3740 = vmul.f32 %v3548, 0.33333334
    %v3741 = vmul.f32 %v3549, 0.33333334
    %v3742 = vmul.f32 %v3550, 0.33333334
    %v3743 = vmul.f32 %v3551, 0.33333334
    %v3744 = vmul.f32 %v3552, 0.33333334
    %v3745 = vmul.f32 %v3553, 0.33333334
    %v3746 = vmul.f32 %v3554, 0.33333334
    %v3747 = vmul.f32 %v3555, 0.33333334
    %v3748 = vmul.f32 %v3556, 0.33333334
    %v3749 = vmul.f32 %v3557, 0.33333334
    %v3750 = vmul.f32 %v3558, 0.33333334
    %v3751 = vmul.f32 %v3559, 0.33333334
    %v3752 = vmul.f32 %v3560, 0.33333334
    %v3753 = vmul.f32 %v3561, 0.33333334
    %v3754 = vmul.f32 %v3562, 0.33333334
    %v3755 = vmul.f32 %v3563, 0.33333334
    %v3756 = vmul.f32 %v3564, 0.33333334
    %v3757 = vmul.f32 %v3565, 0.33333334
    %v3758 = vmul.f32 %v3566, 0.33333334
    %v3759 = vmul.f32 %v3567, 0.33333334
    %v3760 = vmul.f32 %v3568, 0.33333334
    %v3761 = vmul.f32 %v3569, 0.33333334
    %v3762 = vmul.f32 %v3570, 0.33333334
    %v3763 = vmul.f32 %v3571, 0.33333334
    %v3764 = vmul.f32 %v3572, 0.33333334
    %v3765 = vmul.f32 %v3573, 0.33333334
    %v3766 = vmul.f32 %v3574, 0.33333334
    %v3767 = vmul.f32 %v3575, 0.33333334
    %v3768 = vmul.f32 %v3576, 0.33333334
    %v3769 = vmul.f32 %v3577, 0.33333334
    %v3770 = vmul.f32 %v3578, 0.33333334
    %v3771 = vmul.f32 %v3579, 0.33333334
    %v3772 = vmul.f32 %v3580, 0.33333334
    %v3773 = vmul.f32 %v3581, 0.33333334
    %v3774 = vmul.f32 %v3582, 0.33333334
    %v3775 = vmul.f32 %v3583, 0.33333334
    %v3776 = vmul.f32 %v3584, 0.33333334
    %v3777 = vmul.f32 %v3585, 0.33333334
    %v3778 = vmul.f32 %v3586, 0.33333334
    %v3779 = vmul.f32 %v3587, 0.33333334
    %v3780 = vmul.f32 %v3588, 0.33333334
    %v3781 = vmul.f32 %v3717, %v3334
    %v3782 = vmul.f32 %v3718, %v3336
    %v3783 = vmul.f32 %v3719, %v3338
    %v3784 = vmul.f32 %v3720, %v3340
    %v3785 = vmul.f32 %v3721, %v3342
    %v3786 = vmul.f32 %v3722, %v3344
    %v3787 = vmul.f32 %v3723, %v3346
    %v3788 = vmul.f32 %v3724, %v3348
    %v3789 = vmul.f32 %v3725, %v3350
    %v3790 = vmul.f32 %v3726, %v3352
    %v3791 = vmul.f32 %v3727, %v3354
    %v3792 = vmul.f32 %v3728, %v3356
    %v3793 = vmul.f32 %v3729, %v3358
    %v3794 = vmul.f32 %v3730, %v3360
    %v3795 = vmul.f32 %v3731, %v3362
    %v3796 = vmul.f32 %v3732, %v3364
    %v3797 = vmul.f32 %v3733, %v3366
    %v3798 = vmul.f32 %v3734, %v3368
    %v3799 = vmul.f32 %v3735, %v3370
    %v3800 = vmul.f32 %v3736, %v3372
    %v3801 = vmul.f32 %v3737, %v3374
    %v3802 = vmul.f32 %v3738, %v3376
    %v3803 = vmul.f32 %v3739, %v3378
    %v3804 = vmul.f32 %v3740, %v3380
    %v3805 = vmul.f32 %v3741, %v3382
    %v3806 = vmul.f32 %v3742, %v3384
    %v3807 = vmul.f32 %v3743, %v3386
    %v3808 = vmul.f32 %v3744, %v3388
    %v3809 = vmul.f32 %v3745, %v3390
    %v3810 = vmul.f32 %v3746, %v3392
    %v3811 = vmul.f32 %v3747, %v3394
    %v3812 = vmul.f32 %v3748, %v3396
    %v3813 = vmul.f32 %v3749, %v3398
    %v3814 = vmul.f32 %v3750, %v3400
    %v3815 = vmul.f32 %v3751, %v3402
    %v3816 = vmul.f32 %v3752, %v3404
    %v3817 = vmul.f32 %v3753, %v3406
    %v3818 = vmul.f32 %v3754, %v3408
    %v3819 = vmul.f32 %v3755, %v3410
    %v3820 = vmul.f32 %v3756, %v3412
    %v3821 = vmul.f32 %v3757, %v3414
    %v3822 = vmul.f32 %v3758, %v3416
    %v3823 = vmul.f32 %v3759, %v3418
    %v3824 = vmul.f32 %v3760, %v3420
    %v3825 = vmul.f32 %v3761, %v3422
    %v3826 = vmul.f32 %v3762, %v3424
    %v3827 = vmul.f32 %v3763, %v3426
    %v3828 = vmul.f32 %v3764, %v3428
    %v3829 = vmul.f32 %v3765, %v3430
    %v3830 = vmul.f32 %v3766, %v3432
    %v3831 = vmul.f32 %v3767, %v3434
    %v3832 = vmul.f32 %v3768, %v3436
    %v3833 = vmul.f32 %v3769, %v3438
    %v3834 = vmul.f32 %v3770, %v3440
    %v3835 = vmul.f32 %v3771, %v3442
    %v3836 = vmul.f32 %v3772, %v3444
    %v3837 = vmul.f32 %v3773, %v3446
    %v3838 = vmul.f32 %v3774, %v3448
    %v3839 = vmul.f32 %v3775, %v3450
    %v3840 = vmul.f32 %v3776, %v3452
    %v3841 = vmul.f32 %v3777, %v3454
    %v3842 = vmul.f32 %v3778, %v3456
    %v3843 = vmul.f32 %v3779, %v3458
    %v3844 = vmul.f32 %v3780, %v3460
    %v3845 = vadd.f32 %v3653, %v3781
    %v3846 = vadd.f32 %v3654, %v3782
    %v3847 = vadd.f32 %v3655, %v3783
    %v3848 = vadd.f32 %v3656, %v3784
    %v3849 = vadd.f32 %v3657, %v3785
    %v3850 = vadd.f32 %v3658, %v3786
    %v3851 = vadd.f32 %v3659, %v3787
    %v3852 = vadd.f32 %v3660, %v3788
    %v3853 = vadd.f32 %v3661, %v3789
    %v3854 = vadd.f32 %v3662, %v3790
    %v3855 = vadd.f32 %v3663, %v3791
    %v3856 = vadd.f32 %v3664, %v3792
    %v3857 = vadd.f32 %v3665, %v3793
    %v3858 = vadd.f32 %v3666, %v3794
    %v3859 = vadd.f32 %v3667, %v3795
    %v3860 = vadd.f32 %v3668, %v3796
    %v3861 = vadd.f32 %v3669, %v3797
    %v3862 = vadd.f32 %v3670, %v3798
    %v3863 = vadd.f32 %v3671, %v3799
    %v3864 = vadd.f32 %v3672, %v3800
    %v3865 = vadd.f32 %v3673, %v3801
    %v3866 = vadd.f32 %v3674, %v3802
    %v3867 = vadd.f32 %v3675, %v3803
    %v3868 = vadd.f32 %v3676, %v3804
    %v3869 = vadd.f32 %v3677, %v3805
    %v3870 = vadd.f32 %v3678, %v3806
    %v3871 = vadd.f32 %v3679, %v3807
    %v3872 = vadd.f32 %v3680, %v3808
    %v3873 = vadd.f32 %v3681, %v3809
    %v3874 = vadd.f32 %v3682, %v3810
    %v3875 = vadd.f32 %v3683, %v3811
    %v3876 = vadd.f32 %v3684, %v3812
    %v3877 = vadd.f32 %v3685, %v3813
    %v3878 = vadd.f32 %v3686, %v3814
    %v3879 = vadd.f32 %v3687, %v3815
    %v3880 = vadd.f32 %v3688, %v3816
    %v3881 = vadd.f32 %v3689, %v3817
    %v3882 = vadd.f32 %v3690, %v3818
    %v3883 = vadd.f32 %v3691, %v3819
    %v3884 = vadd.f32 %v3692, %v3820
    %v3885 = vadd.f32 %v3693, %v3821
    %v3886 = vadd.f32 %v3694, %v3822
    %v3887 = vadd.f32 %v3695, %v3823
    %v3888 = vadd.f32 %v3696, %v3824
    %v3889 = vadd.f32 %v3697, %v3825
    %v3890 = vadd.f32 %v3698, %v3826
    %v3891 = vadd.f32 %v3699, %v3827
    %v3892 = vadd.f32 %v3700, %v3828
    %v3893 = vadd.f32 %v3701, %v3829
    %v3894 = vadd.f32 %v3702, %v3830
    %v3895 = vadd.f32 %v3703, %v3831
    %v3896 = vadd.f32 %v3704, %v3832
    %v3897 = vadd.f32 %v3705, %v3833
    %v3898 = vadd.f32 %v3706, %v3834
    %v3899 = vadd.f32 %v3707, %v3835
    %v3900 = vadd.f32 %v3708, %v3836
    %v3901 = vadd.f32 %v3709, %v3837
    %v3902 = vadd.f32 %v3710, %v3838
    %v3903 = vadd.f32 %v3711, %v3839
    %v3904 = vadd.f32 %v3712, %v3840
    %v3905 = vadd.f32 %v3713, %v3841
    %v3906 = vadd.f32 %v3714, %v3842
    %v3907 = vadd.f32 %v3715, %v3843
    %v3908 = vadd.f32 %v3716, %v3844
    %v3909 = vmul.f32 %v3525, 0.25
    %v3910 = vmul.f32 %v3526, 0.25
    %v3911 = vmul.f32 %v3527, 0.25
    %v3912 = vmul.f32 %v3528, 0.25
    %v3913 = vmul.f32 %v3529, 0.25
    %v3914 = vmul.f32 %v3530, 0.25
    %v3915 = vmul.f32 %v3531, 0.25
    %v3916 = vmul.f32 %v3532, 0.25
    %v3917 = vmul.f32 %v3533, 0.25
    %v3918 = vmul.f32 %v3534, 0.25
    %v3919 = vmul.f32 %v3535, 0.25
    %v3920 = vmul.f32 %v3536, 0.25
    %v3921 = vmul.f32 %v3537, 0.25
    %v3922 = vmul.f32 %v3538, 0.25
    %v3923 = vmul.f32 %v3539, 0.25
    %v3924 = vmul.f32 %v3540, 0.25
    %v3925 = vmul.f32 %v3541, 0.25
    %v3926 = vmul.f32 %v3542, 0.25
    %v3927 = vmul.f32 %v3543, 0.25
    %v3928 = vmul.f32 %v3544, 0.25
    %v3929 = vmul.f32 %v3545, 0.25
    %v3930 = vmul.f32 %v3546, 0.25
    %v3931 = vmul.f32 %v3547, 0.25
    %v3932 = vmul.f32 %v3548, 0.25
    %v3933 = vmul.f32 %v3549, 0.25
    %v3934 = vmul.f32 %v3550, 0.25
    %v3935 = vmul.f32 %v3551, 0.25
    %v3936 = vmul.f32 %v3552, 0.25
    %v3937 = vmul.f32 %v3553, 0.25
    %v3938 = vmul.f32 %v3554, 0.25
    %v3939 = vmul.f32 %v3555, 0.25
    %v3940 = vmul.f32 %v3556, 0.25
    %v3941 = vmul.f32 %v3557, 0.25
    %v3942 = vmul.f32 %v3558, 0.25
    %v3943 = vmul.f32 %v3559, 0.25
    %v3944 = vmul.f32 %v3560, 0.25
    %v3945 = vmul.f32 %v3561, 0.25
    %v3946 = vmul.f32 %v3562, 0.25
    %v3947 = vmul.f32 %v3563, 0.25
    %v3948 = vmul.f32 %v3564, 0.25
    %v3949 = vmul.f32 %v3565, 0.25
    %v3950 = vmul.f32 %v3566, 0.25
    %v3951 = vmul.f32 %v3567, 0.25
    %v3952 = vmul.f32 %v3568, 0.25
    %v3953 = vmul.f32 %v3569, 0.25
    %v3954 = vmul.f32 %v3570, 0.25
    %v3955 = vmul.f32 %v3571, 0.25
    %v3956 = vmul.f32 %v3572, 0.25
    %v3957 = vmul.f32 %v3573, 0.25
    %v3958 = vmul.f32 %v3574, 0.25
    %v3959 = vmul.f32 %v3575, 0.25
    %v3960 = vmul.f32 %v3576, 0.25
    %v3961 = vmul.f32 %v3577, 0.25
    %v3962 = vmul.f32 %v3578, 0.25
    %v3963 = vmul.f32 %v3579, 0.25
    %v3964 = vmul.f32 %v3580, 0.25
    %v3965 = vmul.f32 %v3581, 0.25
    %v3966 = vmul.f32 %v3582, 0.25
    %v3967 = vmul.f32 %v3583, 0.25
    %v3968 = vmul.f32 %v3584, 0.25
    %v3969 = vmul.f32 %v3585, 0.25
    %v3970 = vmul.f32 %v3586, 0.25
    %v3971 = vmul.f32 %v3587, 0.25
    %v3972 = vmul.f32 %v3588, 0.25
    %v3973 = vmul.f32 %v3909, %v3525
    %v3974 = vmul.f32 %v3910, %v3526
    %v3975 = vmul.f32 %v3911, %v3527
    %v3976 = vmul.f32 %v3912, %v3528
    %v3977 = vmul.f32 %v3913, %v3529
    %v3978 = vmul.f32 %v3914, %v3530
    %v3979 = vmul.f32 %v3915, %v3531
    %v3980 = vmul.f32 %v3916, %v3532
    %v3981 = vmul.f32 %v3917, %v3533
    %v3982 = vmul.f32 %v3918, %v3534
    %v3983 = vmul.f32 %v3919, %v3535
    %v3984 = vmul.f32 %v3920, %v3536
    %v3985 = vmul.f32 %v3921, %v3537
    %v3986 = vmul.f32 %v3922, %v3538
    %v3987 = vmul.f32 %v3923, %v3539
    %v3988 = vmul.f32 %v3924, %v3540
    %v3989 = vmul.f32 %v3925, %v3541
    %v3990 = vmul.f32 %v3926, %v3542
    %v3991 = vmul.f32 %v3927, %v3543
    %v3992 = vmul.f32 %v3928, %v3544
    %v3993 = vmul.f32 %v3929, %v3545
    %v3994 = vmul.f32 %v3930, %v3546
    %v3995 = vmul.f32 %v3931, %v3547
    %v3996 = vmul.f32 %v3932, %v3548
    %v3997 = vmul.f32 %v3933, %v3549
    %v3998 = vmul.f32 %v3934, %v3550
    %v3999 = vmul.f32 %v3935, %v3551
    %v4000 = vmul.f32 %v3936, %v3552
    %v4001 = vmul.f32 %v3937, %v3553
    %v4002 = vmul.f32 %v3938, %v3554
    %v4003 = vmul.f32 %v3939, %v3555
    %v4004 = vmul.f32 %v3940, %v3556
    %v4005 = vmul.f32 %v3941, %v3557
    %v4006 = vmul.f32 %v3942, %v3558
    %v4007 = vmul.f32 %v3943, %v3559
    %v4008 = vmul.f32 %v3944, %v3560
    %v4009 = vmul.f32 %v3945, %v3561
    %v4010 = vmul.f32 %v3946, %v3562
    %v4011 = vmul.f32 %v3947, %v3563
    %v4012 = vmul.f32 %v3948, %v3564
    %v4013 = vmul.f32 %v3949, %v3565
    %v4014 = vmul.f32 %v3950, %v3566
    %v4015 = vmul.f32 %v3951, %v3567
    %v4016 = vmul.f32 %v3952, %v3568
    %v4017 = vmul.f32 %v3953, %v3569
    %v4018 = vmul.f32 %v3954, %v3570
    %v4019 = vmul.f32 %v3955, %v3571
    %v4020 = vmul.f32 %v3956, %v3572
    %v4021 = vmul.f32 %v3957, %v3573
    %v4022 = vmul.f32 %v3958, %v3574
    %v4023 = vmul.f32 %v3959, %v3575
    %v4024 = vmul.f32 %v3960, %v3576
    %v4025 = vmul.f32 %v3961, %v3577
    %v4026 = vmul.f32 %v3962, %v3578
    %v4027 = vmul.f32 %v3963, %v3579
    %v4028 = vmul.f32 %v3964, %v3580
    %v4029 = vmul.f32 %v3965, %v3581
    %v4030 = vmul.f32 %v3966, %v3582
    %v4031 = vmul.f32 %v3967, %v3583
    %v4032 = vmul.f32 %v3968, %v3584
    %v4033 = vmul.f32 %v3969, %v3585
    %v4034 = vmul.f32 %v3970, %v3586
    %v4035 = vmul.f32 %v3971, %v3587
    %v4036 = vmul.f32 %v3972, %v3588
    %v4037 = vadd.f32 %v3845, %v3973
    %v4038 = vadd.f32 %v3846, %v3974
    %v4039 = vadd.f32 %v3847, %v3975
    %v4040 = vadd.f32 %v3848, %v3976
    %v4041 = vadd.f32 %v3849, %v3977
    %v4042 = vadd.f32 %v3850, %v3978
    %v4043 = vadd.f32 %v3851, %v3979
    %v4044 = vadd.f32 %v3852, %v3980
    %v4045 = vadd.f32 %v3853, %v3981
    %v4046 = vadd.f32 %v3854, %v3982
    %v4047 = vadd.f32 %v3855, %v3983
    %v4048 = vadd.f32 %v3856, %v3984
    %v4049 = vadd.f32 %v3857, %v3985
    %v4050 = vadd.f32 %v3858, %v3986
    %v4051 = vadd.f32 %v3859, %v3987
    %v4052 = vadd.f32 %v3860, %v3988
    %v4053 = vadd.f32 %v3861, %v3989
    %v4054 = vadd.f32 %v3862, %v3990
    %v4055 = vadd.f32 %v3863, %v3991
    %v4056 = vadd.f32 %v3864, %v3992
    %v4057 = vadd.f32 %v3865, %v3993
    %v4058 = vadd.f32 %v3866, %v3994
    %v4059 = vadd.f32 %v3867, %v3995
    %v4060 = vadd.f32 %v3868, %v3996
    %v4061 = vadd.f32 %v3869, %v3997
    %v4062 = vadd.f32 %v3870, %v3998
    %v4063 = vadd.f32 %v3871, %v3999
    %v4064 = vadd.f32 %v3872, %v4000
    %v4065 = vadd.f32 %v3873, %v4001
    %v4066 = vadd.f32 %v3874, %v4002
    %v4067 = vadd.f32 %v3875, %v4003
    %v4068 = vadd.f32 %v3876, %v4004
    %v4069 = vadd.f32 %v3877, %v4005
    %v4070 = vadd.f32 %v3878, %v4006
    %v4071 = vadd.f32 %v3879, %v4007
    %v4072 = vadd.f32 %v3880, %v4008
    %v4073 = vadd.f32 %v3881, %v4009
    %v4074 = vadd.f32 %v3882, %v4010
    %v4075 = vadd.f32 %v3883, %v4011
    %v4076 = vadd.f32 %v3884, %v4012
    %v4077 = vadd.f32 %v3885, %v4013
    %v4078 = vadd.f32 %v3886, %v4014
    %v4079 = vadd.f32 %v3887, %v4015
    %v4080 = vadd.f32 %v3888, %v4016
    %v4081 = vadd.f32 %v3889, %v4017
    %v4082 = vadd.f32 %v3890, %v4018
    %v4083 = vadd.f32 %v3891, %v4019
    %v4084 = vadd.f32 %v3892, %v4020
    %v4085 = vadd.f32 %v3893, %v4021
    %v4086 = vadd.f32 %v3894, %v4022
    %v4087 = vadd.f32 %v3895, %v4023
    %v4088 = vadd.f32 %v3896, %v4024
    %v4089 = vadd.f32 %v3897, %v4025
    %v4090 = vadd.f32 %v3898, %v4026
    %v4091 = vadd.f32 %v3899, %v4027
    %v4092 = vadd.f32 %v3900, %v4028
    %v4093 = vadd.f32 %v3901, %v4029
    %v4094 = vadd.f32 %v3902, %v4030
    %v4095 = vadd.f32 %v3903, %v4031
    %v4096 = vadd.f32 %v3904, %v4032
    %v4097 = vadd.f32 %v3905, %v4033
    %v4098 = vadd.f32 %v3906, %v4034
    %v4099 = vadd.f32 %v3907, %v4035
    %v4100 = vadd.f32 %v3908, %v4036
    %v4101 = vsub.f32 0.0, %v4037
    %v4102 = vsub.f32 0.0, %v4038
    %v4103 = vsub.f32 0.0, %v4039
    %v4104 = vsub.f32 0.0, %v4040
    %v4105 = vsub.f32 0.0, %v4041
    %v4106 = vsub.f32 0.0, %v4042
    %v4107 = vsub.f32 0.0, %v4043
    %v4108 = vsub.f32 0.0, %v4044
    %v4109 = vsub.f32 0.0, %v4045
    %v4110 = vsub.f32 0.0, %v4046
    %v4111 = vsub.f32 0.0, %v4047
    %v4112 = vsub.f32 0.0, %v4048
    %v4113 = vsub.f32 0.0, %v4049
    %v4114 = vsub.f32 0.0, %v4050
    %v4115 = vsub.f32 0.0, %v4051
    %v4116 = vsub.f32 0.0, %v4052
    %v4117 = vsub.f32 0.0, %v4053
    %v4118 = vsub.f32 0.0, %v4054
    %v4119 = vsub.f32 0.0, %v4055
    %v4120 = vsub.f32 0.0, %v4056
    %v4121 = vsub.f32 0.0, %v4057
    %v4122 = vsub.f32 0.0, %v4058
    %v4123 = vsub.f32 0.0, %v4059
    %v4124 = vsub.f32 0.0, %v4060
    %v4125 = vsub.f32 0.0, %v4061
    %v4126 = vsub.f32 0.0, %v4062
    %v4127 = vsub.f32 0.0, %v4063
    %v4128 = vsub.f32 0.0, %v4064
    %v4129 = vsub.f32 0.0, %v4065
    %v4130 = vsub.f32 0.0, %v4066
    %v4131 = vsub.f32 0.0, %v4067
    %v4132 = vsub.f32 0.0, %v4068
    %v4133 = vsub.f32 0.0, %v4069
    %v4134 = vsub.f32 0.0, %v4070
    %v4135 = vsub.f32 0.0, %v4071
    %v4136 = vsub.f32 0.0, %v4072
    %v4137 = vsub.f32 0.0, %v4073
    %v4138 = vsub.f32 0.0, %v4074
    %v4139 = vsub.f32 0.0, %v4075
    %v4140 = vsub.f32 0.0, %v4076
    %v4141 = vsub.f32 0.0, %v4077
    %v4142 = vsub.f32 0.0, %v4078
    %v4143 = vsub.f32 0.0, %v4079
    %v4144 = vsub.f32 0.0, %v4080
    %v4145 = vsub.f32 0.0, %v4081
    %v4146 = vsub.f32 0.0, %v4082
    %v4147 = vsub.f32 0.0, %v4083
    %v4148 = vsub.f32 0.0, %v4084
    %v4149 = vsub.f32 0.0, %v4085
    %v4150 = vsub.f32 0.0, %v4086
    %v4151 = vsub.f32 0.0, %v4087
    %v4152 = vsub.f32 0.0, %v4088
    %v4153 = vsub.f32 0.0, %v4089
    %v4154 = vsub.f32 0.0, %v4090
    %v4155 = vsub.f32 0.0, %v4091
    %v4156 = vsub.f32 0.0, %v4092
    %v4157 = vsub.f32 0.0, %v4093
    %v4158 = vsub.f32 0.0, %v4094
    %v4159 = vsub.f32 0.0, %v4095
    %v4160 = vsub.f32 0.0, %v4096
    %v4161 = vsub.f32 0.0, %v4097
    %v4162 = vsub.f32 0.0, %v4098
    %v4163 = vsub.f32 0.0, %v4099
    %v4164 = vsub.f32 0.0, %v4100
    %v4165 = vmul.f32 %v2885, %v3461
    %v4166 = vmul.f32 %v2886, %v3462
    %v4167 = vmul.f32 %v2887, %v3463
    %v4168 = vmul.f32 %v2888, %v3464
    %v4169 = vmul.f32 %v2889, %v3465
    %v4170 = vmul.f32 %v2890, %v3466
    %v4171 = vmul.f32 %v2891, %v3467
    %v4172 = vmul.f32 %v2892, %v3468
    %v4173 = vmul.f32 %v2893, %v3469
    %v4174 = vmul.f32 %v2894, %v3470
    %v4175 = vmul.f32 %v2895, %v3471
    %v4176 = vmul.f32 %v2896, %v3472
    %v4177 = vmul.f32 %v2897, %v3473
    %v4178 = vmul.f32 %v2898, %v3474
    %v4179 = vmul.f32 %v2899, %v3475
    %v4180 = vmul.f32 %v2900, %v3476
    %v4181 = vmul.f32 %v2901, %v3477
    %v4182 = vmul.f32 %v2902, %v3478
    %v4183 = vmul.f32 %v2903, %v3479
    %v4184 = vmul.f32 %v2904, %v3480
    %v4185 = vmul.f32 %v2905, %v3481
    %v4186 = vmul.f32 %v2906, %v3482
    %v4187 = vmul.f32 %v2907, %v3483
    %v4188 = vmul.f32 %v2908, %v3484
    %v4189 = vmul.f32 %v2909, %v3485
    %v4190 = vmul.f32 %v2910, %v3486
    %v4191 = vmul.f32 %v2911, %v3487
    %v4192 = vmul.f32 %v2912, %v3488
    %v4193 = vmul.f32 %v2913, %v3489
    %v4194 = vmul.f32 %v2914, %v3490
    %v4195 = vmul.f32 %v2915, %v3491
    %v4196 = vmul.f32 %v2916, %v3492
    %v4197 = vmul.f32 %v2917, %v3493
    %v4198 = vmul.f32 %v2918, %v3494
    %v4199 = vmul.f32 %v2919, %v3495
    %v4200 = vmul.f32 %v2920, %v3496
    %v4201 = vmul.f32 %v2921, %v3497
    %v4202 = vmul.f32 %v2922, %v3498
    %v4203 = vmul.f32 %v2923, %v3499
    %v4204 = vmul.f32 %v2924, %v3500
    %v4205 = vmul.f32 %v2925, %v3501
    %v4206 = vmul.f32 %v2926, %v3502
    %v4207 = vmul.f32 %v2927, %v3503
    %v4208 = vmul.f32 %v2928, %v3504
    %v4209 = vmul.f32 %v2929, %v3505
    %v4210 = vmul.f32 %v2930, %v3506
    %v4211 = vmul.f32 %v2931, %v3507
    %v4212 = vmul.f32 %v2932, %v3508
    %v4213 = vmul.f32 %v2933, %v3509
    %v4214 = vmul.f32 %v2934, %v3510
    %v4215 = vmul.f32 %v2935, %v3511
    %v4216 = vmul.f32 %v2936, %v3512
    %v4217 = vmul.f32 %v2937, %v3513
    %v4218 = vmul.f32 %v2938, %v3514
    %v4219 = vmul.f32 %v2939, %v3515
    %v4220 = vmul.f32 %v2940, %v3516
    %v4221 = vmul.f32 %v2941, %v3517
    %v4222 = vmul.f32 %v2942, %v3518
    %v4223 = vmul.f32 %v2943, %v3519
    %v4224 = vmul.f32 %v2944, %v3520
    %v4225 = vmul.f32 %v2945, %v3521
    %v4226 = vmul.f32 %v2946, %v3522
    %v4227 = vmul.f32 %v2947, %v3523
    %v4228 = vmul.f32 %v2948, %v3524
    %v4229 = vsub.f32 1.0, %v2885
    %v4230 = vsub.f32 1.0, %v2886
    %v4231 = vsub.f32 1.0, %v2887
    %v4232 = vsub.f32 1.0, %v2888
    %v4233 = vsub.f32 1.0, %v2889
    %v4234 = vsub.f32 1.0, %v2890
    %v4235 = vsub.f32 1.0, %v2891
    %v4236 = vsub.f32 1.0, %v2892
    %v4237 = vsub.f32 1.0, %v2893
    %v4238 = vsub.f32 1.0, %v2894
    %v4239 = vsub.f32 1.0, %v2895
    %v4240 = vsub.f32 1.0, %v2896
    %v4241 = vsub.f32 1.0, %v2897
    %v4242 = vsub.f32 1.0, %v2898
    %v4243 = vsub.f32 1.0, %v2899
    %v4244 = vsub.f32 1.0, %v2900
    %v4245 = vsub.f32 1.0, %v2901
    %v4246 = vsub.f32 1.0, %v2902
    %v4247 = vsub.f32 1.0, %v2903
    %v4248 = vsub.f32 1.0, %v2904
    %v4249 = vsub.f32 1.0, %v2905
    %v4250 = vsub.f32 1.0, %v2906
    %v4251 = vsub.f32 1.0, %v2907
    %v4252 = vsub.f32 1.0, %v2908
    %v4253 = vsub.f32 1.0, %v2909
    %v4254 = vsub.f32 1.0, %v2910
    %v4255 = vsub.f32 1.0, %v2911
    %v4256 = vsub.f32 1.0, %v2912
    %v4257 = vsub.f32 1.0, %v2913
    %v4258 = vsub.f32 1.0, %v2914
    %v4259 = vsub.f32 1.0, %v2915
    %v4260 = vsub.f32 1.0, %v2916
    %v4261 = vsub.f32 1.0, %v2917
    %v4262 = vsub.f32 1.0, %v2918
    %v4263 = vsub.f32 1.0, %v2919
    %v4264 = vsub.f32 1.0, %v2920
    %v4265 = vsub.f32 1.0, %v2921
    %v4266 = vsub.f32 1.0, %v2922
    %v4267 = vsub.f32 1.0, %v2923
    %v4268 = vsub.f32 1.0, %v2924
    %v4269 = vsub.f32 1.0, %v2925
    %v4270 = vsub.f32 1.0, %v2926
    %v4271 = vsub.f32 1.0, %v2927
    %v4272 = vsub.f32 1.0, %v2928
    %v4273 = vsub.f32 1.0, %v2929
    %v4274 = vsub.f32 1.0, %v2930
    %v4275 = vsub.f32 1.0, %v2931
    %v4276 = vsub.f32 1.0, %v2932
    %v4277 = vsub.f32 1.0, %v2933
    %v4278 = vsub.f32 1.0, %v2934
    %v4279 = vsub.f32 1.0, %v2935
    %v4280 = vsub.f32 1.0, %v2936
    %v4281 = vsub.f32 1.0, %v2937
    %v4282 = vsub.f32 1.0, %v2938
    %v4283 = vsub.f32 1.0, %v2939
    %v4284 = vsub.f32 1.0, %v2940
    %v4285 = vsub.f32 1.0, %v2941
    %v4286 = vsub.f32 1.0, %v2942
    %v4287 = vsub.f32 1.0, %v2943
    %v4288 = vsub.f32 1.0, %v2944
    %v4289 = vsub.f32 1.0, %v2945
    %v4290 = vsub.f32 1.0, %v2946
    %v4291 = vsub.f32 1.0, %v2947
    %v4292 = vsub.f32 1.0, %v2948
    %v4293 = vmul.f32 %v4229, %v4101
    %v4294 = vmul.f32 %v4230, %v4102
    %v4295 = vmul.f32 %v4231, %v4103
    %v4296 = vmul.f32 %v4232, %v4104
    %v4297 = vmul.f32 %v4233, %v4105
    %v4298 = vmul.f32 %v4234, %v4106
    %v4299 = vmul.f32 %v4235, %v4107
    %v4300 = vmul.f32 %v4236, %v4108
    %v4301 = vmul.f32 %v4237, %v4109
    %v4302 = vmul.f32 %v4238, %v4110
    %v4303 = vmul.f32 %v4239, %v4111
    %v4304 = vmul.f32 %v4240, %v4112
    %v4305 = vmul.f32 %v4241, %v4113
    %v4306 = vmul.f32 %v4242, %v4114
    %v4307 = vmul.f32 %v4243, %v4115
    %v4308 = vmul.f32 %v4244, %v4116
    %v4309 = vmul.f32 %v4245, %v4117
    %v4310 = vmul.f32 %v4246, %v4118
    %v4311 = vmul.f32 %v4247, %v4119
    %v4312 = vmul.f32 %v4248, %v4120
    %v4313 = vmul.f32 %v4249, %v4121
    %v4314 = vmul.f32 %v4250, %v4122
    %v4315 = vmul.f32 %v4251, %v4123
    %v4316 = vmul.f32 %v4252, %v4124
    %v4317 = vmul.f32 %v4253, %v4125
    %v4318 = vmul.f32 %v4254, %v4126
    %v4319 = vmul.f32 %v4255, %v4127
    %v4320 = vmul.f32 %v4256, %v4128
    %v4321 = vmul.f32 %v4257, %v4129
    %v4322 = vmul.f32 %v4258, %v4130
    %v4323 = vmul.f32 %v4259, %v4131
    %v4324 = vmul.f32 %v4260, %v4132
    %v4325 = vmul.f32 %v4261, %v4133
    %v4326 = vmul.f32 %v4262, %v4134
    %v4327 = vmul.f32 %v4263, %v4135
    %v4328 = vmul.f32 %v4264, %v4136
    %v4329 = vmul.f32 %v4265, %v4137
    %v4330 = vmul.f32 %v4266, %v4138
    %v4331 = vmul.f32 %v4267, %v4139
    %v4332 = vmul.f32 %v4268, %v4140
    %v4333 = vmul.f32 %v4269, %v4141
    %v4334 = vmul.f32 %v4270, %v4142
    %v4335 = vmul.f32 %v4271, %v4143
    %v4336 = vmul.f32 %v4272, %v4144
    %v4337 = vmul.f32 %v4273, %v4145
    %v4338 = vmul.f32 %v4274, %v4146
    %v4339 = vmul.f32 %v4275, %v4147
    %v4340 = vmul.f32 %v4276, %v4148
    %v4341 = vmul.f32 %v4277, %v4149
    %v4342 = vmul.f32 %v4278, %v4150
    %v4343 = vmul.f32 %v4279, %v4151
    %v4344 = vmul.f32 %v4280, %v4152
    %v4345 = vmul.f32 %v4281, %v4153
    %v4346 = vmul.f32 %v4282, %v4154
    %v4347 = vmul.f32 %v4283, %v4155
    %v4348 = vmul.f32 %v4284, %v4156
    %v4349 = vmul.f32 %v4285, %v4157
    %v4350 = vmul.f32 %v4286, %v4158
    %v4351 = vmul.f32 %v4287, %v4159
    %v4352 = vmul.f32 %v4288, %v4160
    %v4353 = vmul.f32 %v4289, %v4161
    %v4354 = vmul.f32 %v4290, %v4162
    %v4355 = vmul.f32 %v4291, %v4163
    %v4356 = vmul.f32 %v4292, %v4164
    %v4357 = vadd.f32 %v4165, %v4293
    %v4358 = vadd.f32 %v4166, %v4294
    %v4359 = vadd.f32 %v4167, %v4295
    %v4360 = vadd.f32 %v4168, %v4296
    %v4361 = vadd.f32 %v4169, %v4297
    %v4362 = vadd.f32 %v4170, %v4298
    %v4363 = vadd.f32 %v4171, %v4299
    %v4364 = vadd.f32 %v4172, %v4300
    %v4365 = vadd.f32 %v4173, %v4301
    %v4366 = vadd.f32 %v4174, %v4302
    %v4367 = vadd.f32 %v4175, %v4303
    %v4368 = vadd.f32 %v4176, %v4304
    %v4369 = vadd.f32 %v4177, %v4305
    %v4370 = vadd.f32 %v4178, %v4306
    %v4371 = vadd.f32 %v4179, %v4307
    %v4372 = vadd.f32 %v4180, %v4308
    %v4373 = vadd.f32 %v4181, %v4309
    %v4374 = vadd.f32 %v4182, %v4310
    %v4375 = vadd.f32 %v4183, %v4311
    %v4376 = vadd.f32 %v4184, %v4312
    %v4377 = vadd.f32 %v4185, %v4313
    %v4378 = vadd.f32 %v4186, %v4314
    %v4379 = vadd.f32 %v4187, %v4315
    %v4380 = vadd.f32 %v4188, %v4316
    %v4381 = vadd.f32 %v4189, %v4317
    %v4382 = vadd.f32 %v4190, %v4318
    %v4383 = vadd.f32 %v4191, %v4319
    %v4384 = vadd.f32 %v4192, %v4320
    %v4385 = vadd.f32 %v4193, %v4321
    %v4386 = vadd.f32 %v4194, %v4322
    %v4387 = vadd.f32 %v4195, %v4323
    %v4388 = vadd.f32 %v4196, %v4324
    %v4389 = vadd.f32 %v4197, %v4325
    %v4390 = vadd.f32 %v4198, %v4326
    %v4391 = vadd.f32 %v4199, %v4327
    %v4392 = vadd.f32 %v4200, %v4328
    %v4393 = vadd.f32 %v4201, %v4329
    %v4394 = vadd.f32 %v4202, %v4330
    %v4395 = vadd.f32 %v4203, %v4331
    %v4396 = vadd.f32 %v4204, %v4332
    %v4397 = vadd.f32 %v4205, %v4333
    %v4398 = vadd.f32 %v4206, %v4334
    %v4399 = vadd.f32 %v4207, %v4335
    %v4400 = vadd.f32 %v4208, %v4336
    %v4401 = vadd.f32 %v4209, %v4337
    %v4402 = vadd.f32 %v4210, %v4338
    %v4403 = vadd.f32 %v4211, %v4339
    %v4404 = vadd.f32 %v4212, %v4340
    %v4405 = vadd.f32 %v4213, %v4341
    %v4406 = vadd.f32 %v4214, %v4342
    %v4407 = vadd.f32 %v4215, %v4343
    %v4408 = vadd.f32 %v4216, %v4344
    %v4409 = vadd.f32 %v4217, %v4345
    %v4410 = vadd.f32 %v4218, %v4346
    %v4411 = vadd.f32 %v4219, %v4347
    %v4412 = vadd.f32 %v4220, %v4348
    %v4413 = vadd.f32 %v4221, %v4349
    %v4414 = vadd.f32 %v4222, %v4350
    %v4415 = vadd.f32 %v4223, %v4351
    %v4416 = vadd.f32 %v4224, %v4352
    %v4417 = vadd.f32 %v4225, %v4353
    %v4418 = vadd.f32 %v4226, %v4354
    %v4419 = vadd.f32 %v4227, %v4355
    %v4420 = vadd.f32 %v4228, %v4356
    %v4421 = vsub.f32 0.0, %v4357
    %v4422 = vsub.f32 0.0, %v4358
    %v4423 = vsub.f32 0.0, %v4359
    %v4424 = vsub.f32 0.0, %v4360
    %v4425 = vsub.f32 0.0, %v4361
    %v4426 = vsub.f32 0.0, %v4362
    %v4427 = vsub.f32 0.0, %v4363
    %v4428 = vsub.f32 0.0, %v4364
    %v4429 = vsub.f32 0.0, %v4365
    %v4430 = vsub.f32 0.0, %v4366
    %v4431 = vsub.f32 0.0, %v4367
    %v4432 = vsub.f32 0.0, %v4368
    %v4433 = vsub.f32 0.0, %v4369
    %v4434 = vsub.f32 0.0, %v4370
    %v4435 = vsub.f32 0.0, %v4371
    %v4436 = vsub.f32 0.0, %v4372
    %v4437 = vsub.f32 0.0, %v4373
    %v4438 = vsub.f32 0.0, %v4374
    %v4439 = vsub.f32 0.0, %v4375
    %v4440 = vsub.f32 0.0, %v4376
    %v4441 = vsub.f32 0.0, %v4377
    %v4442 = vsub.f32 0.0, %v4378
    %v4443 = vsub.f32 0.0, %v4379
    %v4444 = vsub.f32 0.0, %v4380
    %v4445 = vsub.f32 0.0, %v4381
    %v4446 = vsub.f32 0.0, %v4382
    %v4447 = vsub.f32 0.0, %v4383
    %v4448 = vsub.f32 0.0, %v4384
    %v4449 = vsub.f32 0.0, %v4385
    %v4450 = vsub.f32 0.0, %v4386
    %v4451 = vsub.f32 0.0, %v4387
    %v4452 = vsub.f32 0.0, %v4388
    %v4453 = vsub.f32 0.0, %v4389
    %v4454 = vsub.f32 0.0, %v4390
    %v4455 = vsub.f32 0.0, %v4391
    %v4456 = vsub.f32 0.0, %v4392
    %v4457 = vsub.f32 0.0, %v4393
    %v4458 = vsub.f32 0.0, %v4394
    %v4459 = vsub.f32 0.0, %v4395
    %v4460 = vsub.f32 0.0, %v4396
    %v4461 = vsub.f32 0.0, %v4397
    %v4462 = vsub.f32 0.0, %v4398
    %v4463 = vsub.f32 0.0, %v4399
    %v4464 = vsub.f32 0.0, %v4400
    %v4465 = vsub.f32 0.0, %v4401
    %v4466 = vsub.f32 0.0, %v4402
    %v4467 = vsub.f32 0.0, %v4403
    %v4468 = vsub.f32 0.0, %v4404
    %v4469 = vsub.f32 0.0, %v4405
    %v4470 = vsub.f32 0.0, %v4406
    %v4471 = vsub.f32 0.0, %v4407
    %v4472 = vsub.f32 0.0, %v4408
    %v4473 = vsub.f32 0.0, %v4409
    %v4474 = vsub.f32 0.0, %v4410
    %v4475 = vsub.f32 0.0, %v4411
    %v4476 = vsub.f32 0.0, %v4412
    %v4477 = vsub.f32 0.0, %v4413
    %v4478 = vsub.f32 0.0, %v4414
    %v4479 = vsub.f32 0.0, %v4415
    %v4480 = vsub.f32 0.0, %v4416
    %v4481 = vsub.f32 0.0, %v4417
    %v4482 = vsub.f32 0.0, %v4418
    %v4483 = vsub.f32 0.0, %v4419
    %v4484 = vsub.f32 0.0, %v4420
    %v4485 = vsel %vm916, 0.0, %v4421
    %v4486 = vsel %vm917, 0.0, %v4422
    %v4487 = vsel %vm918, 0.0, %v4423
    %v4488 = vsel %vm919, 0.0, %v4424
    %v4489 = vsel %vm920, 0.0, %v4425
    %v4490 = vsel %vm921, 0.0, %v4426
    %v4491 = vsel %vm922, 0.0, %v4427
    %v4492 = vsel %vm923, 0.0, %v4428
    %v4493 = vsel %vm924, 0.0, %v4429
    %v4494 = vsel %vm925, 0.0, %v4430
    %v4495 = vsel %vm926, 0.0, %v4431
    %v4496 = vsel %vm927, 0.0, %v4432
    %v4497 = vsel %vm928, 0.0, %v4433
    %v4498 = vsel %vm929, 0.0, %v4434
    %v4499 = vsel %vm930, 0.0, %v4435
    %v4500 = vsel %vm931, 0.0, %v4436
    %v4501 = vsel %vm932, 0.0, %v4437
    %v4502 = vsel %vm933, 0.0, %v4438
    %v4503 = vsel %vm934, 0.0, %v4439
    %v4504 = vsel %vm935, 0.0, %v4440
    %v4505 = vsel %vm936, 0.0, %v4441
    %v4506 = vsel %vm937, 0.0, %v4442
    %v4507 = vsel %vm938, 0.0, %v4443
    %v4508 = vsel %vm939, 0.0, %v4444
    %v4509 = vsel %vm940, 0.0, %v4445
    %v4510 = vsel %vm941, 0.0, %v4446
    %v4511 = vsel %vm942, 0.0, %v4447
    %v4512 = vsel %vm943, 0.0, %v4448
    %v4513 = vsel %vm944, 0.0, %v4449
    %v4514 = vsel %vm945, 0.0, %v4450
    %v4515 = vsel %vm946, 0.0, %v4451
    %v4516 = vsel %vm947, 0.0, %v4452
    %v4517 = vsel %vm948, 0.0, %v4453
    %v4518 = vsel %vm949, 0.0, %v4454
    %v4519 = vsel %vm950, 0.0, %v4455
    %v4520 = vsel %vm951, 0.0, %v4456
    %v4521 = vsel %vm952, 0.0, %v4457
    %v4522 = vsel %vm953, 0.0, %v4458
    %v4523 = vsel %vm954, 0.0, %v4459
    %v4524 = vsel %vm955, 0.0, %v4460
    %v4525 = vsel %vm956, 0.0, %v4461
    %v4526 = vsel %vm957, 0.0, %v4462
    %v4527 = vsel %vm958, 0.0, %v4463
    %v4528 = vsel %vm959, 0.0, %v4464
    %v4529 = vsel %vm960, 0.0, %v4465
    %v4530 = vsel %vm961, 0.0, %v4466
    %v4531 = vsel %vm962, 0.0, %v4467
    %v4532 = vsel %vm963, 0.0, %v4468
    %v4533 = vsel %vm964, 0.0, %v4469
    %v4534 = vsel %vm965, 0.0, %v4470
    %v4535 = vsel %vm966, 0.0, %v4471
    %v4536 = vsel %vm967, 0.0, %v4472
    %v4537 = vsel %vm968, 0.0, %v4473
    %v4538 = vsel %vm969, 0.0, %v4474
    %v4539 = vsel %vm970, 0.0, %v4475
    %v4540 = vsel %vm971, 0.0, %v4476
    %v4541 = vsel %vm972, 0.0, %v4477
    %v4542 = vsel %vm973, 0.0, %v4478
    %v4543 = vsel %vm974, 0.0, %v4479
    %v4544 = vsel %vm975, 0.0, %v4480
    %v4545 = vsel %vm976, 0.0, %v4481
    %v4546 = vsel %vm977, 0.0, %v4482
    %v4547 = vsel %vm978, 0.0, %v4483
    %v4548 = vsel %vm979, 0.0, %v4484
    %v4549 = vadd.f32 %v4485, %v4486
    %4550 = vadd.xlane.f32.xlu0 %v4549
    %v4551 = vpop.xlane.xlu0 %4550
    %v4552 = vadd.f32 %v4487, %v4488
    %4553 = vadd.xlane.f32.xlu0 %v4552
    %v4554 = vpop.xlane.xlu0 %4553
    %v4555 = vadd.f32 %v4489, %v4490
    %4556 = vadd.xlane.f32.xlu0 %v4555
    %v4557 = vpop.xlane.xlu0 %4556
    %v4558 = vadd.f32 %v4491, %v4492
    %4559 = vadd.xlane.f32.xlu0 %v4558
    %v4560 = vpop.xlane.xlu0 %4559
    %v4561 = vadd.f32 %v4493, %v4494
    %4562 = vadd.xlane.f32.xlu0 %v4561
    %v4563 = vpop.xlane.xlu0 %4562
    %v4564 = vadd.f32 %v4495, %v4496
    %4565 = vadd.xlane.f32.xlu0 %v4564
    %v4566 = vpop.xlane.xlu0 %4565
    %v4567 = vadd.f32 %v4497, %v4498
    %4568 = vadd.xlane.f32.xlu0 %v4567
    %v4569 = vpop.xlane.xlu0 %4568
    %v4570 = vadd.f32 %v4499, %v4500
    %4571 = vadd.xlane.f32.xlu0 %v4570
    %v4572 = vpop.xlane.xlu0 %4571
    %v4573 = vadd.f32 %v4501, %v4502
    %4574 = vadd.xlane.f32.xlu0 %v4573
    %v4575 = vpop.xlane.xlu0 %4574
    %v4576 = vadd.f32 %v4503, %v4504
    %4577 = vadd.xlane.f32.xlu0 %v4576
    %v4578 = vpop.xlane.xlu0 %4577
    %v4579 = vadd.f32 %v4505, %v4506
    %4580 = vadd.xlane.f32.xlu0 %v4579
    %v4581 = vpop.xlane.xlu0 %4580
    %v4582 = vadd.f32 %v4507, %v4508
    %4583 = vadd.xlane.f32.xlu0 %v4582
    %v4584 = vpop.xlane.xlu0 %4583
    %v4585 = vadd.f32 %v4509, %v4510
    %4586 = vadd.xlane.f32.xlu0 %v4585
    %v4587 = vpop.xlane.xlu0 %4586
    %v4588 = vadd.f32 %v4511, %v4512
    %4589 = vadd.xlane.f32.xlu0 %v4588
    %v4590 = vpop.xlane.xlu0 %4589
    %v4591 = vadd.f32 %v4513, %v4514
    %4592 = vadd.xlane.f32.xlu0 %v4591
    %v4593 = vpop.xlane.xlu0 %4592
    %v4594 = vadd.f32 %v4515, %v4516
    %4595 = vadd.xlane.f32.xlu0 %v4594
    %v4596 = vpop.xlane.xlu0 %4595
    %v4597 = vadd.f32 %v4517, %v4518
    %4598 = vadd.xlane.f32.xlu0 %v4597
    %v4599 = vpop.xlane.xlu0 %4598
    %v4600 = vadd.f32 %v4519, %v4520
    %4601 = vadd.xlane.f32.xlu0 %v4600
    %v4602 = vpop.xlane.xlu0 %4601
    %v4603 = vadd.f32 %v4521, %v4522
    %4604 = vadd.xlane.f32.xlu0 %v4603
    %v4605 = vpop.xlane.xlu0 %4604
    %v4606 = vadd.f32 %v4523, %v4524
    %4607 = vadd.xlane.f32.xlu0 %v4606
    %v4608 = vpop.xlane.xlu0 %4607
    %v4609 = vadd.f32 %v4525, %v4526
    %4610 = vadd.xlane.f32.xlu0 %v4609
    %v4611 = vpop.xlane.xlu0 %4610
    %v4612 = vadd.f32 %v4527, %v4528
    %4613 = vadd.xlane.f32.xlu0 %v4612
    %v4614 = vpop.xlane.xlu0 %4613
    %v4615 = vadd.f32 %v4529, %v4530
    %4616 = vadd.xlane.f32.xlu0 %v4615
    %v4617 = vpop.xlane.xlu0 %4616
    %v4618 = vadd.f32 %v4531, %v4532
    %4619 = vadd.xlane.f32.xlu0 %v4618
    %v4620 = vpop.xlane.xlu0 %4619
    %v4621 = vadd.f32 %v4533, %v4534
    %4622 = vadd.xlane.f32.xlu0 %v4621
    %v4623 = vpop.xlane.xlu0 %4622
    %v4624 = vadd.f32 %v4535, %v4536
    %4625 = vadd.xlane.f32.xlu0 %v4624
    %v4626 = vpop.xlane.xlu0 %4625
    %v4627 = vadd.f32 %v4537, %v4538
    %4628 = vadd.xlane.f32.xlu0 %v4627
    %v4629 = vpop.xlane.xlu0 %4628
    %v4630 = vadd.f32 %v4539, %v4540
    %4631 = vadd.xlane.f32.xlu0 %v4630
    %v4632 = vpop.xlane.xlu0 %4631
    %v4633 = vadd.f32 %v4541, %v4542
    %4634 = vadd.xlane.f32.xlu0 %v4633
    %v4635 = vpop.xlane.xlu0 %4634
    %v4636 = vadd.f32 %v4543, %v4544
    %4637 = vadd.xlane.f32.xlu0 %v4636
    %v4638 = vpop.xlane.xlu0 %4637
    %v4639 = vadd.f32 %v4545, %v4546
    %4640 = vadd.xlane.f32.xlu0 %v4639
    %v4641 = vpop.xlane.xlu0 %4640
    %v4642 = vadd.f32 %v4547, %v4548
    %4643 = vadd.xlane.f32.xlu0 %v4642
    %v4644 = vpop.xlane.xlu0 %4643
    %vm4645 = vcmask 7168
    %4646 = vst.msk [vmem:[%s2] sm:$0xff] %vm4645, %v4551
    %4647 = vst.msk [vmem:[%s2 + $0x8] sm:$0xff] %vm4645, %v4554
    %4648 = vst.msk [vmem:[%s2 + $0x10] sm:$0xff] %vm4645, %v4557
    %4649 = vst.msk [vmem:[%s2 + $0x18] sm:$0xff] %vm4645, %v4560
    %4650 = vst.msk [vmem:[%s2 + $0x20] sm:$0xff] %vm4645, %v4563
    %4651 = vst.msk [vmem:[%s2 + $0x28] sm:$0xff] %vm4645, %v4566
    %4652 = vst.msk [vmem:[%s2 + $0x30] sm:$0xff] %vm4645, %v4569
    %4653 = vst.msk [vmem:[%s2 + $0x38] sm:$0xff] %vm4645, %v4572
    %4654 = vst.msk [vmem:[%s2 + $0x40] sm:$0xff] %vm4645, %v4575
    %4655 = vst.msk [vmem:[%s2 + $0x48] sm:$0xff] %vm4645, %v4578
    %4656 = vst.msk [vmem:[%s2 + $0x50] sm:$0xff] %vm4645, %v4581
    %4657 = vst.msk [vmem:[%s2 + $0x58] sm:$0xff] %vm4645, %v4584
    %4658 = vst.msk [vmem:[%s2 + $0x60] sm:$0xff] %vm4645, %v4587
    %4659 = vst.msk [vmem:[%s2 + $0x68] sm:$0xff] %vm4645, %v4590
    %4660 = vst.msk [vmem:[%s2 + $0x70] sm:$0xff] %vm4645, %v4593
    %4661 = vst.msk [vmem:[%s2 + $0x78] sm:$0xff] %vm4645, %v4596
    %4662 = vst.msk [vmem:[%s2 + $0x80] sm:$0xff] %vm4645, %v4599
    %4663 = vst.msk [vmem:[%s2 + $0x88] sm:$0xff] %vm4645, %v4602
    %4664 = vst.msk [vmem:[%s2 + $0x90] sm:$0xff] %vm4645, %v4605
    %4665 = vst.msk [vmem:[%s2 + $0x98] sm:$0xff] %vm4645, %v4608
    %4666 = vst.msk [vmem:[%s2 + $0xa0] sm:$0xff] %vm4645, %v4611
    %4667 = vst.msk [vmem:[%s2 + $0xa8] sm:$0xff] %vm4645, %v4614
    %4668 = vst.msk [vmem:[%s2 + $0xb0] sm:$0xff] %vm4645, %v4617
    %4669 = vst.msk [vmem:[%s2 + $0xb8] sm:$0xff] %vm4645, %v4620
    %4670 = vst.msk [vmem:[%s2 + $0xc0] sm:$0xff] %vm4645, %v4623
    %4671 = vst.msk [vmem:[%s2 + $0xc8] sm:$0xff] %vm4645, %v4626
    %4672 = vst.msk [vmem:[%s2 + $0xd0] sm:$0xff] %vm4645, %v4629
    %4673 = vst.msk [vmem:[%s2 + $0xd8] sm:$0xff] %vm4645, %v4632
    %4674 = vst.msk [vmem:[%s2 + $0xe0] sm:$0xff] %vm4645, %v4635
    %4675 = vst.msk [vmem:[%s2 + $0xe8] sm:$0xff] %vm4645, %v4638
    %4676 = vst.msk [vmem:[%s2 + $0xf0] sm:$0xff] %vm4645, %v4641
    %4677 = vst.msk [vmem:[%s2 + $0xf8] sm:$0xff] %vm4645, %v4644
    // Predicated region
    $region18: #{tpu_custom_call.1} parent=1 // pred_check
      _
    $region19: #{tpu_custom_call.1} parent=1 // pred_check_branch
      %4679 = sbr.rel (0) target = $region21
    $region20: #{tpu_custom_call.1} parent=1 // pred_region
      _
    $region21: #{tpu_custom_call.1} parent=1 // pred_fallthru
      _
    // Predicated region
    $region22: #{tpu_custom_call.1} parent=1 // pred_check
      _
    $region23: #{tpu_custom_call.1} parent=1 // pred_check_branch
      %4681 = sbr.rel (0) target = $region25
    $region24: #{tpu_custom_call.1} parent=1 // pred_region
      _
    $region25: #{tpu_custom_call.1} parent=1 // pred_fallthru
      _
    %4682 = vsyncpa [#allocation3], 1
    %4683 = vsyncpa [#allocation5], 1

</llo_original>
